<compile_context>
chip_gen: v5e
topology: v5e:2x2
jax: 0.10.0
libtpu: 0.0.40
codegen_flags: <defaults>
</compile_context>

<pallas_src>
import math
from functools import partial

import numpy as np
import jax
import jax.numpy as jnp
from jax.experimental import pallas as pl
from jax.experimental.pallas import tpu as pltpu


# ----------------------- in-kernel math helpers (f32) -----------------------

def _layernorm(x, g, b, eps=1e-5):
    # torch.nn.LayerNorm: biased variance, eps inside sqrt
    mu = jnp.mean(x, axis=-1, keepdims=True)
    xc = x - mu
    var = jnp.mean(xc * xc, axis=-1, keepdims=True)
    return xc * jax.lax.rsqrt(var + eps) * g + b


def _erf(x):
    # Abramowitz & Stegun 7.1.26 polynomial erf (|err| <= 1.5e-7); only uses
    # exp/abs/where so it lowers cleanly in Mosaic and keeps exp on the EUP.
    a1, a2, a3, a4, a5 = 0.254829592, -0.284496736, 1.421413741, -1.453152027, 1.061405429
    pp = 0.3275911
    sgn = jnp.where(x >= 0.0, 1.0, -1.0)
    ax = jnp.abs(x)
    t = 1.0 / (1.0 + pp * ax)
    poly = ((((a5 * t + a4) * t + a3) * t + a2) * t + a1) * t
    return sgn * (1.0 - poly * jnp.exp(-ax * ax))


def _gelu_exact(x):
    # matches torch.nn.GELU() default (erf formulation)
    return 0.5 * x * (1.0 + _erf(x * (1.0 / math.sqrt(2.0))))


def _softmax_last(x):
    m = jnp.max(x, axis=-1, keepdims=True)
    e = jnp.exp(x - m)
    return e / jnp.sum(e, axis=-1, keepdims=True)   # exact divide (parity with torch)


def _elu(x):
    # F.elu, alpha=1; clamp the exp argument so the unused branch never overflows
    return jnp.where(x > 0.0, x, jnp.exp(jnp.minimum(x, 0.0)) - 1.0)


# ----------------------- fused patch-embed + encoder kernel -----------------------

def encoder_kernel(xp_ref, pw_ref, pb_ref, pg_ref, pbeta_ref, pos_ref,
                   ln0g_ref, ln0b_ref, wqkv_ref, wo_ref,
                   ln1g_ref, ln1b_ref, w1_ref, b1_ref, w2_ref, b2_ref,
                   ln2g_ref, ln2b_ref,
                   out_ref, x_vmem, *, num_heads, batch, seq):
    layer = pl.program_id(0)
    num_layers = pl.num_programs(0)

    # ---- layer-0 prologue: Patchlize Linear + LayerNorm, then + pos_emb ----
    @pl.when(layer == 0)
    def _():
        pe = jnp.dot(xp_ref[...].astype(jnp.bfloat16), pw_ref[...],
                     preferred_element_type=jnp.float32) + pb_ref[...]
        pe = _layernorm(pe, pg_ref[...], pbeta_ref[...])
        x_vmem[...] = pe + pos_ref[...]          # pos already tiled to [B*L, D]

    x = x_vmem[...]                              # [B*L, D] f32, VMEM-resident
    BL, D = x.shape
    B, L = batch, seq
    dh = D // num_heads
    inv_scale = 1.0 / math.sqrt(dh)

    # ---- multi-head self-attention ----
    xn = _layernorm(x, ln0g_ref[...], ln0b_ref[...])
    xn_b = xn.astype(jnp.bfloat16)

    # fused Q|K|V projection at M = B*L: one [BL, D] x [D, 3D] matmul
    qkv = jnp.dot(xn_b, wqkv_ref[...], preferred_element_type=jnp.float32)   # [BL, 3D]
    q = qkv[:, :D]
    k = qkv[:, D:2 * D]      # lane-dense [BL, D]; no [D, L] K^T materialization
    v = qkv[:, 2 * D:]

    mha = None
    for h in range(num_heads):                   # static unroll; few heads
        c0, c1 = h * dh, (h + 1) * dh
        pv_rows = []
        for b in range(B):                       # attention is per-image by definition
            r0, r1 = b * L, (b + 1) * L
            q_bh = q[r0:r1, c0:c1].astype(jnp.bfloat16)           # [L, dh]
            k_bh = k[r0:r1, c0:c1].astype(jnp.bfloat16)           # [L, dh]
            # QK^T via dot_general contracting the last dims (MXU handles RHS^T)
            att = jax.lax.dot_general(q_bh, k_bh, (((1,), (1,)), ((), ())),
                                      preferred_element_type=jnp.float32) * inv_scale
            att = _softmax_last(att)                              # [L, L] f32
            v_bh = v[r0:r1, c0:c1].astype(jnp.bfloat16)
            pv_rows.append(jnp.dot(att.astype(jnp.bfloat16), v_bh,
                                   preferred_element_type=jnp.float32))   # [L, dh]
        pv = jnp.concatenate(pv_rows, axis=0)                     # [BL, dh]
        # no concat across heads: accumulate pv @ Wo[h*dh:(h+1)*dh, :]
        contrib = jnp.dot(pv.astype(jnp.bfloat16), wo_ref[c0:c1, :],
                          preferred_element_type=jnp.float32)     # [BL, D]
        mha = contrib if mha is None else mha + contrib

    # ---- residuals + FFN (matches ViTransformerEncoderLayer exactly) ----
    x = mha + x                                             # x = mha(norm0(x)) + x
    x = _layernorm(x, ln1g_ref[...], ln1b_ref[...]) + x     # x = norm1(x) + x
    h1 = _gelu_exact(jnp.dot(x.astype(jnp.bfloat16), w1_ref[...],
                             preferred_element_type=jnp.float32) + b1_ref[...])
    x = jnp.dot(h1.astype(jnp.bfloat16), w2_ref[...],
                preferred_element_type=jnp.float32) + b2_ref[...]
    x = x + _layernorm(x, ln2g_ref[...], ln2b_ref[...])     # return x + norm2(x)

    x_vmem[...] = x

    @pl.when(layer == num_layers - 1)
    def _():
        out_ref[...] = x


def encoder_forward(xp_flat, ep, num_heads, batch, seq):
    """xp_flat: [B*L, C*p*p] patchified input -> [B*L, D] encoder output."""
    BL, P = xp_flat.shape
    NL, D, _ = ep["wqkv"].shape
    dff = ep["w1"].shape[-1]
    pos = jnp.tile(ep["pos"][:seq], (batch, 1))              # [B*L, D], layout-only

    def const(shape):
        n = len(shape)
        return pl.BlockSpec(shape, lambda l, n=n: (0,) * n)

    def stacked(shape):
        n = len(shape)
        return pl.BlockSpec((None,) + shape, lambda l, n=n: (l,) + (0,) * n)

    kernel = partial(encoder_kernel, num_heads=num_heads, batch=batch, seq=seq)
    return pl.pallas_call(
        kernel,
        out_shape=jax.ShapeDtypeStruct((BL, D), jnp.float32),
        grid=(NL,),
        in_specs=[
            const((BL, P)),                                   # patchified pixels (layer 0)
            const((P, D)), const((1, D)), const((1, D)), const((1, D)),  # patch w/b/gamma/beta
            const((BL, D)),                                   # pos emb (tiled over batch)
            stacked((1, D)), stacked((1, D)),                 # ln0
            stacked((D, 3 * D)),                              # fused Wq|Wk|Wv
            stacked((D, D)),                                  # Wo  (concat-dim, out)
            stacked((1, D)), stacked((1, D)),                 # ln1
            stacked((D, dff)), stacked((1, dff)),             # w1, b1
            stacked((dff, D)), stacked((1, D)),               # w2, b2
            stacked((1, D)), stacked((1, D)),                 # ln2
        ],
        out_specs=pl.BlockSpec((BL, D), lambda l: (0, 0)),
        scratch_shapes=[pltpu.VMEM((BL, D), jnp.float32)],
        compiler_params=pltpu.CompilerParams(
            dimension_semantics=("arbitrary",),               # layers are sequential
            vmem_limit_bytes=32 * 1024 * 1024),
    )(xp_flat, ep["pw"], ep["pb"], ep["pg"], ep["pbeta"], pos,
      ep["ln0g"], ep["ln0b"], ep["wqkv"], ep["wo"],
      ep["ln1g"], ep["ln1b"], ep["w1"], ep["b1"], ep["w2"], ep["b2"],
      ep["ln2g"], ep["ln2b"])


# ----------------------- decoder kernels -----------------------

def decoder_stage_kernel(xcol_ref, w_ref, b_ref, scale_ref, shift_ref, up_ref, out_ref):
    # xcol_ref: [9*C_in, HW] bf16   w_ref: [C_out, 9*C_in] bf16
    # b/scale/shift: [C_out, 1] f32 up_ref: [HW, 4*HW] bf16 (bicubic x2, kron(U,U)^T)
    conv = jnp.dot(w_ref[...], xcol_ref[...],
                   preferred_element_type=jnp.float32) + b_ref[...]     # x_ = tconv(x)
    # residual uses the raw conv output, so BN stays as an explicit scale/shift
    y = _elu(conv * scale_ref[...] + shift_ref[...]) + conv             # elu(bn(x_)) + x_
    out_ref[...] = jnp.dot(y.astype(jnp.bfloat16), up_ref[...],
                           preferred_element_type=jnp.float32)          # bicubic up x2


def head_kernel(z_ref, w_ref, b_ref, out_ref):
    # 1x1 conv (n_channel -> 1) with eval-mode BN folded into w/b, then ELU
    z = z_ref[...]                                                      # [C, HW] f32
    conv = jnp.sum(z * w_ref[...], axis=0, keepdims=True) + b_ref[...]
    out_ref[...] = _elu(conv)


def _rep(shape):
    n = len(shape)
    return pl.BlockSpec(shape, lambda i, n=n: (0,) * n)


def decoder_stage(xcol, w, b, scale, shift, up):
    B, K, HW = xcol.shape
    C_out = w.shape[0]
    HW4 = up.shape[1]
    return pl.pallas_call(
        decoder_stage_kernel,
        out_shape=jax.ShapeDtypeStruct((B, C_out, HW4), jnp.float32),
        grid=(B,),
        in_specs=[
            pl.BlockSpec((None, K, HW), lambda i: (i, 0, 0)),
            _rep((C_out, K)), _rep((C_out, 1)), _rep((C_out, 1)), _rep((C_out, 1)),
            _rep((HW, HW4)),          # constant index -> DMA'd once per call
        ],
        out_specs=pl.BlockSpec((None, C_out, HW4), lambda i: (i, 0, 0)),
        compiler_params=pltpu.CompilerParams(
            dimension_semantics=("parallel",),
            vmem_limit_bytes=40 * 1024 * 1024),
    )(xcol, w, b, scale, shift, up)


def final_head(z, w, b):
    B, C, HW = z.shape
    return pl.pallas_call(
        head_kernel,
        out_shape=jax.ShapeDtypeStruct((B, 1, HW), jnp.float32),
        grid=(B,),
        in_specs=[
            pl.BlockSpec((None, C, HW), lambda i: (i, 0, 0)),
            _rep((C, 1)), _rep((1, 1)),
        ],
        out_specs=pl.BlockSpec((None, 1, HW), lambda i: (i, 0, 0)),
        compiler_params=pltpu.CompilerParams(dimension_semantics=("parallel",)),
    )(z, w, b)


# ----------------------- layout-only JAX glue -----------------------

def _im2col_3x3(x):
    """[B, C, H, W] -> [B, C*9, H*W] columns for a 3x3 'same' (zero-padded)
    conv; rows ordered (c, ky, kx) to match a [C_out, C_in*3*3] flat weight."""
    B, C, H, W = x.shape
    xpad = jnp.pad(x, ((0, 0), (0, 0), (1, 1), (1, 1)))
    cols = [xpad[:, :, ky:ky + H, kx:kx + W] for ky in range(3) for kx in range(3)]
    xc = jnp.stack(cols, axis=2)                  # [B, C, 9, H, W]
    return xc.reshape(B, C * 9, H * W)


# Exact PyTorch bicubic (a = -0.75, align_corners=False) x2 tap weights.
_CUBIC_EVEN = (-0.03515625, 0.26171875, 0.87890625, -0.10546875)   # taps m-2..m+1
_CUBIC_ODD = (-0.10546875, 0.87890625, 0.26171875, -0.03515625)    # taps m-1..m+2


def _upsample2x_matrix(S):
    U = np.zeros((2 * S, S), dtype=np.float64)
    for o in range(2 * S):
        m = o // 2
        if o % 2 == 0:
            taps, ws = (m - 2, m - 1, m, m + 1), _CUBIC_EVEN
        else:
            taps, ws = (m - 1, m, m + 1, m + 2), _CUBIC_ODD
        for t, wv in zip(taps, ws):
            U[o, min(max(t, 0), S - 1)] += wv     # border-clamped, like PyTorch
    return U


def _upsample2x_kron_T(S):
    U = _upsample2x_matrix(S)
    U2 = np.kron(U, U)                            # [(2S)^2, S^2], row-major (h, w)
    return jnp.asarray(U2.T, dtype=jnp.bfloat16)  # [S^2, 4*S^2]


# ----------------------- full ViTBackbone forward -----------------------

def vit_backbone_forward(x, params, patch_size, num_heads):
    B, C, H, W = x.shape
    p = patch_size
    gh, gw = H // p, W // p
    L = gh * gw
    # nn.Unfold((p,p), stride=(p,p)) -> [B, C*p*p, L], Transpose(1, 2), flatten batch
    xp = (x.reshape(B, C, gh, p, gw, p)
            .transpose(0, 2, 4, 1, 3, 5)
            .reshape(B * L, C * p * p))

    enc = encoder_forward(xp, params["enc"], num_heads, batch=B, seq=L)   # [B*L, D]

    D = enc.shape[-1]
    z = enc.reshape(B, D, p, p)        # ViTBackbone: x.reshape(BS, L_dim, ps, ps)

    for st in params["dec"]["stages"]:
        xcol = _im2col_3x3(z).astype(jnp.bfloat16)            # layout-only im2col
        y = decoder_stage(xcol, st["w"], st["b"], st["scale"], st["shift"], st["up"])
        s2 = st["spatial_out"]
        z = y.reshape(B, -1, s2, s2)

    hd = params["dec"]["head"]
    Bz, Cz, Hz, Wz = z.shape
    out = final_head(z.reshape(B, Cz, Hz * Wz), hd["w"], hd["b"])
    return out.reshape(B, 1, Hz, Wz)


# ----------------------- deterministic parameter init -----------------------

def init_params(key, *, patch_size, n_channel, h_dim, num_heads, num_layers, d_ff, max_seq):
    assert h_dim == 256, "ViTBackbone's tconv0 hard-codes 256 input channels (== h_dim)"
    P = n_channel * patch_size * patch_size
    keys = iter(jax.random.split(key, 1024))
    nk = lambda: next(keys)
    f32, bf16 = jnp.float32, jnp.bfloat16

    def normal(shape, scale=0.02, dtype=f32):
        return (scale * jax.random.normal(nk(), shape, dtype=jnp.float32)).astype(dtype)

    ones = lambda s: jnp.ones(s, f32)
    zeros = lambda s: jnp.zeros(s, f32)

    enc = {
        "pw": normal((P, h_dim), dtype=bf16),
        "pb": zeros((1, h_dim)),
        "pg": ones((1, h_dim)),
        "pbeta": zeros((1, h_dim)),
        "pos": normal((max_seq, h_dim)),
    }

    def layer_params():
        return {
            "ln0g": ones((1, h_dim)), "ln0b": zeros((1, h_dim)),
            "wqkv": normal((h_dim, 3 * h_dim), dtype=bf16),   # fused [Wq^T|Wk^T|Wv^T]
            "wo": normal((h_dim, h_dim), dtype=bf16),         # concat @ wo
            "ln1g": ones((1, h_dim)), "ln1b": zeros((1, h_dim)),
            "w1": normal((h_dim, d_ff), dtype=bf16), "b1": zeros((1, d_ff)),
            "w2": normal((d_ff, h_dim), dtype=bf16), "b2": zeros((1, h_dim)),
            "ln2g": ones((1, h_dim)), "ln2b": zeros((1, h_dim)),
        }

    layers = [layer_params() for _ in range(num_layers)]
    for k in layers[0]:
        enc[k] = jnp.stack([lp[k] for lp in layers])          # stacked [NL, ...]

    # decoder: (tconv0, bn0) .. (tconv3, bn3), then head (tconv4, bn4)
    bn_eps = 1e-3
    bn_scale = 1.0 / math.sqrt(1.0 + bn_eps)   # eval-mode BN, fresh running stats
    chans = [(h_dim, 256), (256, 128), (128, 64), (64, n_channel)]
    stages = []
    spatial = patch_size
    for cin, cout in chans:
        stages.append({
            "w": normal((cout, cin * 9), dtype=bf16),
            "b": normal((cout, 1)),
            "scale": jnp.full((cout, 1), bn_scale, f32),
            "shift": zeros((cout, 1)),
            "up": _upsample2x_kron_T(spatial),
            "spatial_out": spatial * 2,
        })
        spatial *= 2
    # head 1x1 conv with eval-mode BN folded in (no residual on the head path)
    w_head = normal((n_channel, 1), scale=0.1)
    b_head = normal((1, 1), scale=0.1)
    head = {
        "w": w_head * bn_scale,
        "b": b_head * bn_scale,    # + shift (== 0 for fresh BN running stats)
    }
    return {"enc": enc, "dec": {"stages": stages, "head": head}}


# ----------------------- demo -----------------------

if __name__ == "__main__":
    # Shapes consistent with ViTBackbone.forward's constraints:
    #   num_patches L = (H/p)*(W/p) must equal p*p (reshape), and h_dim must be
    #   256 (tconv0 input channels).  D=256 also keeps every kernel lane-dense.
    B, C, Himg, Wimg = 2, 4, 16, 16
    patch_size = 4
    h_dim = 256
    num_heads = 2          # dh = 128 -> head slices stay 128-lane aligned
    num_layers = 2
    d_ff = 512
    max_seq = 64

    L = (Himg // patch_size) * (Wimg // patch_size)
    assert L == patch_size * patch_size
    assert h_dim % num_heads == 0

    key = jax.random.PRNGKey(0)
    k_params, k_x = jax.random.split(key)
    params = init_params(k_params, patch_size=patch_size, n_channel=C, h_dim=h_dim,
                         num_heads=num_heads, num_layers=num_layers, d_ff=d_ff,
                         max_seq=max_seq)
    x = jax.random.normal(k_x, (B, C, Himg, Wimg), dtype=jnp.float32)

    y = vit_backbone_forward(x, params, patch_size, num_heads)
    y = jax.block_until_ready(y)
    assert y.shape == (B, 1, patch_size * 16, patch_size * 16)
    assert bool(jnp.all(jnp.isfinite(y)))
    print("KERNEL_OK")
</pallas_src>

<mosaic_0001>
module attributes {stable_mosaic.version = 11 : i64} {
  func.func @encoder_kernel(%arg0: i32, %arg1: memref<32x64xf32, #tpu.memory_space<vmem>>, %arg2: memref<64x256xbf16, #tpu.memory_space<vmem>>, %arg3: memref<1x256xf32, #tpu.memory_space<vmem>>, %arg4: memref<1x256xf32, #tpu.memory_space<vmem>>, %arg5: memref<1x256xf32, #tpu.memory_space<vmem>>, %arg6: memref<32x256xf32, #tpu.memory_space<vmem>>, %arg7: memref<1x1x256xf32, #tpu.memory_space<vmem>>, %arg8: memref<1x1x256xf32, #tpu.memory_space<vmem>>, %arg9: memref<1x256x768xbf16, #tpu.memory_space<vmem>>, %arg10: memref<1x256x256xbf16, #tpu.memory_space<vmem>>, %arg11: memref<1x1x256xf32, #tpu.memory_space<vmem>>, %arg12: memref<1x1x256xf32, #tpu.memory_space<vmem>>, %arg13: memref<1x256x512xbf16, #tpu.memory_space<vmem>>, %arg14: memref<1x1x512xf32, #tpu.memory_space<vmem>>, %arg15: memref<1x512x256xbf16, #tpu.memory_space<vmem>>, %arg16: memref<1x1x256xf32, #tpu.memory_space<vmem>>, %arg17: memref<1x1x256xf32, #tpu.memory_space<vmem>>, %arg18: memref<1x1x256xf32, #tpu.memory_space<vmem>>, %arg19: memref<32x256xf32, #tpu.memory_space<vmem>>, %arg20: memref<32x256xf32, #tpu.memory_space<vmem>>) attributes {dimension_semantics = [#tpu.dimension_semantics<arbitrary>], iteration_bounds = array<i64: 2>, scalar_prefetch = 0 : i64, scratch_operands = 1 : i64, tpu.core_type = #tpu.core_type<tc>, window_params = [{pipeline_mode = #tpu.pipeline_mode<synchronous>, transform_indices = @transform_0, window_bounds = array<i64: 32, 64>}, {pipeline_mode = #tpu.pipeline_mode<synchronous>, transform_indices = @transform_1, window_bounds = array<i64: 64, 256>}, {pipeline_mode = #tpu.pipeline_mode<synchronous>, transform_indices = @transform_2, window_bounds = array<i64: 1, 256>}, {pipeline_mode = #tpu.pipeline_mode<synchronous>, transform_indices = @transform_3, window_bounds = array<i64: 1, 256>}, {pipeline_mode = #tpu.pipeline_mode<synchronous>, transform_indices = @transform_4, window_bounds = array<i64: 1, 256>}, {pipeline_mode = #tpu.pipeline_mode<synchronous>, transform_indices = @transform_5, window_bounds = array<i64: 32, 256>}, {transform_indices = @transform_6, window_bounds = array<i64: 1, 1, 256>}, {transform_indices = @transform_7, window_bounds = array<i64: 1, 1, 256>}, {transform_indices = @transform_8, window_bounds = array<i64: 1, 256, 768>}, {transform_indices = @transform_9, window_bounds = array<i64: 1, 256, 256>}, {transform_indices = @transform_10, window_bounds = array<i64: 1, 1, 256>}, {transform_indices = @transform_11, window_bounds = array<i64: 1, 1, 256>}, {transform_indices = @transform_12, window_bounds = array<i64: 1, 256, 512>}, {transform_indices = @transform_13, window_bounds = array<i64: 1, 1, 512>}, {transform_indices = @transform_14, window_bounds = array<i64: 1, 512, 256>}, {transform_indices = @transform_15, window_bounds = array<i64: 1, 1, 256>}, {transform_indices = @transform_16, window_bounds = array<i64: 1, 1, 256>}, {transform_indices = @transform_17, window_bounds = array<i64: 1, 1, 256>}, {pipeline_mode = #tpu.pipeline_mode<synchronous>, transform_indices = @transform_18, window_bounds = array<i64: 32, 256>}]} {
    %c0_i32 = arith.constant 0 : i32
    %0 = arith.cmpi eq, %arg0, %c0_i32 : i32
    %1 = arith.extui %0 : i1 to i32
    %c0_i32_0 = arith.constant 0 : i32
    %2 = arith.cmpi ne, %1, %c0_i32_0 : i32
    scf.if %2 {
      %c0_98 = arith.constant 0 : index
      %c0_99 = arith.constant 0 : index
      %238 = vector.load %arg1[%c0_98, %c0_99] : memref<32x64xf32, #tpu.memory_space<vmem>>, vector<32x64xf32>
      %239 = arith.truncf %238 : vector<32x64xf32> to vector<32x64xbf16>
      %c0_100 = arith.constant 0 : index
      %c0_101 = arith.constant 0 : index
      %240 = vector.load %arg2[%c0_100, %c0_101] : memref<64x256xbf16, #tpu.memory_space<vmem>>, vector<64x256xbf16>
      %cst_102 = arith.constant dense<0.000000e+00> : vector<32x256xf32>
      %241 = tpu.matmul %239, %240, %cst_102 {dimension_numbers = #tpu.dot_dimension_numbers<[1], [0], [0], [1], [0, 0, 1, 1], [], []>} : vector<32x64xbf16>, vector<64x256xbf16>, vector<32x256xf32> -> vector<32x256xf32>
      %c0_103 = arith.constant 0 : index
      %c0_104 = arith.constant 0 : index
      %242 = vector.load %arg3[%c0_103, %c0_104] : memref<1x256xf32, #tpu.memory_space<vmem>>, vector<1x256xf32>
      %243 = vector.broadcast %242 : vector<1x256xf32> to vector<32x256xf32>
      %244 = arith.addf %241, %243 : vector<32x256xf32>
      %c0_105 = arith.constant 0 : index
      %c0_106 = arith.constant 0 : index
      %245 = vector.load %arg4[%c0_105, %c0_106] : memref<1x256xf32, #tpu.memory_space<vmem>>, vector<1x256xf32>
      %c0_107 = arith.constant 0 : index
      %c0_108 = arith.constant 0 : index
      %246 = vector.load %arg5[%c0_107, %c0_108] : memref<1x256xf32, #tpu.memory_space<vmem>>, vector<1x256xf32>
      %cst_109 = arith.constant dense<0.000000e+00> : vector<32xf32>
      %247 = vector.multi_reduction <add>, %244, %cst_109 [1] : vector<32x256xf32> to vector<32xf32>
      %248 = vector.shape_cast %247 : vector<32xf32> to vector<32x1xf32>
      %cst_110 = arith.constant 2.560000e+02 : f32
      %249 = vector.broadcast %cst_110 : f32 to vector<32x1xf32>
      %250 = arith.divf %248, %249 : vector<32x1xf32>
      %251 = vector.broadcast %250 : vector<32x1xf32> to vector<32x256xf32>
      %252 = arith.subf %244, %251 : vector<32x256xf32>
      %253 = arith.mulf %252, %252 : vector<32x256xf32>
      %cst_111 = arith.constant dense<0.000000e+00> : vector<32xf32>
      %254 = vector.multi_reduction <add>, %253, %cst_111 [1] : vector<32x256xf32> to vector<32xf32>
      %255 = vector.shape_cast %254 : vector<32xf32> to vector<32x1xf32>
      %cst_112 = arith.constant 2.560000e+02 : f32
      %256 = vector.broadcast %cst_112 : f32 to vector<32x1xf32>
      %257 = arith.divf %255, %256 : vector<32x1xf32>
      %cst_113 = arith.constant 9.99999974E-6 : f32
      %258 = vector.broadcast %cst_113 : f32 to vector<32x1xf32>
      %259 = arith.addf %257, %258 : vector<32x1xf32>
      %260 = math.rsqrt %259 : vector<32x1xf32>
      %261 = vector.broadcast %260 : vector<32x1xf32> to vector<32x256xf32>
      %262 = arith.mulf %252, %261 : vector<32x256xf32>
      %263 = vector.broadcast %245 : vector<1x256xf32> to vector<32x256xf32>
      %264 = arith.mulf %262, %263 : vector<32x256xf32>
      %265 = vector.broadcast %246 : vector<1x256xf32> to vector<32x256xf32>
      %266 = arith.addf %264, %265 : vector<32x256xf32>
      %c0_114 = arith.constant 0 : index
      %c0_115 = arith.constant 0 : index
      %267 = vector.load %arg6[%c0_114, %c0_115] : memref<32x256xf32, #tpu.memory_space<vmem>>, vector<32x256xf32>
      %268 = arith.addf %266, %267 : vector<32x256xf32>
      %c0_116 = arith.constant 0 : index
      %c0_117 = arith.constant 0 : index
      %269 = vector.load %arg20[%c0_116, %c0_117] : memref<32x256xf32, #tpu.memory_space<vmem>>, vector<32x256xf32>
      tpu.vector_store %arg20[%c0_116, %c0_117], %268 {strides = array<i32>} : memref<32x256xf32, #tpu.memory_space<vmem>>, vector<32x256xf32>,
    } else {
    }
    %c0 = arith.constant 0 : index
    %c0_1 = arith.constant 0 : index
    %3 = vector.load %arg20[%c0, %c0_1] : memref<32x256xf32, #tpu.memory_space<vmem>>, vector<32x256xf32>
    %c0_2 = arith.constant 0 : index
    %c0_3 = arith.constant 0 : index
    %c0_4 = arith.constant 0 : index
    %4 = vector.load %arg7[%c0_2, %c0_3, %c0_4] : memref<1x1x256xf32, #tpu.memory_space<vmem>>, vector<1x1x256xf32>
    %5 = vector.shape_cast %4 : vector<1x1x256xf32> to vector<1x256xf32>
    %c0_5 = arith.constant 0 : index
    %c0_6 = arith.constant 0 : index
    %c0_7 = arith.constant 0 : index
    %6 = vector.load %arg8[%c0_5, %c0_6, %c0_7] : memref<1x1x256xf32, #tpu.memory_space<vmem>>, vector<1x1x256xf32>
    %7 = vector.shape_cast %6 : vector<1x1x256xf32> to vector<1x256xf32>
    %cst = arith.constant dense<0.000000e+00> : vector<32xf32>
    %8 = vector.multi_reduction <add>, %3, %cst [1] : vector<32x256xf32> to vector<32xf32>
    %9 = vector.shape_cast %8 : vector<32xf32> to vector<32x1xf32>
    %cst_8 = arith.constant 2.560000e+02 : f32
    %10 = vector.broadcast %cst_8 : f32 to vector<32x1xf32>
    %11 = arith.divf %9, %10 : vector<32x1xf32>
    %12 = vector.broadcast %11 : vector<32x1xf32> to vector<32x256xf32>
    %13 = arith.subf %3, %12 : vector<32x256xf32>
    %14 = arith.mulf %13, %13 : vector<32x256xf32>
    %cst_9 = arith.constant dense<0.000000e+00> : vector<32xf32>
    %15 = vector.multi_reduction <add>, %14, %cst_9 [1] : vector<32x256xf32> to vector<32xf32>
    %16 = vector.shape_cast %15 : vector<32xf32> to vector<32x1xf32>
    %cst_10 = arith.constant 2.560000e+02 : f32
    %17 = vector.broadcast %cst_10 : f32 to vector<32x1xf32>
    %18 = arith.divf %16, %17 : vector<32x1xf32>
    %cst_11 = arith.constant 9.99999974E-6 : f32
    %19 = vector.broadcast %cst_11 : f32 to vector<32x1xf32>
    %20 = arith.addf %18, %19 : vector<32x1xf32>
    %21 = math.rsqrt %20 : vector<32x1xf32>
    %22 = vector.broadcast %21 : vector<32x1xf32> to vector<32x256xf32>
    %23 = arith.mulf %13, %22 : vector<32x256xf32>
    %24 = vector.broadcast %5 : vector<1x256xf32> to vector<32x256xf32>
    %25 = arith.mulf %23, %24 : vector<32x256xf32>
    %26 = vector.broadcast %7 : vector<1x256xf32> to vector<32x256xf32>
    %27 = arith.addf %25, %26 : vector<32x256xf32>
    %28 = arith.truncf %27 : vector<32x256xf32> to vector<32x256xbf16>
    %c0_12 = arith.constant 0 : index
    %c0_13 = arith.constant 0 : index
    %c0_14 = arith.constant 0 : index
    %29 = vector.load %arg9[%c0_12, %c0_13, %c0_14] : memref<1x256x768xbf16, #tpu.memory_space<vmem>>, vector<1x256x768xbf16>
    %30 = vector.shape_cast %29 : vector<1x256x768xbf16> to vector<256x768xbf16>
    %cst_15 = arith.constant dense<0.000000e+00> : vector<32x768xf32>
    %31 = tpu.matmul %28, %30, %cst_15 {dimension_numbers = #tpu.dot_dimension_numbers<[1], [0], [0], [1], [0, 0, 1, 1], [], []>} : vector<32x256xbf16>, vector<256x768xbf16>, vector<32x768xf32> -> vector<32x768xf32>
    %32 = vector.extract_strided_slice %31 {offsets = [0, 0], sizes = [32, 256], strides = [1, 1]} : vector<32x768xf32> to vector<32x256xf32>
    %33 = vector.extract_strided_slice %31 {offsets = [0, 256], sizes = [32, 256], strides = [1, 1]} : vector<32x768xf32> to vector<32x256xf32>
    %34 = vector.extract_strided_slice %31 {offsets = [0, 512], sizes = [32, 256], strides = [1, 1]} : vector<32x768xf32> to vector<32x256xf32>
    %35 = vector.extract_strided_slice %32 {offsets = [0, 0], sizes = [16, 128], strides = [1, 1]} : vector<32x256xf32> to vector<16x128xf32>
    %36 = arith.truncf %35 : vector<16x128xf32> to vector<16x128xbf16>
    %37 = vector.extract_strided_slice %33 {offsets = [0, 0], sizes = [16, 128], strides = [1, 1]} : vector<32x256xf32> to vector<16x128xf32>
    %38 = arith.truncf %37 : vector<16x128xf32> to vector<16x128xbf16>
    %cst_16 = arith.constant dense<0.000000e+00> : vector<16x16xf32>
    %39 = tpu.matmul %36, %38, %cst_16 {dimension_numbers = #tpu.dot_dimension_numbers<[1], [1], [0], [0], [0, 0, 1, 0], [], []>} : vector<16x128xbf16>, vector<16x128xbf16>, vector<16x16xf32> -> vector<16x16xf32>
    %cst_17 = arith.constant 0.0883883461 : f32
    %40 = vector.broadcast %cst_17 : f32 to vector<16x16xf32>
    %41 = arith.mulf %39, %40 : vector<16x16xf32>
    %cst_18 = arith.constant dense<0xFF800000> : vector<16xf32>
    %42 = vector.multi_reduction <maximumf>, %41, %cst_18 [1] : vector<16x16xf32> to vector<16xf32>
    %43 = vector.shape_cast %42 : vector<16xf32> to vector<16x1xf32>
    %44 = vector.broadcast %43 : vector<16x1xf32> to vector<16x16xf32>
    %45 = arith.subf %41, %44 : vector<16x16xf32>
    %46 = math.exp %45 : vector<16x16xf32>
    %cst_19 = arith.constant dense<0.000000e+00> : vector<16xf32>
    %47 = vector.multi_reduction <add>, %46, %cst_19 [1] : vector<16x16xf32> to vector<16xf32>
    %48 = vector.shape_cast %47 : vector<16xf32> to vector<16x1xf32>
    %49 = vector.broadcast %48 : vector<16x1xf32> to vector<16x16xf32>
    %50 = arith.divf %46, %49 : vector<16x16xf32>
    %51 = vector.extract_strided_slice %34 {offsets = [0, 0], sizes = [16, 128], strides = [1, 1]} : vector<32x256xf32> to vector<16x128xf32>
    %52 = arith.truncf %51 : vector<16x128xf32> to vector<16x128xbf16>
    %53 = arith.truncf %50 : vector<16x16xf32> to vector<16x16xbf16>
    %cst_20 = arith.constant dense<0.000000e+00> : vector<16x128xf32>
    %54 = tpu.matmul %53, %52, %cst_20 {dimension_numbers = #tpu.dot_dimension_numbers<[1], [0], [0], [1], [0, 0, 1, 1], [], []>} : vector<16x16xbf16>, vector<16x128xbf16>, vector<16x128xf32> -> vector<16x128xf32>
    %55 = vector.extract_strided_slice %32 {offsets = [16, 0], sizes = [16, 128], strides = [1, 1]} : vector<32x256xf32> to vector<16x128xf32>
    %56 = arith.truncf %55 : vector<16x128xf32> to vector<16x128xbf16>
    %57 = vector.extract_strided_slice %33 {offsets = [16, 0], sizes = [16, 128], strides = [1, 1]} : vector<32x256xf32> to vector<16x128xf32>
    %58 = arith.truncf %57 : vector<16x128xf32> to vector<16x128xbf16>
    %cst_21 = arith.constant dense<0.000000e+00> : vector<16x16xf32>
    %59 = tpu.matmul %56, %58, %cst_21 {dimension_numbers = #tpu.dot_dimension_numbers<[1], [1], [0], [0], [0, 0, 1, 0], [], []>} : vector<16x128xbf16>, vector<16x128xbf16>, vector<16x16xf32> -> vector<16x16xf32>
    %cst_22 = arith.constant 0.0883883461 : f32
    %60 = vector.broadcast %cst_22 : f32 to vector<16x16xf32>
    %61 = arith.mulf %59, %60 : vector<16x16xf32>
    %cst_23 = arith.constant dense<0xFF800000> : vector<16xf32>
    %62 = vector.multi_reduction <maximumf>, %61, %cst_23 [1] : vector<16x16xf32> to vector<16xf32>
    %63 = vector.shape_cast %62 : vector<16xf32> to vector<16x1xf32>
    %64 = vector.broadcast %63 : vector<16x1xf32> to vector<16x16xf32>
    %65 = arith.subf %61, %64 : vector<16x16xf32>
    %66 = math.exp %65 : vector<16x16xf32>
    %cst_24 = arith.constant dense<0.000000e+00> : vector<16xf32>
    %67 = vector.multi_reduction <add>, %66, %cst_24 [1] : vector<16x16xf32> to vector<16xf32>
    %68 = vector.shape_cast %67 : vector<16xf32> to vector<16x1xf32>
    %69 = vector.broadcast %68 : vector<16x1xf32> to vector<16x16xf32>
    %70 = arith.divf %66, %69 : vector<16x16xf32>
    %71 = vector.extract_strided_slice %34 {offsets = [16, 0], sizes = [16, 128], strides = [1, 1]} : vector<32x256xf32> to vector<16x128xf32>
    %72 = arith.truncf %71 : vector<16x128xf32> to vector<16x128xbf16>
    %73 = arith.truncf %70 : vector<16x16xf32> to vector<16x16xbf16>
    %cst_25 = arith.constant dense<0.000000e+00> : vector<16x128xf32>
    %74 = tpu.matmul %73, %72, %cst_25 {dimension_numbers = #tpu.dot_dimension_numbers<[1], [0], [0], [1], [0, 0, 1, 1], [], []>} : vector<16x16xbf16>, vector<16x128xbf16>, vector<16x128xf32> -> vector<16x128xf32>
    %75 = tpu.concatenate %54, %74 in 0 : vector<16x128xf32>, vector<16x128xf32> -> vector<32x128xf32>
    %76 = arith.truncf %75 : vector<32x128xf32> to vector<32x128xbf16>
    %c0_26 = arith.constant 0 : index
    %c0_27 = arith.constant 0 : index
    %c0_28 = arith.constant 0 : index
    %77 = vector.load %arg10[%c0_26, %c0_27, %c0_28] : memref<1x256x256xbf16, #tpu.memory_space<vmem>>, vector<1x128x256xbf16>
    %78 = vector.shape_cast %77 : vector<1x128x256xbf16> to vector<128x256xbf16>
    %cst_29 = arith.constant dense<0.000000e+00> : vector<32x256xf32>
    %79 = tpu.matmul %76, %78, %cst_29 {dimension_numbers = #tpu.dot_dimension_numbers<[1], [0], [0], [1], [0, 0, 1, 1], [], []>} : vector<32x128xbf16>, vector<128x256xbf16>, vector<32x256xf32> -> vector<32x256xf32>
    %80 = vector.extract_strided_slice %32 {offsets = [0, 128], sizes = [16, 128], strides = [1, 1]} : vector<32x256xf32> to vector<16x128xf32>
    %81 = arith.truncf %80 : vector<16x128xf32> to vector<16x128xbf16>
    %82 = vector.extract_strided_slice %33 {offsets = [0, 128], sizes = [16, 128], strides = [1, 1]} : vector<32x256xf32> to vector<16x128xf32>
    %83 = arith.truncf %82 : vector<16x128xf32> to vector<16x128xbf16>
    %cst_30 = arith.constant dense<0.000000e+00> : vector<16x16xf32>
    %84 = tpu.matmul %81, %83, %cst_30 {dimension_numbers = #tpu.dot_dimension_numbers<[1], [1], [0], [0], [0, 0, 1, 0], [], []>} : vector<16x128xbf16>, vector<16x128xbf16>, vector<16x16xf32> -> vector<16x16xf32>
    %cst_31 = arith.constant 0.0883883461 : f32
    %85 = vector.broadcast %cst_31 : f32 to vector<16x16xf32>
    %86 = arith.mulf %84, %85 : vector<16x16xf32>
    %cst_32 = arith.constant dense<0xFF800000> : vector<16xf32>
    %87 = vector.multi_reduction <maximumf>, %86, %cst_32 [1] : vector<16x16xf32> to vector<16xf32>
    %88 = vector.shape_cast %87 : vector<16xf32> to vector<16x1xf32>
    %89 = vector.broadcast %88 : vector<16x1xf32> to vector<16x16xf32>
    %90 = arith.subf %86, %89 : vector<16x16xf32>
    %91 = math.exp %90 : vector<16x16xf32>
    %cst_33 = arith.constant dense<0.000000e+00> : vector<16xf32>
    %92 = vector.multi_reduction <add>, %91, %cst_33 [1] : vector<16x16xf32> to vector<16xf32>
    %93 = vector.shape_cast %92 : vector<16xf32> to vector<16x1xf32>
    %94 = vector.broadcast %93 : vector<16x1xf32> to vector<16x16xf32>
    %95 = arith.divf %91, %94 : vector<16x16xf32>
    %96 = vector.extract_strided_slice %34 {offsets = [0, 128], sizes = [16, 128], strides = [1, 1]} : vector<32x256xf32> to vector<16x128xf32>
    %97 = arith.truncf %96 : vector<16x128xf32> to vector<16x128xbf16>
    %98 = arith.truncf %95 : vector<16x16xf32> to vector<16x16xbf16>
    %cst_34 = arith.constant dense<0.000000e+00> : vector<16x128xf32>
    %99 = tpu.matmul %98, %97, %cst_34 {dimension_numbers = #tpu.dot_dimension_numbers<[1], [0], [0], [1], [0, 0, 1, 1], [], []>} : vector<16x16xbf16>, vector<16x128xbf16>, vector<16x128xf32> -> vector<16x128xf32>
    %100 = vector.extract_strided_slice %32 {offsets = [16, 128], sizes = [16, 128], strides = [1, 1]} : vector<32x256xf32> to vector<16x128xf32>
    %101 = arith.truncf %100 : vector<16x128xf32> to vector<16x128xbf16>
    %102 = vector.extract_strided_slice %33 {offsets = [16, 128], sizes = [16, 128], strides = [1, 1]} : vector<32x256xf32> to vector<16x128xf32>
    %103 = arith.truncf %102 : vector<16x128xf32> to vector<16x128xbf16>
    %cst_35 = arith.constant dense<0.000000e+00> : vector<16x16xf32>
    %104 = tpu.matmul %101, %103, %cst_35 {dimension_numbers = #tpu.dot_dimension_numbers<[1], [1], [0], [0], [0, 0, 1, 0], [], []>} : vector<16x128xbf16>, vector<16x128xbf16>, vector<16x16xf32> -> vector<16x16xf32>
    %cst_36 = arith.constant 0.0883883461 : f32
    %105 = vector.broadcast %cst_36 : f32 to vector<16x16xf32>
    %106 = arith.mulf %104, %105 : vector<16x16xf32>
    %cst_37 = arith.constant dense<0xFF800000> : vector<16xf32>
    %107 = vector.multi_reduction <maximumf>, %106, %cst_37 [1] : vector<16x16xf32> to vector<16xf32>
    %108 = vector.shape_cast %107 : vector<16xf32> to vector<16x1xf32>
    %109 = vector.broadcast %108 : vector<16x1xf32> to vector<16x16xf32>
    %110 = arith.subf %106, %109 : vector<16x16xf32>
    %111 = math.exp %110 : vector<16x16xf32>
    %cst_38 = arith.constant dense<0.000000e+00> : vector<16xf32>
    %112 = vector.multi_reduction <add>, %111, %cst_38 [1] : vector<16x16xf32> to vector<16xf32>
    %113 = vector.shape_cast %112 : vector<16xf32> to vector<16x1xf32>
    %114 = vector.broadcast %113 : vector<16x1xf32> to vector<16x16xf32>
    %115 = arith.divf %111, %114 : vector<16x16xf32>
    %116 = vector.extract_strided_slice %34 {offsets = [16, 128], sizes = [16, 128], strides = [1, 1]} : vector<32x256xf32> to vector<16x128xf32>
    %117 = arith.truncf %116 : vector<16x128xf32> to vector<16x128xbf16>
    %118 = arith.truncf %115 : vector<16x16xf32> to vector<16x16xbf16>
    %cst_39 = arith.constant dense<0.000000e+00> : vector<16x128xf32>
    %119 = tpu.matmul %118, %117, %cst_39 {dimension_numbers = #tpu.dot_dimension_numbers<[1], [0], [0], [1], [0, 0, 1, 1], [], []>} : vector<16x16xbf16>, vector<16x128xbf16>, vector<16x128xf32> -> vector<16x128xf32>
    %120 = tpu.concatenate %99, %119 in 0 : vector<16x128xf32>, vector<16x128xf32> -> vector<32x128xf32>
    %121 = arith.truncf %120 : vector<32x128xf32> to vector<32x128xbf16>
    %c0_40 = arith.constant 0 : index
    %c128 = arith.constant 128 : index
    %c0_41 = arith.constant 0 : index
    %122 = vector.load %arg10[%c0_40, %c128, %c0_41] : memref<1x256x256xbf16, #tpu.memory_space<vmem>>, vector<1x128x256xbf16>
    %123 = vector.shape_cast %122 : vector<1x128x256xbf16> to vector<128x256xbf16>
    %cst_42 = arith.constant dense<0.000000e+00> : vector<32x256xf32>
    %124 = tpu.matmul %121, %123, %cst_42 {dimension_numbers = #tpu.dot_dimension_numbers<[1], [0], [0], [1], [0, 0, 1, 1], [], []>} : vector<32x128xbf16>, vector<128x256xbf16>, vector<32x256xf32> -> vector<32x256xf32>
    %125 = arith.addf %79, %124 : vector<32x256xf32>
    %126 = arith.addf %125, %3 : vector<32x256xf32>
    %c0_43 = arith.constant 0 : index
    %c0_44 = arith.constant 0 : index
    %c0_45 = arith.constant 0 : index
    %127 = vector.load %arg11[%c0_43, %c0_44, %c0_45] : memref<1x1x256xf32, #tpu.memory_space<vmem>>, vector<1x1x256xf32>
    %128 = vector.shape_cast %127 : vector<1x1x256xf32> to vector<1x256xf32>
    %c0_46 = arith.constant 0 : index
    %c0_47 = arith.constant 0 : index
    %c0_48 = arith.constant 0 : index
    %129 = vector.load %arg12[%c0_46, %c0_47, %c0_48] : memref<1x1x256xf32, #tpu.memory_space<vmem>>, vector<1x1x256xf32>
    %130 = vector.shape_cast %129 : vector<1x1x256xf32> to vector<1x256xf32>
    %cst_49 = arith.constant dense<0.000000e+00> : vector<32xf32>
    %131 = vector.multi_reduction <add>, %126, %cst_49 [1] : vector<32x256xf32> to vector<32xf32>
    %132 = vector.shape_cast %131 : vector<32xf32> to vector<32x1xf32>
    %cst_50 = arith.constant 2.560000e+02 : f32
    %133 = vector.broadcast %cst_50 : f32 to vector<32x1xf32>
    %134 = arith.divf %132, %133 : vector<32x1xf32>
    %135 = vector.broadcast %134 : vector<32x1xf32> to vector<32x256xf32>
    %136 = arith.subf %126, %135 : vector<32x256xf32>
    %137 = arith.mulf %136, %136 : vector<32x256xf32>
    %cst_51 = arith.constant dense<0.000000e+00> : vector<32xf32>
    %138 = vector.multi_reduction <add>, %137, %cst_51 [1] : vector<32x256xf32> to vector<32xf32>
    %139 = vector.shape_cast %138 : vector<32xf32> to vector<32x1xf32>
    %cst_52 = arith.constant 2.560000e+02 : f32
    %140 = vector.broadcast %cst_52 : f32 to vector<32x1xf32>
    %141 = arith.divf %139, %140 : vector<32x1xf32>
    %cst_53 = arith.constant 9.99999974E-6 : f32
    %142 = vector.broadcast %cst_53 : f32 to vector<32x1xf32>
    %143 = arith.addf %141, %142 : vector<32x1xf32>
    %144 = math.rsqrt %143 : vector<32x1xf32>
    %145 = vector.broadcast %144 : vector<32x1xf32> to vector<32x256xf32>
    %146 = arith.mulf %136, %145 : vector<32x256xf32>
    %147 = vector.broadcast %128 : vector<1x256xf32> to vector<32x256xf32>
    %148 = arith.mulf %146, %147 : vector<32x256xf32>
    %149 = vector.broadcast %130 : vector<1x256xf32> to vector<32x256xf32>
    %150 = arith.addf %148, %149 : vector<32x256xf32>
    %151 = arith.addf %150, %126 : vector<32x256xf32>
    %152 = arith.truncf %151 : vector<32x256xf32> to vector<32x256xbf16>
    %c0_54 = arith.constant 0 : index
    %c0_55 = arith.constant 0 : index
    %c0_56 = arith.constant 0 : index
    %153 = vector.load %arg13[%c0_54, %c0_55, %c0_56] : memref<1x256x512xbf16, #tpu.memory_space<vmem>>, vector<1x256x512xbf16>
    %154 = vector.shape_cast %153 : vector<1x256x512xbf16> to vector<256x512xbf16>
    %cst_57 = arith.constant dense<0.000000e+00> : vector<32x512xf32>
    %155 = tpu.matmul %152, %154, %cst_57 {dimension_numbers = #tpu.dot_dimension_numbers<[1], [0], [0], [1], [0, 0, 1, 1], [], []>} : vector<32x256xbf16>, vector<256x512xbf16>, vector<32x512xf32> -> vector<32x512xf32>
    %c0_58 = arith.constant 0 : index
    %c0_59 = arith.constant 0 : index
    %c0_60 = arith.constant 0 : index
    %156 = vector.load %arg14[%c0_58, %c0_59, %c0_60] : memref<1x1x512xf32, #tpu.memory_space<vmem>>, vector<1x1x512xf32>
    %157 = vector.shape_cast %156 : vector<1x1x512xf32> to vector<1x512xf32>
    %158 = vector.broadcast %157 : vector<1x512xf32> to vector<32x512xf32>
    %159 = arith.addf %155, %158 : vector<32x512xf32>
    %cst_61 = arith.constant 5.000000e-01 : f32
    %160 = vector.broadcast %cst_61 : f32 to vector<32x512xf32>
    %161 = arith.mulf %160, %159 : vector<32x512xf32>
    %cst_62 = arith.constant 0.707106769 : f32
    %162 = vector.broadcast %cst_62 : f32 to vector<32x512xf32>
    %163 = arith.mulf %159, %162 : vector<32x512xf32>
    %cst_63 = arith.constant 0.000000e+00 : f32
    %164 = vector.broadcast %cst_63 : f32 to vector<32x512xf32>
    %165 = arith.cmpf oge, %163, %164 : vector<32x512xf32>
    %cst_64 = arith.constant 1.000000e+00 : f32
    %cst_65 = arith.constant -1.000000e+00 : f32
    %166 = vector.broadcast %cst_64 : f32 to vector<32x512xf32>
    %167 = vector.broadcast %cst_65 : f32 to vector<32x512xf32>
    %168 = arith.select %165, %166, %167 : vector<32x512xi1>, vector<32x512xf32>
    %169 = math.absf %163 : vector<32x512xf32>
    %cst_66 = arith.constant 0.327591091 : f32
    %170 = vector.broadcast %cst_66 : f32 to vector<32x512xf32>
    %171 = arith.mulf %170, %169 : vector<32x512xf32>
    %cst_67 = arith.constant 1.000000e+00 : f32
    %172 = vector.broadcast %cst_67 : f32 to vector<32x512xf32>
    %173 = arith.addf %172, %171 : vector<32x512xf32>
    %cst_68 = arith.constant 1.000000e+00 : f32
    %174 = vector.broadcast %cst_68 : f32 to vector<32x512xf32>
    %175 = arith.divf %174, %173 : vector<32x512xf32>
    %cst_69 = arith.constant 1.06140542 : f32
    %176 = vector.broadcast %cst_69 : f32 to vector<32x512xf32>
    %177 = arith.mulf %176, %175 : vector<32x512xf32>
    %cst_70 = arith.constant -1.45315206 : f32
    %178 = vector.broadcast %cst_70 : f32 to vector<32x512xf32>
    %179 = arith.addf %177, %178 : vector<32x512xf32>
    %180 = arith.mulf %179, %175 : vector<32x512xf32>
    %cst_71 = arith.constant 1.42141378 : f32
    %181 = vector.broadcast %cst_71 : f32 to vector<32x512xf32>
    %182 = arith.addf %180, %181 : vector<32x512xf32>
    %183 = arith.mulf %182, %175 : vector<32x512xf32>
    %cst_72 = arith.constant -0.284496725 : f32
    %184 = vector.broadcast %cst_72 : f32 to vector<32x512xf32>
    %185 = arith.addf %183, %184 : vector<32x512xf32>
    %186 = arith.mulf %185, %175 : vector<32x512xf32>
    %cst_73 = arith.constant 0.254829586 : f32
    %187 = vector.broadcast %cst_73 : f32 to vector<32x512xf32>
    %188 = arith.addf %186, %187 : vector<32x512xf32>
    %189 = arith.mulf %188, %175 : vector<32x512xf32>
    %cst_74 = arith.constant 0.000000e+00 : f32
    %190 = vector.broadcast %cst_74 : f32 to vector<32x512xf32>
    %191 = arith.subf %190, %169 : vector<32x512xf32>
    %192 = arith.mulf %191, %169 : vector<32x512xf32>
    %193 = math.exp %192 : vector<32x512xf32>
    %194 = arith.mulf %189, %193 : vector<32x512xf32>
    %cst_75 = arith.constant 1.000000e+00 : f32
    %195 = vector.broadcast %cst_75 : f32 to vector<32x512xf32>
    %196 = arith.subf %195, %194 : vector<32x512xf32>
    %197 = arith.mulf %168, %196 : vector<32x512xf32>
    %cst_76 = arith.constant 1.000000e+00 : f32
    %198 = vector.broadcast %cst_76 : f32 to vector<32x512xf32>
    %199 = arith.addf %198, %197 : vector<32x512xf32>
    %200 = arith.mulf %161, %199 : vector<32x512xf32>
    %201 = arith.truncf %200 : vector<32x512xf32> to vector<32x512xbf16>
    %c0_77 = arith.constant 0 : index
    %c0_78 = arith.constant 0 : index
    %c0_79 = arith.constant 0 : index
    %202 = vector.load %arg15[%c0_77, %c0_78, %c0_79] : memref<1x512x256xbf16, #tpu.memory_space<vmem>>, vector<1x512x256xbf16>
    %203 = vector.shape_cast %202 : vector<1x512x256xbf16> to vector<512x256xbf16>
    %cst_80 = arith.constant dense<0.000000e+00> : vector<32x256xf32>
    %204 = tpu.matmul %201, %203, %cst_80 {dimension_numbers = #tpu.dot_dimension_numbers<[1], [0], [0], [1], [0, 0, 1, 1], [], []>} : vector<32x512xbf16>, vector<512x256xbf16>, vector<32x256xf32> -> vector<32x256xf32>
    %c0_81 = arith.constant 0 : index
    %c0_82 = arith.constant 0 : index
    %c0_83 = arith.constant 0 : index
    %205 = vector.load %arg16[%c0_81, %c0_82, %c0_83] : memref<1x1x256xf32, #tpu.memory_space<vmem>>, vector<1x1x256xf32>
    %206 = vector.shape_cast %205 : vector<1x1x256xf32> to vector<1x256xf32>
    %207 = vector.broadcast %206 : vector<1x256xf32> to vector<32x256xf32>
    %208 = arith.addf %204, %207 : vector<32x256xf32>
    %c0_84 = arith.constant 0 : index
    %c0_85 = arith.constant 0 : index
    %c0_86 = arith.constant 0 : index
    %209 = vector.load %arg17[%c0_84, %c0_85, %c0_86] : memref<1x1x256xf32, #tpu.memory_space<vmem>>, vector<1x1x256xf32>
    %210 = vector.shape_cast %209 : vector<1x1x256xf32> to vector<1x256xf32>
    %c0_87 = arith.constant 0 : index
    %c0_88 = arith.constant 0 : index
    %c0_89 = arith.constant 0 : index
    %211 = vector.load %arg18[%c0_87, %c0_88, %c0_89] : memref<1x1x256xf32, #tpu.memory_space<vmem>>, vector<1x1x256xf32>
    %212 = vector.shape_cast %211 : vector<1x1x256xf32> to vector<1x256xf32>
    %cst_90 = arith.constant dense<0.000000e+00> : vector<32xf32>
    %213 = vector.multi_reduction <add>, %208, %cst_90 [1] : vector<32x256xf32> to vector<32xf32>
    %214 = vector.shape_cast %213 : vector<32xf32> to vector<32x1xf32>
    %cst_91 = arith.constant 2.560000e+02 : f32
    %215 = vector.broadcast %cst_91 : f32 to vector<32x1xf32>
    %216 = arith.divf %214, %215 : vector<32x1xf32>
    %217 = vector.broadcast %216 : vector<32x1xf32> to vector<32x256xf32>
    %218 = arith.subf %208, %217 : vector<32x256xf32>
    %219 = arith.mulf %218, %218 : vector<32x256xf32>
    %cst_92 = arith.constant dense<0.000000e+00> : vector<32xf32>
    %220 = vector.multi_reduction <add>, %219, %cst_92 [1] : vector<32x256xf32> to vector<32xf32>
    %221 = vector.shape_cast %220 : vector<32xf32> to vector<32x1xf32>
    %cst_93 = arith.constant 2.560000e+02 : f32
    %222 = vector.broadcast %cst_93 : f32 to vector<32x1xf32>
    %223 = arith.divf %221, %222 : vector<32x1xf32>
    %cst_94 = arith.constant 9.99999974E-6 : f32
    %224 = vector.broadcast %cst_94 : f32 to vector<32x1xf32>
    %225 = arith.addf %223, %224 : vector<32x1xf32>
    %226 = math.rsqrt %225 : vector<32x1xf32>
    %227 = vector.broadcast %226 : vector<32x1xf32> to vector<32x256xf32>
    %228 = arith.mulf %218, %227 : vector<32x256xf32>
    %229 = vector.broadcast %210 : vector<1x256xf32> to vector<32x256xf32>
    %230 = arith.mulf %228, %229 : vector<32x256xf32>
    %231 = vector.broadcast %212 : vector<1x256xf32> to vector<32x256xf32>
    %232 = arith.addf %230, %231 : vector<32x256xf32>
    %233 = arith.addf %208, %232 : vector<32x256xf32>
    %c0_95 = arith.constant 0 : index
    %c0_96 = arith.constant 0 : index
    %234 = vector.load %arg20[%c0_95, %c0_96] : memref<32x256xf32, #tpu.memory_space<vmem>>, vector<32x256xf32>
    tpu.vector_store %arg20[%c0_95, %c0_96], %233 {strides = array<i32>} : memref<32x256xf32, #tpu.memory_space<vmem>>, vector<32x256xf32>,
    %c1_i32 = arith.constant 1 : i32
    %235 = arith.cmpi eq, %arg0, %c1_i32 : i32
    %236 = arith.extui %235 : i1 to i32
    %c0_i32_97 = arith.constant 0 : i32
    %237 = arith.cmpi ne, %236, %c0_i32_97 : i32
    scf.if %237 {
      %c0_98 = arith.constant 0 : index
      %c0_99 = arith.constant 0 : index
      %238 = vector.load %arg19[%c0_98, %c0_99] : memref<32x256xf32, #tpu.memory_space<vmem>>, vector<32x256xf32>
      tpu.vector_store %arg19[%c0_98, %c0_99], %233 {strides = array<i32>} : memref<32x256xf32, #tpu.memory_space<vmem>>, vector<32x256xf32>,
    } else {
    }
    return
  }
  func.func @transform_0(%arg0: i32) -> (i32, i32) {
    %c0_i32 = arith.constant 0 : i32
    %c0_i32_0 = arith.constant 0 : i32
    %c0_i32_1 = arith.constant 0 : i32
    return %c0_i32, %c0_i32_0 : i32, i32
  }
  func.func @transform_1(%arg0: i32) -> (i32, i32) {
    %c0_i32 = arith.constant 0 : i32
    %c0_i32_0 = arith.constant 0 : i32
    %c0_i32_1 = arith.constant 0 : i32
    return %c0_i32, %c0_i32_0 : i32, i32
  }
  func.func @transform_2(%arg0: i32) -> (i32, i32) {
    %c0_i32 = arith.constant 0 : i32
    %c0_i32_0 = arith.constant 0 : i32
    %c0_i32_1 = arith.constant 0 : i32
    return %c0_i32, %c0_i32_0 : i32, i32
  }
  func.func @transform_3(%arg0: i32) -> (i32, i32) {
    %c0_i32 = arith.constant 0 : i32
    %c0_i32_0 = arith.constant 0 : i32
    %c0_i32_1 = arith.constant 0 : i32
    return %c0_i32, %c0_i32_0 : i32, i32
  }
  func.func @transform_4(%arg0: i32) -> (i32, i32) {
    %c0_i32 = arith.constant 0 : i32
    %c0_i32_0 = arith.constant 0 : i32
    %c0_i32_1 = arith.constant 0 : i32
    return %c0_i32, %c0_i32_0 : i32, i32
  }
  func.func @transform_5(%arg0: i32) -> (i32, i32) {
    %c0_i32 = arith.constant 0 : i32
    %c0_i32_0 = arith.constant 0 : i32
    %c0_i32_1 = arith.constant 0 : i32
    return %c0_i32, %c0_i32_0 : i32, i32
  }
  func.func @transform_6(%arg0: i32) -> (i32, i32, i32) {
    %c0_i32 = arith.constant 0 : i32
    %c0_i32_0 = arith.constant 0 : i32
    %c0_i32_1 = arith.constant 0 : i32
    return %arg0, %c0_i32, %c0_i32_0 : i32, i32, i32
  }
  func.func @transform_7(%arg0: i32) -> (i32, i32, i32) {
    %c0_i32 = arith.constant 0 : i32
    %c0_i32_0 = arith.constant 0 : i32
    %c0_i32_1 = arith.constant 0 : i32
    return %arg0, %c0_i32, %c0_i32_0 : i32, i32, i32
  }
  func.func @transform_8(%arg0: i32) -> (i32, i32, i32) {
    %c0_i32 = arith.constant 0 : i32
    %c0_i32_0 = arith.constant 0 : i32
    %c0_i32_1 = arith.constant 0 : i32
    return %arg0, %c0_i32, %c0_i32_0 : i32, i32, i32
  }
  func.func @transform_9(%arg0: i32) -> (i32, i32, i32) {
    %c0_i32 = arith.constant 0 : i32
    %c0_i32_0 = arith.constant 0 : i32
    %c0_i32_1 = arith.constant 0 : i32
    return %arg0, %c0_i32, %c0_i32_0 : i32, i32, i32
  }
  func.func @transform_10(%arg0: i32) -> (i32, i32, i32) {
    %c0_i32 = arith.constant 0 : i32
    %c0_i32_0 = arith.constant 0 : i32
    %c0_i32_1 = arith.constant 0 : i32
    return %arg0, %c0_i32, %c0_i32_0 : i32, i32, i32
  }
  func.func @transform_11(%arg0: i32) -> (i32, i32, i32) {
    %c0_i32 = arith.constant 0 : i32
    %c0_i32_0 = arith.constant 0 : i32
    %c0_i32_1 = arith.constant 0 : i32
    return %arg0, %c0_i32, %c0_i32_0 : i32, i32, i32
  }
  func.func @transform_12(%arg0: i32) -> (i32, i32, i32) {
    %c0_i32 = arith.constant 0 : i32
    %c0_i32_0 = arith.constant 0 : i32
    %c0_i32_1 = arith.constant 0 : i32
    return %arg0, %c0_i32, %c0_i32_0 : i32, i32, i32
  }
  func.func @transform_13(%arg0: i32) -> (i32, i32, i32) {
    %c0_i32 = arith.constant 0 : i32
    %c0_i32_0 = arith.constant 0 : i32
    %c0_i32_1 = arith.constant 0 : i32
    return %arg0, %c0_i32, %c0_i32_0 : i32, i32, i32
  }
  func.func @transform_14(%arg0: i32) -> (i32, i32, i32) {
    %c0_i32 = arith.constant 0 : i32
    %c0_i32_0 = arith.constant 0 : i32
    %c0_i32_1 = arith.constant 0 : i32
    return %arg0, %c0_i32, %c0_i32_0 : i32, i32, i32
  }
  func.func @transform_15(%arg0: i32) -> (i32, i32, i32) {
    %c0_i32 = arith.constant 0 : i32
    %c0_i32_0 = arith.constant 0 : i32
    %c0_i32_1 = arith.constant 0 : i32
    return %arg0, %c0_i32, %c0_i32_0 : i32, i32, i32
  }
  func.func @transform_16(%arg0: i32) -> (i32, i32, i32) {
    %c0_i32 = arith.constant 0 : i32
    %c0_i32_0 = arith.constant 0 : i32
    %c0_i32_1 = arith.constant 0 : i32
    return %arg0, %c0_i32, %c0_i32_0 : i32, i32, i32
  }
  func.func @transform_17(%arg0: i32) -> (i32, i32, i32) {
    %c0_i32 = arith.constant 0 : i32
    %c0_i32_0 = arith.constant 0 : i32
    %c0_i32_1 = arith.constant 0 : i32
    return %arg0, %c0_i32, %c0_i32_0 : i32, i32, i32
  }
  func.func @transform_18(%arg0: i32) -> (i32, i32) {
    %c0_i32 = arith.constant 0 : i32
    %c0_i32_0 = arith.constant 0 : i32
    %c0_i32_1 = arith.constant 0 : i32
    return %c0_i32, %c0_i32_0 : i32, i32
  }
}

</mosaic_0001>

<llo_original>
// kernel: tpu_custom_call.1
$region0: #{tpu_custom_call.1}
  #allocation0 [shape = 'u32[]', space=smem, size = 0x4, offset = 0x4, fixed_abs, tag = 'smem constant byte address 0x4 - core index']
  #allocation1 [shape = 'u32[72,128]{1,0:T(1,128)}', space=vmem, size = 0x9000, scoped, tag = 'internal scratch']
  #allocation2 [shape = 'f32[32,256]{1,0:T(8,128)}', space=vmem, size = 0x8000, scoped, tag = 'scratch operand']
  %s0 = inlined_call_operand.hbm [shape: f32[32,64], index: 0, kind: input, shape index: {}]
  %s1 = inlined_call_operand.hbm [shape: bf16[64,256], index: 1, kind: input, shape index: {}]
  %s2 = inlined_call_operand.hbm [shape: f32[1,256], index: 2, kind: input, shape index: {}]
  %s3 = inlined_call_operand.hbm [shape: f32[1,256], index: 3, kind: input, shape index: {}]
  %s4 = inlined_call_operand.hbm [shape: f32[1,256], index: 4, kind: input, shape index: {}]
  %s5 = inlined_call_operand.hbm [shape: f32[32,256], index: 5, kind: input, shape index: {}]
  %s6 = inlined_call_operand.vmem [shape: f32[2,1,256], index: 6, kind: input, shape index: {}]
  %s7 = inlined_call_operand.hbm [shape: f32[2,1,256], index: 7, kind: input, shape index: {}]
  %s8 = inlined_call_operand.hbm [shape: bf16[2,256,768], index: 8, kind: input, shape index: {}]
  %s9 = inlined_call_operand.hbm [shape: bf16[2,256,256], index: 9, kind: input, shape index: {}]
  %s10 = inlined_call_operand.hbm [shape: f32[2,1,256], index: 10, kind: input, shape index: {}]
  %s11 = inlined_call_operand.hbm [shape: f32[2,1,256], index: 11, kind: input, shape index: {}]
  %s12 = inlined_call_operand.hbm [shape: bf16[2,256,512], index: 12, kind: input, shape index: {}]
  %s13 = inlined_call_operand.vmem [shape: f32[2,1,512], index: 13, kind: input, shape index: {}]
  %s14 = inlined_call_operand.hbm [shape: bf16[2,512,256], index: 14, kind: input, shape index: {}]
  %s15 = inlined_call_operand.hbm [shape: f32[2,1,256], index: 15, kind: input, shape index: {}]
  %s16 = inlined_call_operand.hbm [shape: f32[2,1,256], index: 16, kind: input, shape index: {}]
  %s17 = inlined_call_operand.vmem [shape: f32[2,1,256], index: 17, kind: input, shape index: {}]
  %s18 = inlined_call_operand.hbm [shape: f32[32,256], index: 18, kind: output, shape index: {}]
  %s19 = sld [smem:[#allocation0]]
  $region173: #{tpu_custom_call.1} parent=0
    _
  %s21 = ssub.s32 1, %s19
  %s22 = scalar_select 0, %s21, %s19
  $region1: #{tpu_custom_call.1} parent=0
    #allocation3 [shape = 'u8[16384]{0}', space=vmem, size = 0x4000, scoped, tag = 'input window, operand 0, single buffered']
    #allocation4 [shape = 's32[2]{0}', space=sflag, size = 0x8, scoped, tag = 'scoped memory for tpu_custom_call.1']
    #allocation5 [shape = 's32[2]{0}', space=sflag, size = 0x8, scoped, tag = 'scoped memory for tpu_custom_call.1']
    #allocation6 [shape = 'u8[32768]{0}', space=vmem, size = 0x8000, scoped, tag = 'input window, operand 1, single buffered']
    #allocation7 [shape = 's32[1]{0}', space=sflag, size = 0x4, scoped, tag = 'scoped memory for tpu_custom_call.1']
    #allocation8 [shape = 'u8[1024]{0}', space=vmem, size = 0x400, scoped, tag = 'input window, operand 2, single buffered']
    #allocation9 [shape = 'u8[1024]{0}', space=vmem, size = 0x400, scoped, tag = 'input window, operand 3, single buffered']
    #allocation10 [shape = 's32[1]{0}', space=sflag, size = 0x4, scoped, tag = 'scoped memory for tpu_custom_call.1']
    #allocation11 [shape = 'u8[1024]{0}', space=vmem, size = 0x400, scoped, tag = 'input window, operand 4, single buffered']
    #allocation12 [shape = 'u8[32768]{0}', space=vmem, size = 0x8000, scoped, tag = 'input window, operand 5, single buffered']
    #allocation13 [shape = 's32[1]{0}', space=sflag, size = 0x4, scoped, tag = 'scoped memory for tpu_custom_call.1']
    #allocation14 [shape = 'u8[2048]{0}', space=vmem, size = 0x800, scoped, tag = 'input window, operand 7']
    #allocation15 [shape = 'u8[786432]{0}', space=vmem, size = 0xc0000, scoped, tag = 'input window, operand 8']
    #allocation16 [shape = 'u8[262144]{0}', space=vmem, size = 0x40000, scoped, tag = 'input window, operand 9']
    #allocation17 [shape = 'u8[2048]{0}', space=vmem, size = 0x800, scoped, tag = 'input window, operand 10']
    #allocation18 [shape = 'u8[2048]{0}', space=vmem, size = 0x800, scoped, tag = 'input window, operand 11']
    #allocation19 [shape = 'u8[524288]{0}', space=vmem, size = 0x80000, scoped, tag = 'input window, operand 12']
    #allocation20 [shape = 'u8[524288]{0}', space=vmem, size = 0x80000, scoped, tag = 'input window, operand 14']
    #allocation21 [shape = 'u8[2048]{0}', space=vmem, size = 0x800, scoped, tag = 'input window, operand 15']
    #allocation22 [shape = 'u8[2048]{0}', space=vmem, size = 0x800, scoped, tag = 'input window, operand 16']
    #allocation23 [shape = 'u8[32768]{0}', space=vmem, size = 0x8000, scoped, tag = 'output window, operand 0, single buffered']
    %23 = vsyncpa [#allocation4], 0
    %24 = vsyncpa [#allocation7], 0
    %25 = vsyncpa [#allocation10], 0
    %26 = vsyncpa [#allocation13], 0
    %27 = vsyncpa [#allocation5], 0
    loop: start=0, step=1, limit=4
    $region2: #{tpu_custom_call.1} parent=1 // loop_pre_header
      _
    $region3: #{tpu_custom_call.1} parent=1 // loop_header
      %s29 = sphi 0, %s33
      %p30 = scmp.ge.s32.totalorder %s29, 4
      %s37 = sphi 0, %s37
      %s39 = sphi 0, %s37
      %s40 = sphi 0, %s39
      %s54 = sphi 0, %s40
      %s58 = sphi 0, %s58
      %s60 = sphi 0, %s58
      %s61 = sphi 0, %s60
      %s75 = sphi 0, %s61
      %s79 = sphi 0, %s79
      %s81 = sphi 0, %s79
      %s82 = sphi 0, %s81
      %s96 = sphi 0, %s82
      %s100 = sphi 0, %s100
      %s102 = sphi 0, %s100
      %s103 = sphi 0, %s102
      %s117 = sphi 0, %s103
      %s121 = sphi 0, %s121
      %s123 = sphi 0, %s121
      %s124 = sphi 0, %s123
      %s138 = sphi 0, %s124
      %s142 = sphi 0, %s142
      %s144 = sphi 0, %s142
      %s145 = sphi 0, %s144
      %s159 = sphi 0, %s145
      %s165 = sphi 0, %s167
      %s168 = sphi 0, %s165
      %s169 = sphi 0, %s168
      %s185 = sphi 0, %s169
      %s191 = sphi 0, %s193
      %s194 = sphi 0, %s191
      %s195 = sphi 0, %s194
      %s211 = sphi 0, %s195
      %s217 = sphi 0, %s219
      %s220 = sphi 0, %s217
      %s221 = sphi 0, %s220
      %s237 = sphi 0, %s221
      %s243 = sphi 0, %s245
      %s246 = sphi 0, %s243
      %s247 = sphi 0, %s246
      %s263 = sphi 0, %s247
      %s269 = sphi 0, %s271
      %s272 = sphi 0, %s269
      %s273 = sphi 0, %s272
      %s289 = sphi 0, %s273
      %s295 = sphi 0, %s297
      %s298 = sphi 0, %s295
      %s299 = sphi 0, %s298
      %s315 = sphi 0, %s299
      %s321 = sphi 0, %s323
      %s324 = sphi 0, %s321
      %s325 = sphi 0, %s324
      %s341 = sphi 0, %s325
      %s347 = sphi 0, %s349
      %s350 = sphi 0, %s347
      %s351 = sphi 0, %s350
      %s367 = sphi 0, %s351
      %s373 = sphi 0, %s375
      %s376 = sphi 0, %s373
      %s377 = sphi 0, %s376
      %s393 = sphi 0, %s377
      %s399 = sphi 0, %s401
      %s402 = sphi 0, %s399
      %s403 = sphi 0, %s402
      %s419 = sphi 0, %s403
      %s425 = sphi 0, %s427
      %s428 = sphi 0, %s425
      %s429 = sphi 0, %s428
      %s445 = sphi 0, %s429
      %s451 = sphi 0, %s453
      %s454 = sphi 0, %s451
      %s455 = sphi 0, %s454
      %s471 = sphi 0, %s455
      %s475 = sphi 0, %s475
      %s477 = sphi 0, %s475
      %s478 = sphi 0, %s477
      %s492 = sphi 0, %s478
    $region4: #{tpu_custom_call.1} parent=1 // loop_header_branch
      %32 = sbr.rel (%p30) target = $region8
    $region5: #{tpu_custom_call.1} parent=1 // loop_body
      %s34 = ssub.s32 %s29, 1
      %s35 = ssub.s32 %s29, 2
      %s36 = sadd.s32 %s29, 1
      %s38 = sadd.s32 %s37, 1
      %p41 = scmp.eq.s32.totalorder %s29, 1
      %p42 = scmp.ne.s32.totalorder %s37, %s39
      %p43 = scmp.eq.s32.totalorder %s29, 0
      %p44 = por %p42, %p43
      %p45 = scmp.ne.s32.totalorder %s37, %s39
      %p46 = scmp.eq.s32.totalorder %s34, 1
      %p47 = por %p45, %p46
      %p48 = scmp.ne.s32.totalorder %s39, %s40
      %p49 = scmp.eq.s32.totalorder %s34, 0
      %p50 = por %p48, %p49
      %p51 = scmp.ne.s32.totalorder %s39, %s40
      %p52 = scmp.eq.s32.totalorder %s35, 1
      %p53 = por %p51, %p52
      %p55 = scmp.ne.s32.totalorder %s40, %s54
      %p56 = scmp.eq.s32.totalorder %s35, 0
      %p57 = por %p55, %p56
      %s59 = sadd.s32 %s58, 1
      %p62 = scmp.eq.s32.totalorder %s29, 1
      %p63 = scmp.ne.s32.totalorder %s58, %s60
      %p64 = scmp.eq.s32.totalorder %s29, 0
      %p65 = por %p63, %p64
      %p66 = scmp.ne.s32.totalorder %s58, %s60
      %p67 = scmp.eq.s32.totalorder %s34, 1
      %p68 = por %p66, %p67
      %p69 = scmp.ne.s32.totalorder %s60, %s61
      %p70 = scmp.eq.s32.totalorder %s34, 0
      %p71 = por %p69, %p70
      %p72 = scmp.ne.s32.totalorder %s60, %s61
      %p73 = scmp.eq.s32.totalorder %s35, 1
      %p74 = por %p72, %p73
      %p76 = scmp.ne.s32.totalorder %s61, %s75
      %p77 = scmp.eq.s32.totalorder %s35, 0
      %p78 = por %p76, %p77
      %s80 = sadd.s32 %s79, 1
      %p83 = scmp.eq.s32.totalorder %s29, 1
      %p84 = scmp.ne.s32.totalorder %s79, %s81
      %p85 = scmp.eq.s32.totalorder %s29, 0
      %p86 = por %p84, %p85
      %p87 = scmp.ne.s32.totalorder %s79, %s81
      %p88 = scmp.eq.s32.totalorder %s34, 1
      %p89 = por %p87, %p88
      %p90 = scmp.ne.s32.totalorder %s81, %s82
      %p91 = scmp.eq.s32.totalorder %s34, 0
      %p92 = por %p90, %p91
      %p93 = scmp.ne.s32.totalorder %s81, %s82
      %p94 = scmp.eq.s32.totalorder %s35, 1
      %p95 = por %p93, %p94
      %p97 = scmp.ne.s32.totalorder %s82, %s96
      %p98 = scmp.eq.s32.totalorder %s35, 0
      %p99 = por %p97, %p98
      %s101 = sadd.s32 %s100, 1
      %p104 = scmp.eq.s32.totalorder %s29, 1
      %p105 = scmp.ne.s32.totalorder %s100, %s102
      %p106 = scmp.eq.s32.totalorder %s29, 0
      %p107 = por %p105, %p106
      %p108 = scmp.ne.s32.totalorder %s100, %s102
      %p109 = scmp.eq.s32.totalorder %s34, 1
      %p110 = por %p108, %p109
      %p111 = scmp.ne.s32.totalorder %s102, %s103
      %p112 = scmp.eq.s32.totalorder %s34, 0
      %p113 = por %p111, %p112
      %p114 = scmp.ne.s32.totalorder %s102, %s103
      %p115 = scmp.eq.s32.totalorder %s35, 1
      %p116 = por %p114, %p115
      %p118 = scmp.ne.s32.totalorder %s103, %s117
      %p119 = scmp.eq.s32.totalorder %s35, 0
      %p120 = por %p118, %p119
      %s122 = sadd.s32 %s121, 1
      %p125 = scmp.eq.s32.totalorder %s29, 1
      %p126 = scmp.ne.s32.totalorder %s121, %s123
      %p127 = scmp.eq.s32.totalorder %s29, 0
      %p128 = por %p126, %p127
      %p129 = scmp.ne.s32.totalorder %s121, %s123
      %p130 = scmp.eq.s32.totalorder %s34, 1
      %p131 = por %p129, %p130
      %p132 = scmp.ne.s32.totalorder %s123, %s124
      %p133 = scmp.eq.s32.totalorder %s34, 0
      %p134 = por %p132, %p133
      %p135 = scmp.ne.s32.totalorder %s123, %s124
      %p136 = scmp.eq.s32.totalorder %s35, 1
      %p137 = por %p135, %p136
      %p139 = scmp.ne.s32.totalorder %s124, %s138
      %p140 = scmp.eq.s32.totalorder %s35, 0
      %p141 = por %p139, %p140
      %s143 = sadd.s32 %s142, 1
      %p146 = scmp.eq.s32.totalorder %s29, 1
      %p147 = scmp.ne.s32.totalorder %s142, %s144
      %p148 = scmp.eq.s32.totalorder %s29, 0
      %p149 = por %p147, %p148
      %p150 = scmp.ne.s32.totalorder %s142, %s144
      %p151 = scmp.eq.s32.totalorder %s34, 1
      %p152 = por %p150, %p151
      %p153 = scmp.ne.s32.totalorder %s144, %s145
      %p154 = scmp.eq.s32.totalorder %s34, 0
      %p155 = por %p153, %p154
      %p156 = scmp.ne.s32.totalorder %s144, %s145
      %p157 = scmp.eq.s32.totalorder %s35, 1
      %p158 = por %p156, %p157
      %p160 = scmp.ne.s32.totalorder %s145, %s159
      %p161 = scmp.eq.s32.totalorder %s35, 0
      %p162 = por %p160, %p161
      %s163 = ssub.s32 %s29, %s36
      %p164 = scmp.eq.s32.totalorder %s163, 0
      %s166 = sadd.s32 %s165, 1
      %s167 = scalar_select %p164, %s165, %s166
      %p170 = pneg %p164
      %p171 = scmp.eq.s32.totalorder %s29, 1
      %p172 = por %p170, %p171
      %p173 = scmp.ne.s32.totalorder %s165, %s168
      %p174 = scmp.eq.s32.totalorder %s29, 0
      %p175 = por %p173, %p174
      %p176 = scmp.ne.s32.totalorder %s165, %s168
      %p177 = scmp.eq.s32.totalorder %s34, 1
      %p178 = por %p176, %p177
      %p179 = scmp.ne.s32.totalorder %s168, %s169
      %p180 = scmp.eq.s32.totalorder %s34, 0
      %p181 = por %p179, %p180
      %p182 = scmp.ne.s32.totalorder %s168, %s169
      %p183 = scmp.eq.s32.totalorder %s35, 1
      %p184 = por %p182, %p183
      %p186 = scmp.ne.s32.totalorder %s169, %s185
      %p187 = scmp.eq.s32.totalorder %s35, 0
      %p188 = por %p186, %p187
      %s189 = ssub.s32 %s29, %s36
      %p190 = scmp.eq.s32.totalorder %s189, 0
      %s192 = sadd.s32 %s191, 1
      %s193 = scalar_select %p190, %s191, %s192
      %p196 = pneg %p190
      %p197 = scmp.eq.s32.totalorder %s29, 1
      %p198 = por %p196, %p197
      %p199 = scmp.ne.s32.totalorder %s191, %s194
      %p200 = scmp.eq.s32.totalorder %s29, 0
      %p201 = por %p199, %p200
      %p202 = scmp.ne.s32.totalorder %s191, %s194
      %p203 = scmp.eq.s32.totalorder %s34, 1
      %p204 = por %p202, %p203
      %p205 = scmp.ne.s32.totalorder %s194, %s195
      %p206 = scmp.eq.s32.totalorder %s34, 0
      %p207 = por %p205, %p206
      %p208 = scmp.ne.s32.totalorder %s194, %s195
      %p209 = scmp.eq.s32.totalorder %s35, 1
      %p210 = por %p208, %p209
      %p212 = scmp.ne.s32.totalorder %s195, %s211
      %p213 = scmp.eq.s32.totalorder %s35, 0
      %p214 = por %p212, %p213
      %s215 = ssub.s32 %s29, %s36
      %p216 = scmp.eq.s32.totalorder %s215, 0
      %s218 = sadd.s32 %s217, 1
      %s219 = scalar_select %p216, %s217, %s218
      %p222 = pneg %p216
      %p223 = scmp.eq.s32.totalorder %s29, 1
      %p224 = por %p222, %p223
      %p225 = scmp.ne.s32.totalorder %s217, %s220
      %p226 = scmp.eq.s32.totalorder %s29, 0
      %p227 = por %p225, %p226
      %p228 = scmp.ne.s32.totalorder %s217, %s220
      %p229 = scmp.eq.s32.totalorder %s34, 1
      %p230 = por %p228, %p229
      %p231 = scmp.ne.s32.totalorder %s220, %s221
      %p232 = scmp.eq.s32.totalorder %s34, 0
      %p233 = por %p231, %p232
      %p234 = scmp.ne.s32.totalorder %s220, %s221
      %p235 = scmp.eq.s32.totalorder %s35, 1
      %p236 = por %p234, %p235
      %p238 = scmp.ne.s32.totalorder %s221, %s237
      %p239 = scmp.eq.s32.totalorder %s35, 0
      %p240 = por %p238, %p239
      %s241 = ssub.s32 %s29, %s36
      %p242 = scmp.eq.s32.totalorder %s241, 0
      %s244 = sadd.s32 %s243, 1
      %s245 = scalar_select %p242, %s243, %s244
      %p248 = pneg %p242
      %p249 = scmp.eq.s32.totalorder %s29, 1
      %p250 = por %p248, %p249
      %p251 = scmp.ne.s32.totalorder %s243, %s246
      %p252 = scmp.eq.s32.totalorder %s29, 0
      %p253 = por %p251, %p252
      %p254 = scmp.ne.s32.totalorder %s243, %s246
      %p255 = scmp.eq.s32.totalorder %s34, 1
      %p256 = por %p254, %p255
      %p257 = scmp.ne.s32.totalorder %s246, %s247
      %p258 = scmp.eq.s32.totalorder %s34, 0
      %p259 = por %p257, %p258
      %p260 = scmp.ne.s32.totalorder %s246, %s247
      %p261 = scmp.eq.s32.totalorder %s35, 1
      %p262 = por %p260, %p261
      %p264 = scmp.ne.s32.totalorder %s247, %s263
      %p265 = scmp.eq.s32.totalorder %s35, 0
      %p266 = por %p264, %p265
      %s267 = ssub.s32 %s29, %s36
      %p268 = scmp.eq.s32.totalorder %s267, 0
      %s270 = sadd.s32 %s269, 1
      %s271 = scalar_select %p268, %s269, %s270
      %p274 = pneg %p268
      %p275 = scmp.eq.s32.totalorder %s29, 1
      %p276 = por %p274, %p275
      %p277 = scmp.ne.s32.totalorder %s269, %s272
      %p278 = scmp.eq.s32.totalorder %s29, 0
      %p279 = por %p277, %p278
      %p280 = scmp.ne.s32.totalorder %s269, %s272
      %p281 = scmp.eq.s32.totalorder %s34, 1
      %p282 = por %p280, %p281
      %p283 = scmp.ne.s32.totalorder %s272, %s273
      %p284 = scmp.eq.s32.totalorder %s34, 0
      %p285 = por %p283, %p284
      %p286 = scmp.ne.s32.totalorder %s272, %s273
      %p287 = scmp.eq.s32.totalorder %s35, 1
      %p288 = por %p286, %p287
      %p290 = scmp.ne.s32.totalorder %s273, %s289
      %p291 = scmp.eq.s32.totalorder %s35, 0
      %p292 = por %p290, %p291
      %s293 = ssub.s32 %s29, %s36
      %p294 = scmp.eq.s32.totalorder %s293, 0
      %s296 = sadd.s32 %s295, 1
      %s297 = scalar_select %p294, %s295, %s296
      %p300 = pneg %p294
      %p301 = scmp.eq.s32.totalorder %s29, 1
      %p302 = por %p300, %p301
      %p303 = scmp.ne.s32.totalorder %s295, %s298
      %p304 = scmp.eq.s32.totalorder %s29, 0
      %p305 = por %p303, %p304
      %p306 = scmp.ne.s32.totalorder %s295, %s298
      %p307 = scmp.eq.s32.totalorder %s34, 1
      %p308 = por %p306, %p307
      %p309 = scmp.ne.s32.totalorder %s298, %s299
      %p310 = scmp.eq.s32.totalorder %s34, 0
      %p311 = por %p309, %p310
      %p312 = scmp.ne.s32.totalorder %s298, %s299
      %p313 = scmp.eq.s32.totalorder %s35, 1
      %p314 = por %p312, %p313
      %p316 = scmp.ne.s32.totalorder %s299, %s315
      %p317 = scmp.eq.s32.totalorder %s35, 0
      %p318 = por %p316, %p317
      %s319 = ssub.s32 %s29, %s36
      %p320 = scmp.eq.s32.totalorder %s319, 0
      %s322 = sadd.s32 %s321, 1
      %s323 = scalar_select %p320, %s321, %s322
      %p326 = pneg %p320
      %p327 = scmp.eq.s32.totalorder %s29, 1
      %p328 = por %p326, %p327
      %p329 = scmp.ne.s32.totalorder %s321, %s324
      %p330 = scmp.eq.s32.totalorder %s29, 0
      %p331 = por %p329, %p330
      %p332 = scmp.ne.s32.totalorder %s321, %s324
      %p333 = scmp.eq.s32.totalorder %s34, 1
      %p334 = por %p332, %p333
      %p335 = scmp.ne.s32.totalorder %s324, %s325
      %p336 = scmp.eq.s32.totalorder %s34, 0
      %p337 = por %p335, %p336
      %p338 = scmp.ne.s32.totalorder %s324, %s325
      %p339 = scmp.eq.s32.totalorder %s35, 1
      %p340 = por %p338, %p339
      %p342 = scmp.ne.s32.totalorder %s325, %s341
      %p343 = scmp.eq.s32.totalorder %s35, 0
      %p344 = por %p342, %p343
      %s345 = ssub.s32 %s29, %s36
      %p346 = scmp.eq.s32.totalorder %s345, 0
      %s348 = sadd.s32 %s347, 1
      %s349 = scalar_select %p346, %s347, %s348
      %p352 = pneg %p346
      %p353 = scmp.eq.s32.totalorder %s29, 1
      %p354 = por %p352, %p353
      %p355 = scmp.ne.s32.totalorder %s347, %s350
      %p356 = scmp.eq.s32.totalorder %s29, 0
      %p357 = por %p355, %p356
      %p358 = scmp.ne.s32.totalorder %s347, %s350
      %p359 = scmp.eq.s32.totalorder %s34, 1
      %p360 = por %p358, %p359
      %p361 = scmp.ne.s32.totalorder %s350, %s351
      %p362 = scmp.eq.s32.totalorder %s34, 0
      %p363 = por %p361, %p362
      %p364 = scmp.ne.s32.totalorder %s350, %s351
      %p365 = scmp.eq.s32.totalorder %s35, 1
      %p366 = por %p364, %p365
      %p368 = scmp.ne.s32.totalorder %s351, %s367
      %p369 = scmp.eq.s32.totalorder %s35, 0
      %p370 = por %p368, %p369
      %s371 = ssub.s32 %s29, %s36
      %p372 = scmp.eq.s32.totalorder %s371, 0
      %s374 = sadd.s32 %s373, 1
      %s375 = scalar_select %p372, %s373, %s374
      %p378 = pneg %p372
      %p379 = scmp.eq.s32.totalorder %s29, 1
      %p380 = por %p378, %p379
      %p381 = scmp.ne.s32.totalorder %s373, %s376
      %p382 = scmp.eq.s32.totalorder %s29, 0
      %p383 = por %p381, %p382
      %p384 = scmp.ne.s32.totalorder %s373, %s376
      %p385 = scmp.eq.s32.totalorder %s34, 1
      %p386 = por %p384, %p385
      %p387 = scmp.ne.s32.totalorder %s376, %s377
      %p388 = scmp.eq.s32.totalorder %s34, 0
      %p389 = por %p387, %p388
      %p390 = scmp.ne.s32.totalorder %s376, %s377
      %p391 = scmp.eq.s32.totalorder %s35, 1
      %p392 = por %p390, %p391
      %p394 = scmp.ne.s32.totalorder %s377, %s393
      %p395 = scmp.eq.s32.totalorder %s35, 0
      %p396 = por %p394, %p395
      %s397 = ssub.s32 %s29, %s36
      %p398 = scmp.eq.s32.totalorder %s397, 0
      %s400 = sadd.s32 %s399, 1
      %s401 = scalar_select %p398, %s399, %s400
      %p404 = pneg %p398
      %p405 = scmp.eq.s32.totalorder %s29, 1
      %p406 = por %p404, %p405
      %p407 = scmp.ne.s32.totalorder %s399, %s402
      %p408 = scmp.eq.s32.totalorder %s29, 0
      %p409 = por %p407, %p408
      %p410 = scmp.ne.s32.totalorder %s399, %s402
      %p411 = scmp.eq.s32.totalorder %s34, 1
      %p412 = por %p410, %p411
      %p413 = scmp.ne.s32.totalorder %s402, %s403
      %p414 = scmp.eq.s32.totalorder %s34, 0
      %p415 = por %p413, %p414
      %p416 = scmp.ne.s32.totalorder %s402, %s403
      %p417 = scmp.eq.s32.totalorder %s35, 1
      %p418 = por %p416, %p417
      %p420 = scmp.ne.s32.totalorder %s403, %s419
      %p421 = scmp.eq.s32.totalorder %s35, 0
      %p422 = por %p420, %p421
      %s423 = ssub.s32 %s29, %s36
      %p424 = scmp.eq.s32.totalorder %s423, 0
      %s426 = sadd.s32 %s425, 1
      %s427 = scalar_select %p424, %s425, %s426
      %p430 = pneg %p424
      %p431 = scmp.eq.s32.totalorder %s29, 1
      %p432 = por %p430, %p431
      %p433 = scmp.ne.s32.totalorder %s425, %s428
      %p434 = scmp.eq.s32.totalorder %s29, 0
      %p435 = por %p433, %p434
      %p436 = scmp.ne.s32.totalorder %s425, %s428
      %p437 = scmp.eq.s32.totalorder %s34, 1
      %p438 = por %p436, %p437
      %p439 = scmp.ne.s32.totalorder %s428, %s429
      %p440 = scmp.eq.s32.totalorder %s34, 0
      %p441 = por %p439, %p440
      %p442 = scmp.ne.s32.totalorder %s428, %s429
      %p443 = scmp.eq.s32.totalorder %s35, 1
      %p444 = por %p442, %p443
      %p446 = scmp.ne.s32.totalorder %s429, %s445
      %p447 = scmp.eq.s32.totalorder %s35, 0
      %p448 = por %p446, %p447
      %s449 = ssub.s32 %s29, %s36
      %p450 = scmp.eq.s32.totalorder %s449, 0
      %s452 = sadd.s32 %s451, 1
      %s453 = scalar_select %p450, %s451, %s452
      %p456 = pneg %p450
      %p457 = scmp.eq.s32.totalorder %s29, 1
      %p458 = por %p456, %p457
      %p459 = scmp.ne.s32.totalorder %s451, %s454
      %p460 = scmp.eq.s32.totalorder %s29, 0
      %p461 = por %p459, %p460
      %p462 = scmp.ne.s32.totalorder %s451, %s454
      %p463 = scmp.eq.s32.totalorder %s34, 1
      %p464 = por %p462, %p463
      %p465 = scmp.ne.s32.totalorder %s454, %s455
      %p466 = scmp.eq.s32.totalorder %s34, 0
      %p467 = por %p465, %p466
      %p468 = scmp.ne.s32.totalorder %s454, %s455
      %p469 = scmp.eq.s32.totalorder %s35, 1
      %p470 = por %p468, %p469
      %p472 = scmp.ne.s32.totalorder %s455, %s471
      %p473 = scmp.eq.s32.totalorder %s35, 0
      %p474 = por %p472, %p473
      %s476 = sadd.s32 %s475, 1
      %p479 = scmp.eq.s32.totalorder %s29, 1
      %p480 = scmp.ne.s32.totalorder %s475, %s477
      %p481 = scmp.eq.s32.totalorder %s29, 0
      %p482 = por %p480, %p481
      %p483 = scmp.ne.s32.totalorder %s475, %s477
      %p484 = scmp.eq.s32.totalorder %s34, 1
      %p485 = por %p483, %p484
      %p486 = scmp.ne.s32.totalorder %s477, %s478
      %p487 = scmp.eq.s32.totalorder %s34, 0
      %p488 = por %p486, %p487
      %p489 = scmp.ne.s32.totalorder %s477, %s478
      %p490 = scmp.eq.s32.totalorder %s35, 1
      %p491 = por %p489, %p490
      %p493 = scmp.ne.s32.totalorder %s478, %s492
      %p494 = scmp.eq.s32.totalorder %s35, 0
      %p495 = por %p493, %p494
      %p496 = scmp.le.s32.totalorder 1, %s29
      %p497 = scmp.lt.s32.totalorder %s29, 3
      %p498 = pnand %p496, %p497
      %p499 = pneg %p498
      // Predicated region
      $region9: #{tpu_custom_call.1} parent=5 // pred_check
        _
      $region10: #{tpu_custom_call.1} parent=5 // pred_check_branch
        %501 = sbr.rel (%p498) target = $region12
      $region11: #{tpu_custom_call.1} parent=5 // pred_region
        %s502 = ssub.s32 %s29, 1
        // Predicated region
        $region13: #{tpu_custom_call.1} parent=11 // pred_check
          %p503 = pneg %p50
        $region14: #{tpu_custom_call.1} parent=11 // pred_check_branch
          %505 = sbr.rel (%p503) target = $region16
        $region15: #{tpu_custom_call.1} parent=11 // pred_region
          %507 = vsyncadd [#allocation4], 0
          %s508 = sshll.u32 %s0, 4
          %s509 = int_to_ptr.hbm [resolvable:$true] %s508
          %s510 = sshll.u32 [#allocation3], 4
          %s511 = int_to_ptr.vmem [resolvable:$true] %s510
          %516 = dma.hbm_to_vmem [thread:$0]  %s509, 512, %s511, [#allocation4], 128, 128, 8
        $region16: #{tpu_custom_call.1} parent=11 // pred_fallthru
          _
        // Predicated region
        $region17: #{tpu_custom_call.1} parent=11 // pred_check
          %p517 = pneg %p71
        $region18: #{tpu_custom_call.1} parent=11 // pred_check_branch
          %519 = sbr.rel (%p517) target = $region20
        $region19: #{tpu_custom_call.1} parent=11 // pred_region
          %521 = vsyncadd [#allocation7], 0
          %s522 = sshll.u32 %s1, 4
          %s523 = int_to_ptr.hbm [resolvable:$true] %s522
          %s524 = sshll.u32 [#allocation6], 4
          %s525 = int_to_ptr.vmem [resolvable:$true] %s524
          %530 = dma.hbm_to_vmem [thread:$0]  %s523, 1024, %s525, [#allocation7], 128, 128, 8
        $region20: #{tpu_custom_call.1} parent=11 // pred_fallthru
          _
        // Predicated region
        $region21: #{tpu_custom_call.1} parent=11 // pred_check
          %p531 = pneg %p92
        $region22: #{tpu_custom_call.1} parent=11 // pred_check_branch
          %533 = sbr.rel (%p531) target = $region24
        $region23: #{tpu_custom_call.1} parent=11 // pred_region
          %535 = vsyncadd [#allocation7], 0
          %s537 = sshll.u32 %s2, 4
          %s538 = int_to_ptr.hbm [resolvable:$true] %s537
          %s539 = sshll.u32 [#allocation8], 4
          %s540 = int_to_ptr.vmem [resolvable:$true] %s539
          %542 = dma.hbm_to_vmem [thread:$0]  %s538, 32, %s540, [#allocation7]
        $region24: #{tpu_custom_call.1} parent=11 // pred_fallthru
          _
        // Predicated region
        $region25: #{tpu_custom_call.1} parent=11 // pred_check
          %p543 = pneg %p113
        $region26: #{tpu_custom_call.1} parent=11 // pred_check_branch
          %545 = sbr.rel (%p543) target = $region28
        $region27: #{tpu_custom_call.1} parent=11 // pred_region
          %547 = vsyncadd [#allocation10], 0
          %s549 = sshll.u32 %s3, 4
          %s550 = int_to_ptr.hbm [resolvable:$true] %s549
          %s551 = sshll.u32 [#allocation9], 4
          %s552 = int_to_ptr.vmem [resolvable:$true] %s551
          %554 = dma.hbm_to_vmem [thread:$0]  %s550, 32, %s552, [#allocation10]
        $region28: #{tpu_custom_call.1} parent=11 // pred_fallthru
          _
        // Predicated region
        $region29: #{tpu_custom_call.1} parent=11 // pred_check
          %p555 = pneg %p134
        $region30: #{tpu_custom_call.1} parent=11 // pred_check_branch
          %557 = sbr.rel (%p555) target = $region32
        $region31: #{tpu_custom_call.1} parent=11 // pred_region
          %559 = vsyncadd [#allocation10], 0
          %s561 = sshll.u32 %s4, 4
          %s562 = int_to_ptr.hbm [resolvable:$true] %s561
          %s563 = sshll.u32 [#allocation11], 4
          %s564 = int_to_ptr.vmem [resolvable:$true] %s563
          %566 = dma.hbm_to_vmem [thread:$0]  %s562, 32, %s564, [#allocation10]
        $region32: #{tpu_custom_call.1} parent=11 // pred_fallthru
          _
        // Predicated region
        $region33: #{tpu_custom_call.1} parent=11 // pred_check
          %p567 = pneg %p155
        $region34: #{tpu_custom_call.1} parent=11 // pred_check_branch
          %569 = sbr.rel (%p567) target = $region36
        $region35: #{tpu_custom_call.1} parent=11 // pred_region
          %571 = vsyncadd [#allocation13], 0
          %s572 = sshll.u32 %s5, 4
          %s573 = int_to_ptr.hbm [resolvable:$true] %s572
          %s574 = sshll.u32 [#allocation12], 4
          %s575 = int_to_ptr.vmem [resolvable:$true] %s574
          %580 = dma.hbm_to_vmem [thread:$0]  %s573, 1024, %s575, [#allocation13], 256, 256, 16
        $region36: #{tpu_custom_call.1} parent=11 // pred_fallthru
          _
      $region12: #{tpu_custom_call.1} parent=5 // pred_fallthru
        _
      %p581 = scmp.lt.s32.totalorder %s29, 2
      // Predicated region
      $region37: #{tpu_custom_call.1} parent=5 // pred_check
        %p582 = pneg %p581
      $region38: #{tpu_custom_call.1} parent=5 // pred_check_branch
        %584 = sbr.rel (%p582) target = $region40
      $region39: #{tpu_custom_call.1} parent=5 // pred_region
        // Predicated region
        $region41: #{tpu_custom_call.1} parent=39 // pred_check
          %p585 = pneg %p175
        $region42: #{tpu_custom_call.1} parent=39 // pred_check_branch
          %587 = sbr.rel (%p585) target = $region44
        $region43: #{tpu_custom_call.1} parent=39 // pred_region
          %p588 = scmp.lt.s32.totalorder %s29, 1
          %s589 = scalar_select %p588, %s29, 1
          %s590 = smul.addr %s589, 2
          %s591 = scalar_lea.vmem %s6, %s590
        $region44: #{tpu_custom_call.1} parent=39 // pred_fallthru
          _
        // Predicated region
        $region45: #{tpu_custom_call.1} parent=39 // pred_check
          %p592 = pneg %p201
        $region46: #{tpu_custom_call.1} parent=39 // pred_check_branch
          %594 = sbr.rel (%p592) target = $region48
        $region47: #{tpu_custom_call.1} parent=39 // pred_region
          %s595 = sand.u32 %s29, 1
          %s596 = scalar_lea.sflag [#allocation4], %s595
          %s597 = sand.u32 %s191, 1
          %s598 = smul.addr %s597, 2
          %s599 = scalar_lea.vmem [#allocation14], %s598
          %601 = vsyncadd %s596, 0
          %s602 = smul.addr %s29, 2
          %s603 = scalar_lea.hbm %s7, %s602
          %s605 = sshll.u32 %s603, 4
          %s606 = int_to_ptr.hbm [resolvable:$true] %s605
          %s607 = sshll.u32 %s599, 4
          %s608 = int_to_ptr.vmem [resolvable:$true] %s607
          %610 = dma.hbm_to_vmem [thread:$0]  %s606, 32, %s608, %s596
        $region48: #{tpu_custom_call.1} parent=39 // pred_fallthru
          _
        // Predicated region
        $region49: #{tpu_custom_call.1} parent=39 // pred_check
          %p611 = pneg %p227
        $region50: #{tpu_custom_call.1} parent=39 // pred_check_branch
          %613 = sbr.rel (%p611) target = $region52
        $region51: #{tpu_custom_call.1} parent=39 // pred_region
          %s614 = sand.u32 %s29, 1
          %s615 = scalar_lea.sflag [#allocation4], %s614
          %s616 = sand.u32 %s217, 1
          %s617 = smul.addr %s616, 768
          %s618 = scalar_lea.vmem [#allocation15], %s617
          %620 = vsyncadd %s615, 0
          %s621 = smul.addr %s29, 192
          %s622 = smul.addr %s621, 4
          %s623 = scalar_lea.hbm %s8, %s622
          %s624 = sshll.u32 %s623, 4
          %s625 = int_to_ptr.hbm [resolvable:$true] %s624
          %s626 = sshll.u32 %s618, 4
          %s627 = int_to_ptr.vmem [resolvable:$true] %s626
          %632 = dma.hbm_to_vmem [thread:$0]  %s625, 12288, %s627, %s615, 384, 384, 24
        $region52: #{tpu_custom_call.1} parent=39 // pred_fallthru
          _
        // Predicated region
        $region53: #{tpu_custom_call.1} parent=39 // pred_check
          %p633 = pneg %p253
        $region54: #{tpu_custom_call.1} parent=39 // pred_check_branch
          %635 = sbr.rel (%p633) target = $region56
        $region55: #{tpu_custom_call.1} parent=39 // pred_region
          %s636 = sand.u32 %s29, 1
          %s637 = scalar_lea.sflag [#allocation4], %s636
          %s638 = sand.u32 %s243, 1
          %s639 = smul.addr %s638, 256
          %s640 = scalar_lea.vmem [#allocation16], %s639
          %642 = vsyncadd %s637, 0
          %s643 = smul.addr %s29, 64
          %s644 = smul.addr %s643, 4
          %s645 = scalar_lea.hbm %s9, %s644
          %s646 = sshll.u32 %s645, 4
          %s647 = int_to_ptr.hbm [resolvable:$true] %s646
          %s648 = sshll.u32 %s640, 4
          %s649 = int_to_ptr.vmem [resolvable:$true] %s648
          %654 = dma.hbm_to_vmem [thread:$0]  %s647, 4096, %s649, %s637, 128, 128, 8
        $region56: #{tpu_custom_call.1} parent=39 // pred_fallthru
          _
        // Predicated region
        $region57: #{tpu_custom_call.1} parent=39 // pred_check
          %p655 = pneg %p279
        $region58: #{tpu_custom_call.1} parent=39 // pred_check_branch
          %657 = sbr.rel (%p655) target = $region60
        $region59: #{tpu_custom_call.1} parent=39 // pred_region
          %s658 = sand.u32 %s29, 1
          %s659 = scalar_lea.sflag [#allocation4], %s658
          %s660 = sand.u32 %s269, 1
          %s661 = smul.addr %s660, 2
          %s662 = scalar_lea.vmem [#allocation17], %s661
          %664 = vsyncadd %s659, 0
          %s665 = smul.addr %s29, 2
          %s666 = scalar_lea.hbm %s10, %s665
          %s668 = sshll.u32 %s666, 4
          %s669 = int_to_ptr.hbm [resolvable:$true] %s668
          %s670 = sshll.u32 %s662, 4
          %s671 = int_to_ptr.vmem [resolvable:$true] %s670
          %673 = dma.hbm_to_vmem [thread:$0]  %s669, 32, %s671, %s659
        $region60: #{tpu_custom_call.1} parent=39 // pred_fallthru
          _
        // Predicated region
        $region61: #{tpu_custom_call.1} parent=39 // pred_check
          %p674 = pneg %p305
        $region62: #{tpu_custom_call.1} parent=39 // pred_check_branch
          %676 = sbr.rel (%p674) target = $region64
        $region63: #{tpu_custom_call.1} parent=39 // pred_region
          %s677 = sand.u32 %s29, 1
          %s678 = scalar_lea.sflag [#allocation4], %s677
          %s679 = sand.u32 %s295, 1
          %s680 = smul.addr %s679, 2
          %s681 = scalar_lea.vmem [#allocation18], %s680
          %683 = vsyncadd %s678, 0
          %s684 = smul.addr %s29, 2
          %s685 = scalar_lea.hbm %s11, %s684
          %s687 = sshll.u32 %s685, 4
          %s688 = int_to_ptr.hbm [resolvable:$true] %s687
          %s689 = sshll.u32 %s681, 4
          %s690 = int_to_ptr.vmem [resolvable:$true] %s689
          %692 = dma.hbm_to_vmem [thread:$0]  %s688, 32, %s690, %s678
        $region64: #{tpu_custom_call.1} parent=39 // pred_fallthru
          _
        // Predicated region
        $region65: #{tpu_custom_call.1} parent=39 // pred_check
          %p693 = pneg %p331
        $region66: #{tpu_custom_call.1} parent=39 // pred_check_branch
          %695 = sbr.rel (%p693) target = $region68
        $region67: #{tpu_custom_call.1} parent=39 // pred_region
          %s696 = sand.u32 %s29, 1
          %s697 = scalar_lea.sflag [#allocation4], %s696
          %s698 = sand.u32 %s321, 1
          %s699 = smul.addr %s698, 512
          %s700 = scalar_lea.vmem [#allocation19], %s699
          %702 = vsyncadd %s697, 0
          %s703 = smul.addr %s29, 128
          %s704 = smul.addr %s703, 4
          %s705 = scalar_lea.hbm %s12, %s704
          %s706 = sshll.u32 %s705, 4
          %s707 = int_to_ptr.hbm [resolvable:$true] %s706
          %s708 = sshll.u32 %s700, 4
          %s709 = int_to_ptr.vmem [resolvable:$true] %s708
          %714 = dma.hbm_to_vmem [thread:$0]  %s707, 8192, %s709, %s697, 256, 256, 16
        $region68: #{tpu_custom_call.1} parent=39 // pred_fallthru
          _
        // Predicated region
        $region69: #{tpu_custom_call.1} parent=39 // pred_check
          %p715 = pneg %p357
        $region70: #{tpu_custom_call.1} parent=39 // pred_check_branch
          %717 = sbr.rel (%p715) target = $region72
        $region71: #{tpu_custom_call.1} parent=39 // pred_region
          %p718 = scmp.lt.s32.totalorder %s29, 1
          %s719 = scalar_select %p718, %s29, 1
          %s720 = smul.addr %s719, 4
          %s721 = scalar_lea.vmem %s13, %s720
        $region72: #{tpu_custom_call.1} parent=39 // pred_fallthru
          _
        // Predicated region
        $region73: #{tpu_custom_call.1} parent=39 // pred_check
          %p722 = pneg %p383
        $region74: #{tpu_custom_call.1} parent=39 // pred_check_branch
          %724 = sbr.rel (%p722) target = $region76
        $region75: #{tpu_custom_call.1} parent=39 // pred_region
          %s725 = sand.u32 %s29, 1
          %s726 = scalar_lea.sflag [#allocation4], %s725
          %s727 = sand.u32 %s373, 1
          %s728 = smul.addr %s727, 512
          %s729 = scalar_lea.vmem [#allocation20], %s728
          %731 = vsyncadd %s726, 0
          %s732 = smul.addr %s29, 128
          %s733 = smul.addr %s732, 4
          %s734 = scalar_lea.hbm %s14, %s733
          %s735 = sshll.u32 %s734, 4
          %s736 = int_to_ptr.hbm [resolvable:$true] %s735
          %s737 = sshll.u32 %s729, 4
          %s738 = int_to_ptr.vmem [resolvable:$true] %s737
          %743 = dma.hbm_to_vmem [thread:$0]  %s736, 8192, %s738, %s726, 128, 128, 8
        $region76: #{tpu_custom_call.1} parent=39 // pred_fallthru
          _
        // Predicated region
        $region77: #{tpu_custom_call.1} parent=39 // pred_check
          %p744 = pneg %p409
        $region78: #{tpu_custom_call.1} parent=39 // pred_check_branch
          %746 = sbr.rel (%p744) target = $region80
        $region79: #{tpu_custom_call.1} parent=39 // pred_region
          %s747 = sand.u32 %s29, 1
          %s748 = scalar_lea.sflag [#allocation4], %s747
          %s749 = sand.u32 %s399, 1
          %s750 = smul.addr %s749, 2
          %s751 = scalar_lea.vmem [#allocation21], %s750
          %753 = vsyncadd %s748, 0
          %s754 = smul.addr %s29, 2
          %s755 = scalar_lea.hbm %s15, %s754
          %s757 = sshll.u32 %s755, 4
          %s758 = int_to_ptr.hbm [resolvable:$true] %s757
          %s759 = sshll.u32 %s751, 4
          %s760 = int_to_ptr.vmem [resolvable:$true] %s759
          %762 = dma.hbm_to_vmem [thread:$0]  %s758, 32, %s760, %s748
        $region80: #{tpu_custom_call.1} parent=39 // pred_fallthru
          _
        // Predicated region
        $region81: #{tpu_custom_call.1} parent=39 // pred_check
          %p763 = pneg %p435
        $region82: #{tpu_custom_call.1} parent=39 // pred_check_branch
          %765 = sbr.rel (%p763) target = $region84
        $region83: #{tpu_custom_call.1} parent=39 // pred_region
          %s766 = sand.u32 %s29, 1
          %s767 = scalar_lea.sflag [#allocation4], %s766
          %s768 = sand.u32 %s425, 1
          %s769 = smul.addr %s768, 2
          %s770 = scalar_lea.vmem [#allocation22], %s769
          %772 = vsyncadd %s767, 0
          %s773 = smul.addr %s29, 2
          %s774 = scalar_lea.hbm %s16, %s773
          %s776 = sshll.u32 %s774, 4
          %s777 = int_to_ptr.hbm [resolvable:$true] %s776
          %s778 = sshll.u32 %s770, 4
          %s779 = int_to_ptr.vmem [resolvable:$true] %s778
          %781 = dma.hbm_to_vmem [thread:$0]  %s777, 32, %s779, %s767
        $region84: #{tpu_custom_call.1} parent=39 // pred_fallthru
          _
        // Predicated region
        $region85: #{tpu_custom_call.1} parent=39 // pred_check
          %p782 = pneg %p461
        $region86: #{tpu_custom_call.1} parent=39 // pred_check_branch
          %784 = sbr.rel (%p782) target = $region88
        $region87: #{tpu_custom_call.1} parent=39 // pred_region
          %p785 = scmp.lt.s32.totalorder %s29, 1
          %s786 = scalar_select %p785, %s29, 1
          %s787 = smul.addr %s786, 2
          %s788 = scalar_lea.vmem %s17, %s787
        $region88: #{tpu_custom_call.1} parent=39 // pred_fallthru
          _
      $region40: #{tpu_custom_call.1} parent=5 // pred_fallthru
        _
      %p789 = scmp.le.s32.totalorder 1, %s29
      %p790 = scmp.lt.s32.totalorder %s29, 3
      %p791 = pnand %p789, %p790
      %p792 = pneg %p791
      // Predicated region
      $region89: #{tpu_custom_call.1} parent=5 // pred_check
        _
      $region90: #{tpu_custom_call.1} parent=5 // pred_check_branch
        %794 = sbr.rel (%p791) target = $region92
      $region91: #{tpu_custom_call.1} parent=5 // pred_region
        %s795 = ssub.s32 %s29, 1
        // Predicated region
        $region93: #{tpu_custom_call.1} parent=91 // pred_check
          %p796 = pneg %p50
        $region94: #{tpu_custom_call.1} parent=91 // pred_check_branch
          %798 = sbr.rel (%p796) target = $region96
        $region95: #{tpu_custom_call.1} parent=91 // pred_region
          %800 = dma.done [#allocation4], 512
        $region96: #{tpu_custom_call.1} parent=91 // pred_fallthru
          _
        // Predicated region
        $region97: #{tpu_custom_call.1} parent=91 // pred_check
          %p801 = pneg %p71
        $region98: #{tpu_custom_call.1} parent=91 // pred_check_branch
          %803 = sbr.rel (%p801) target = $region100
        $region99: #{tpu_custom_call.1} parent=91 // pred_region
          %805 = dma.done [#allocation7], 1024
        $region100: #{tpu_custom_call.1} parent=91 // pred_fallthru
          _
        // Predicated region
        $region101: #{tpu_custom_call.1} parent=91 // pred_check
          %p806 = pneg %p92
        $region102: #{tpu_custom_call.1} parent=91 // pred_check_branch
          %808 = sbr.rel (%p806) target = $region104
        $region103: #{tpu_custom_call.1} parent=91 // pred_region
          %810 = dma.done [#allocation7], 32
        $region104: #{tpu_custom_call.1} parent=91 // pred_fallthru
          _
        // Predicated region
        $region105: #{tpu_custom_call.1} parent=91 // pred_check
          %p811 = pneg %p113
        $region106: #{tpu_custom_call.1} parent=91 // pred_check_branch
          %813 = sbr.rel (%p811) target = $region108
        $region107: #{tpu_custom_call.1} parent=91 // pred_region
          %815 = dma.done [#allocation10], 32
        $region108: #{tpu_custom_call.1} parent=91 // pred_fallthru
          _
        // Predicated region
        $region109: #{tpu_custom_call.1} parent=91 // pred_check
          %p816 = pneg %p134
        $region110: #{tpu_custom_call.1} parent=91 // pred_check_branch
          %818 = sbr.rel (%p816) target = $region112
        $region111: #{tpu_custom_call.1} parent=91 // pred_region
          %820 = dma.done [#allocation10], 32
        $region112: #{tpu_custom_call.1} parent=91 // pred_fallthru
          _
        // Predicated region
        $region113: #{tpu_custom_call.1} parent=91 // pred_check
          %p821 = pneg %p155
        $region114: #{tpu_custom_call.1} parent=91 // pred_check_branch
          %823 = sbr.rel (%p821) target = $region116
        $region115: #{tpu_custom_call.1} parent=91 // pred_region
          %825 = dma.done [#allocation13], 1024
        $region116: #{tpu_custom_call.1} parent=91 // pred_fallthru
          _
        %s826 = sand.u32 %s34, 1
        %s827 = scalar_lea.sflag [#allocation4], %s826
        %s828 = sand.u32 %s194, 1
        %s829 = smul.addr %s828, 2
        %s830 = scalar_lea.vmem [#allocation14], %s829
        // Predicated region
        $region117: #{tpu_custom_call.1} parent=91 // pred_check
          %p831 = pneg %p207
        $region118: #{tpu_custom_call.1} parent=91 // pred_check_branch
          %833 = sbr.rel (%p831) target = $region120
        $region119: #{tpu_custom_call.1} parent=91 // pred_region
          %835 = dma.done %s827, 32
        $region120: #{tpu_custom_call.1} parent=91 // pred_fallthru
          _
        %s836 = sand.u32 %s34, 1
        %s837 = scalar_lea.sflag [#allocation4], %s836
        %s838 = sand.u32 %s220, 1
        %s839 = smul.addr %s838, 768
        %s840 = scalar_lea.vmem [#allocation15], %s839
        // Predicated region
        $region121: #{tpu_custom_call.1} parent=91 // pred_check
          %p841 = pneg %p233
        $region122: #{tpu_custom_call.1} parent=91 // pred_check_branch
          %843 = sbr.rel (%p841) target = $region124
        $region123: #{tpu_custom_call.1} parent=91 // pred_region
          %845 = dma.done %s837, 12288
        $region124: #{tpu_custom_call.1} parent=91 // pred_fallthru
          _
        %s846 = sand.u32 %s34, 1
        %s847 = scalar_lea.sflag [#allocation4], %s846
        %s848 = sand.u32 %s246, 1
        %s849 = smul.addr %s848, 256
        %s850 = scalar_lea.vmem [#allocation16], %s849
        // Predicated region
        $region125: #{tpu_custom_call.1} parent=91 // pred_check
          %p851 = pneg %p259
        $region126: #{tpu_custom_call.1} parent=91 // pred_check_branch
          %853 = sbr.rel (%p851) target = $region128
        $region127: #{tpu_custom_call.1} parent=91 // pred_region
          %855 = dma.done %s847, 4096
        $region128: #{tpu_custom_call.1} parent=91 // pred_fallthru
          _
        %s856 = sand.u32 %s34, 1
        %s857 = scalar_lea.sflag [#allocation4], %s856
        %s858 = sand.u32 %s272, 1
        %s859 = smul.addr %s858, 2
        %s860 = scalar_lea.vmem [#allocation17], %s859
        // Predicated region
        $region129: #{tpu_custom_call.1} parent=91 // pred_check
          %p861 = pneg %p285
        $region130: #{tpu_custom_call.1} parent=91 // pred_check_branch
          %863 = sbr.rel (%p861) target = $region132
        $region131: #{tpu_custom_call.1} parent=91 // pred_region
          %865 = dma.done %s857, 32
        $region132: #{tpu_custom_call.1} parent=91 // pred_fallthru
          _
        %s866 = sand.u32 %s34, 1
        %s867 = scalar_lea.sflag [#allocation4], %s866
        %s868 = sand.u32 %s298, 1
        %s869 = smul.addr %s868, 2
        %s870 = scalar_lea.vmem [#allocation18], %s869
        // Predicated region
        $region133: #{tpu_custom_call.1} parent=91 // pred_check
          %p871 = pneg %p311
        $region134: #{tpu_custom_call.1} parent=91 // pred_check_branch
          %873 = sbr.rel (%p871) target = $region136
        $region135: #{tpu_custom_call.1} parent=91 // pred_region
          %875 = dma.done %s867, 32
        $region136: #{tpu_custom_call.1} parent=91 // pred_fallthru
          _
        %s876 = sand.u32 %s34, 1
        %s877 = scalar_lea.sflag [#allocation4], %s876
        %s878 = sand.u32 %s324, 1
        %s879 = smul.addr %s878, 512
        %s880 = scalar_lea.vmem [#allocation19], %s879
        // Predicated region
        $region137: #{tpu_custom_call.1} parent=91 // pred_check
          %p881 = pneg %p337
        $region138: #{tpu_custom_call.1} parent=91 // pred_check_branch
          %883 = sbr.rel (%p881) target = $region140
        $region139: #{tpu_custom_call.1} parent=91 // pred_region
          %885 = dma.done %s877, 8192
        $region140: #{tpu_custom_call.1} parent=91 // pred_fallthru
          _
        %s886 = sand.u32 %s34, 1
        %s887 = scalar_lea.sflag [#allocation4], %s886
        %s888 = sand.u32 %s376, 1
        %s889 = smul.addr %s888, 512
        %s890 = scalar_lea.vmem [#allocation20], %s889
        // Predicated region
        $region141: #{tpu_custom_call.1} parent=91 // pred_check
          %p891 = pneg %p389
        $region142: #{tpu_custom_call.1} parent=91 // pred_check_branch
          %893 = sbr.rel (%p891) target = $region144
        $region143: #{tpu_custom_call.1} parent=91 // pred_region
          %895 = dma.done %s887, 8192
        $region144: #{tpu_custom_call.1} parent=91 // pred_fallthru
          _
        %s896 = sand.u32 %s34, 1
        %s897 = scalar_lea.sflag [#allocation4], %s896
        %s898 = sand.u32 %s402, 1
        %s899 = smul.addr %s898, 2
        %s900 = scalar_lea.vmem [#allocation21], %s899
        // Predicated region
        $region145: #{tpu_custom_call.1} parent=91 // pred_check
          %p901 = pneg %p415
        $region146: #{tpu_custom_call.1} parent=91 // pred_check_branch
          %903 = sbr.rel (%p901) target = $region148
        $region147: #{tpu_custom_call.1} parent=91 // pred_region
          %905 = dma.done %s897, 32
        $region148: #{tpu_custom_call.1} parent=91 // pred_fallthru
          _
        %s906 = sand.u32 %s34, 1
        %s907 = scalar_lea.sflag [#allocation4], %s906
        %s908 = sand.u32 %s428, 1
        %s909 = smul.addr %s908, 2
        %s910 = scalar_lea.vmem [#allocation22], %s909
        // Predicated region
        $region149: #{tpu_custom_call.1} parent=91 // pred_check
          %p911 = pneg %p441
        $region150: #{tpu_custom_call.1} parent=91 // pred_check_branch
          %913 = sbr.rel (%p911) target = $region152
        $region151: #{tpu_custom_call.1} parent=91 // pred_region
          %915 = dma.done %s907, 32
        $region152: #{tpu_custom_call.1} parent=91 // pred_fallthru
          _
        %p916 = pneg %p50
        %p917 = pneg %p47
        %p918 = pneg %p71
        %p919 = pneg %p68
        %p920 = pneg %p92
        %p921 = pneg %p89
        %p922 = pneg %p113
        %p923 = pneg %p110
        %p924 = pneg %p134
        %p925 = pneg %p131
        %p926 = pneg %p155
        %p927 = pneg %p152
        %p928 = scmp.lt.s32.totalorder %s34, 1
        %s929 = scalar_select %p928, %s34, 1
        %s930 = smul.addr %s929, 2
        %s931 = scalar_lea.vmem %s6, %s930
        %p932 = pneg %p181
        %p933 = pneg %p178
        %s934 = sand.u32 %s34, 1
        %s935 = scalar_lea.sflag [#allocation4], %s934
        %s936 = sand.u32 %s194, 1
        %s937 = smul.addr %s936, 2
        %s938 = scalar_lea.vmem [#allocation14], %s937
        %p939 = pneg %p207
        %p940 = pneg %p204
        %s941 = sand.u32 %s34, 1
        %s942 = scalar_lea.sflag [#allocation4], %s941
        %s943 = sand.u32 %s220, 1
        %s944 = smul.addr %s943, 768
        %s945 = scalar_lea.vmem [#allocation15], %s944
        %p946 = pneg %p233
        %p947 = pneg %p230
        %s948 = sand.u32 %s34, 1
        %s949 = scalar_lea.sflag [#allocation4], %s948
        %s950 = sand.u32 %s246, 1
        %s951 = smul.addr %s950, 256
        %s952 = scalar_lea.vmem [#allocation16], %s951
        %p953 = pneg %p259
        %p954 = pneg %p256
        %s955 = sand.u32 %s34, 1
        %s956 = scalar_lea.sflag [#allocation4], %s955
        %s957 = sand.u32 %s272, 1
        %s958 = smul.addr %s957, 2
        %s959 = scalar_lea.vmem [#allocation17], %s958
        %p960 = pneg %p285
        %p961 = pneg %p282
        %s962 = sand.u32 %s34, 1
        %s963 = scalar_lea.sflag [#allocation4], %s962
        %s964 = sand.u32 %s298, 1
        %s965 = smul.addr %s964, 2
        %s966 = scalar_lea.vmem [#allocation18], %s965
        %p967 = pneg %p311
        %p968 = pneg %p308
        %s969 = sand.u32 %s34, 1
        %s970 = scalar_lea.sflag [#allocation4], %s969
        %s971 = sand.u32 %s324, 1
        %s972 = smul.addr %s971, 512
        %s973 = scalar_lea.vmem [#allocation19], %s972
        %p974 = pneg %p337
        %p975 = pneg %p334
        %p976 = scmp.lt.s32.totalorder %s34, 1
        %s977 = scalar_select %p976, %s34, 1
        %s978 = smul.addr %s977, 4
        %s979 = scalar_lea.vmem %s13, %s978
        %p980 = pneg %p363
        %p981 = pneg %p360
        %s982 = sand.u32 %s34, 1
        %s983 = scalar_lea.sflag [#allocation4], %s982
        %s984 = sand.u32 %s376, 1
        %s985 = smul.addr %s984, 512
        %s986 = scalar_lea.vmem [#allocation20], %s985
        %p987 = pneg %p389
        %p988 = pneg %p386
        %s989 = sand.u32 %s34, 1
        %s990 = scalar_lea.sflag [#allocation4], %s989
        %s991 = sand.u32 %s402, 1
        %s992 = smul.addr %s991, 2
        %s993 = scalar_lea.vmem [#allocation21], %s992
        %p994 = pneg %p415
        %p995 = pneg %p412
        %s996 = sand.u32 %s34, 1
        %s997 = scalar_lea.sflag [#allocation4], %s996
        %s998 = sand.u32 %s428, 1
        %s999 = smul.addr %s998, 2
        %s1000 = scalar_lea.vmem [#allocation22], %s999
        %p1001 = pneg %p441
        %p1002 = pneg %p438
        %p1003 = scmp.lt.s32.totalorder %s34, 1
        %s1004 = scalar_select %p1003, %s34, 1
        %s1005 = smul.addr %s1004, 2
        %s1006 = scalar_lea.vmem %s17, %s1005
        %p1007 = pneg %p467
        %p1008 = pneg %p464
        %p1009 = pneg %p488
        %p1010 = pneg %p485
        %p1011 = scmp.lt.s32.totalorder %s34, 1
        %s1012 = scalar_select %p1011, %s34, 1
        %s1013 = smul.addr %s1012, 2
        %s1014 = scalar_lea.vmem %s6, %s1013
        %p1015 = scmp.lt.s32.totalorder %s34, 1
        %s1016 = scalar_select %p1015, %s34, 1
        %s1017 = smul.addr %s1016, 4
        %s1018 = scalar_lea.vmem %s13, %s1017
        %p1019 = scmp.lt.s32.totalorder %s34, 1
        %s1020 = scalar_select %p1019, %s34, 1
        %s1021 = smul.addr %s1020, 2
        %s1022 = scalar_lea.vmem %s17, %s1021
        %p1024 = scmp.eq.s32.totalorder %s34, 0
        // Predicated region
        $region153: #{tpu_custom_call.1} parent=91 // pred_check
          %p1025 = pneg %p1024
        $region154: #{tpu_custom_call.1} parent=91 // pred_check_branch
          %1027 = sbr.rel (%p1025) target = $region156
        $region155: #{tpu_custom_call.1} parent=91 // pred_region
          %v1028 = vld [vmem:[#allocation3] sm:$0xff]
          %v1029 = vld [vmem:[#allocation3 + $0x8] sm:$0xff]
          %v1030 = vld [vmem:[#allocation3 + $0x10] sm:$0xff]
          %v1031 = vld [vmem:[#allocation3 + $0x18] sm:$0xff]
          %v1032 = vpack.c.bf16 %v1029, %v1028
          %v1033 = vpack.c.bf16 %v1031, %v1030
          %v1034 = vld [vmem:[#allocation6] sm:$0xff]
          %v1035 = vld [vmem:[#allocation6 + $0x8] sm:$0xff]
          %v1036 = vld [vmem:[#allocation6 + $0x10] sm:$0xff]
          %v1037 = vld [vmem:[#allocation6 + $0x18] sm:$0xff]
          %v1038 = vld [vmem:[#allocation6 + $0x20] sm:$0xff]
          %v1039 = vld [vmem:[#allocation6 + $0x28] sm:$0xff]
          %v1040 = vld [vmem:[#allocation6 + $0x30] sm:$0xff]
          %v1041 = vld [vmem:[#allocation6 + $0x38] sm:$0xff]
          %v1042 = vld [vmem:[#allocation8] sm:$0x3]
          %v1044 = vperm.slane %v1042, 0
          %v1045 = vperm.slane %v1042, 1
          %v1056 = vunpack.c.l.b16 %v1034
          %v1057 = vunpack.c.h.b16 %v1034
          %v1058 = vunpack.c.l.b16 %v1035
          %v1059 = vunpack.c.h.b16 %v1035
          %v1060 = vunpack.c.l.b16 %v1036
          %v1061 = vunpack.c.h.b16 %v1036
          %v1062 = vunpack.c.l.b16 %v1037
          %v1063 = vunpack.c.h.b16 %v1037
          %v1064 = vunpack.c.l.b16 %v1038
          %v1065 = vunpack.c.h.b16 %v1038
          %v1066 = vunpack.c.l.b16 %v1039
          %v1067 = vunpack.c.h.b16 %v1039
          %v1068 = vunpack.c.l.b16 %v1040
          %v1069 = vunpack.c.h.b16 %v1040
          %v1070 = vunpack.c.l.b16 %v1041
          %v1071 = vunpack.c.h.b16 %v1041
          %v1072 = vpack.c.b16 %v1058, %v1056
          %v1073 = vpack.c.b16 %v1059, %v1057
          %v1074 = vpack.c.b16 %v1062, %v1060
          %v1075 = vpack.c.b16 %v1063, %v1061
          %v1076 = vpack.c.b16 %v1066, %v1064
          %v1077 = vpack.c.b16 %v1067, %v1065
          %v1078 = vpack.c.b16 %v1070, %v1068
          %v1079 = vpack.c.b16 %v1071, %v1069
          %vm1088 = vcmask 523264
          %v1090 = vsel %vm1088, %v1032, 0
          %v1093 = vsel %vm1088, %v1033, 0
          %1095 = vmatpush.bf16.msra.mxu0 0
          %1096 = vmatpush.bf16.msra.mxu0 0
          %1097 = vmatpush.bf16.msra.mxu0 0
          %1098 = vmatpush.bf16.msra.mxu0 0
          %1099 = vmatpush.bf16.msra.mxu0 %v1078
          %1100 = vmatpush.bf16.msra.mxu0 %v1076
          %1101 = vmatpush.bf16.msra.mxu0 %v1074
          %1102 = vmatpush.bf16.msra.mxu0 %v1072
          %1103 = vmatmul.bf16.gmra.mxu0 %v1090
          %v1104 = vpop.f32.mrf.mxu0
          %v1105 = vadd.f32 %v1044, %v1104
          %v1106 = vpop.f32.mrf.mxu0
          %v1107 = vadd.f32 %v1044, %v1106
          %1108 = vmatmul.bf16.gmra.mxu0 %v1093
          %v1109 = vpop.f32.mrf.mxu0
          %v1110 = vadd.f32 %v1044, %v1109
          %v1111 = vpop.f32.mrf.mxu0
          %v1112 = vadd.f32 %v1044, %v1111
          %1113 = vdwg.mxu0
          %1114 = vmatpush.bf16.msra.mxu0 0
          %1115 = vmatpush.bf16.msra.mxu0 0
          %1116 = vmatpush.bf16.msra.mxu0 0
          %1117 = vmatpush.bf16.msra.mxu0 0
          %1118 = vmatpush.bf16.msra.mxu0 %v1079
          %1119 = vmatpush.bf16.msra.mxu0 %v1077
          %1120 = vmatpush.bf16.msra.mxu0 %v1075
          %1121 = vmatpush.bf16.msra.mxu0 %v1073
          %1122 = vmatmul.bf16.gmra.mxu0 %v1090
          %v1123 = vpop.f32.mrf.mxu0
          %v1124 = vadd.f32 %v1045, %v1123
          %v1125 = vpop.f32.mrf.mxu0
          %v1126 = vadd.f32 %v1045, %v1125
          %1127 = vmatmul.bf16.gmra.mxu0 %v1093
          %v1128 = vpop.f32.mrf.mxu0
          %v1129 = vadd.f32 %v1045, %v1128
          %v1130 = vpop.f32.mrf.mxu0
          %v1131 = vadd.f32 %v1045, %v1130
          %1132 = vdwg.mxu0
          %v1133 = vld [vmem:[#allocation9] sm:$0x3]
          %v1134 = vld [vmem:[#allocation11] sm:$0x3]
          %v1135 = vadd.f32 %v1105, %v1124
          %1136 = vadd.xlane.f32.xlu0 %v1135
          %v1137 = vpop.xlane.xlu0 %1136
          %v1138 = vadd.f32 %v1107, %v1126
          %1139 = vadd.xlane.f32.xlu0 %v1138
          %v1140 = vpop.xlane.xlu0 %1139
          %v1141 = vadd.f32 %v1110, %v1129
          %1142 = vadd.xlane.f32.xlu0 %v1141
          %v1143 = vpop.xlane.xlu0 %1142
          %v1144 = vadd.f32 %v1112, %v1131
          %1145 = vadd.xlane.f32.xlu0 %v1144
          %v1146 = vpop.xlane.xlu0 %1145
          %v1147 = vrcp.pop 256.0
          %v1148 = vmul.f32 256.0, %v1147
          %v1149 = vsub.f32 1.0, %v1148
          %v1150 = vmul.f32 %v1147, %v1149
          %v1151 = vadd.f32 %v1147, %v1150
          %vm1152 = vweird.f32 %v1147
          %v1153 = vsel %vm1152, %v1147, %v1151
          %v1154 = vmul.f32 %v1137, %v1153
          %v1155 = vmul.f32 %v1140, %v1153
          %v1156 = vmul.f32 %v1143, %v1153
          %v1157 = vmul.f32 %v1146, %v1153
          %v1158 = vsub.f32 %v1105, %v1154
          %v1159 = vsub.f32 %v1124, %v1154
          %v1160 = vsub.f32 %v1107, %v1155
          %v1161 = vsub.f32 %v1126, %v1155
          %v1162 = vsub.f32 %v1110, %v1156
          %v1163 = vsub.f32 %v1129, %v1156
          %v1164 = vsub.f32 %v1112, %v1157
          %v1165 = vsub.f32 %v1131, %v1157
          %v1166 = vmul.f32 %v1158, %v1158
          %v1167 = vmul.f32 %v1159, %v1159
          %v1168 = vmul.f32 %v1160, %v1160
          %v1169 = vmul.f32 %v1161, %v1161
          %v1170 = vmul.f32 %v1162, %v1162
          %v1171 = vmul.f32 %v1163, %v1163
          %v1172 = vmul.f32 %v1164, %v1164
          %v1173 = vmul.f32 %v1165, %v1165
          %v1174 = vadd.f32 %v1166, %v1167
          %1175 = vadd.xlane.f32.xlu0 %v1174
          %v1176 = vpop.xlane.xlu0 %1175
          %v1177 = vadd.f32 %v1168, %v1169
          %1178 = vadd.xlane.f32.xlu0 %v1177
          %v1179 = vpop.xlane.xlu0 %1178
          %v1180 = vadd.f32 %v1170, %v1171
          %1181 = vadd.xlane.f32.xlu0 %v1180
          %v1182 = vpop.xlane.xlu0 %1181
          %v1183 = vadd.f32 %v1172, %v1173
          %1184 = vadd.xlane.f32.xlu0 %v1183
          %v1185 = vpop.xlane.xlu0 %1184
          %v1186 = vmul.f32 %v1176, %v1153
          %v1187 = vmul.f32 %v1179, %v1153
          %v1188 = vmul.f32 %v1182, %v1153
          %v1189 = vmul.f32 %v1185, %v1153
          %v1190 = vadd.f32 %v1186, 1e-05
          %v1191 = vadd.f32 %v1187, 1e-05
          %v1192 = vadd.f32 %v1188, 1e-05
          %v1193 = vadd.f32 %v1189, 1e-05
          %v1194 = vrsqrt.pop %v1190
          %v1195 = vmul.f32 %v1194, %v1190
          %v1196 = vmul.f32 %v1195, %v1194
          %v1197 = vmul.f32 0.5, %v1196
          %v1198 = vsub.f32 1.5, %v1197
          %v1199 = vmul.f32 %v1194, %v1198
          %vm1200 = vweird.f32 %v1190
          %vm1201 = vweird.f32 %v1194
          %vm1202 = vmor %vm1200, %vm1201
          %v1203 = vsel %vm1202, %v1194, %v1199
          %v1204 = vrsqrt.pop %v1191
          %v1205 = vmul.f32 %v1204, %v1191
          %v1206 = vmul.f32 %v1205, %v1204
          %v1207 = vmul.f32 0.5, %v1206
          %v1208 = vsub.f32 1.5, %v1207
          %v1209 = vmul.f32 %v1204, %v1208
          %vm1210 = vweird.f32 %v1191
          %vm1211 = vweird.f32 %v1204
          %vm1212 = vmor %vm1210, %vm1211
          %v1213 = vsel %vm1212, %v1204, %v1209
          %v1214 = vrsqrt.pop %v1192
          %v1215 = vmul.f32 %v1214, %v1192
          %v1216 = vmul.f32 %v1215, %v1214
          %v1217 = vmul.f32 0.5, %v1216
          %v1218 = vsub.f32 1.5, %v1217
          %v1219 = vmul.f32 %v1214, %v1218
          %vm1220 = vweird.f32 %v1192
          %vm1221 = vweird.f32 %v1214
          %vm1222 = vmor %vm1220, %vm1221
          %v1223 = vsel %vm1222, %v1214, %v1219
          %v1224 = vrsqrt.pop %v1193
          %v1225 = vmul.f32 %v1224, %v1193
          %v1226 = vmul.f32 %v1225, %v1224
          %v1227 = vmul.f32 0.5, %v1226
          %v1228 = vsub.f32 1.5, %v1227
          %v1229 = vmul.f32 %v1224, %v1228
          %vm1230 = vweird.f32 %v1193
          %vm1231 = vweird.f32 %v1224
          %vm1232 = vmor %vm1230, %vm1231
          %v1233 = vsel %vm1232, %v1224, %v1229
          %v1234 = vmul.f32 %v1158, %v1203
          %v1235 = vmul.f32 %v1159, %v1203
          %v1236 = vmul.f32 %v1160, %v1213
          %v1237 = vmul.f32 %v1161, %v1213
          %v1238 = vmul.f32 %v1162, %v1223
          %v1239 = vmul.f32 %v1163, %v1223
          %v1240 = vmul.f32 %v1164, %v1233
          %v1241 = vmul.f32 %v1165, %v1233
          %v1243 = vperm.slane %v1133, 0
          %v1244 = vperm.slane %v1133, 1
          %v1247 = vmul.f32 %v1234, %v1243
          %v1248 = vmul.f32 %v1235, %v1244
          %v1249 = vmul.f32 %v1236, %v1243
          %v1250 = vmul.f32 %v1237, %v1244
          %v1251 = vmul.f32 %v1238, %v1243
          %v1252 = vmul.f32 %v1239, %v1244
          %v1253 = vmul.f32 %v1240, %v1243
          %v1254 = vmul.f32 %v1241, %v1244
          %v1256 = vperm.slane %v1134, 0
          %v1257 = vperm.slane %v1134, 1
          %v1260 = vadd.f32 %v1247, %v1256
          %v1261 = vadd.f32 %v1248, %v1257
          %v1262 = vadd.f32 %v1249, %v1256
          %v1263 = vadd.f32 %v1250, %v1257
          %v1264 = vadd.f32 %v1251, %v1256
          %v1265 = vadd.f32 %v1252, %v1257
          %v1266 = vadd.f32 %v1253, %v1256
          %v1267 = vadd.f32 %v1254, %v1257
          %v1268 = vld [vmem:[#allocation12] sm:$0xff]
          %v1269 = vld [vmem:[#allocation12 + $0x8] sm:$0xff]
          %v1270 = vld [vmem:[#allocation12 + $0x10] sm:$0xff]
          %v1271 = vld [vmem:[#allocation12 + $0x18] sm:$0xff]
          %v1272 = vld [vmem:[#allocation12 + $0x20] sm:$0xff]
          %v1273 = vld [vmem:[#allocation12 + $0x28] sm:$0xff]
          %v1274 = vld [vmem:[#allocation12 + $0x30] sm:$0xff]
          %v1275 = vld [vmem:[#allocation12 + $0x38] sm:$0xff]
          %v1276 = vadd.f32 %v1260, %v1268
          %v1277 = vadd.f32 %v1261, %v1269
          %v1278 = vadd.f32 %v1262, %v1270
          %v1279 = vadd.f32 %v1263, %v1271
          %v1280 = vadd.f32 %v1264, %v1272
          %v1281 = vadd.f32 %v1265, %v1273
          %v1282 = vadd.f32 %v1266, %v1274
          %v1283 = vadd.f32 %v1267, %v1275
          %1284 = vst [vmem:[#allocation2] sm:$0xff] %v1276
          %1285 = vst [vmem:[#allocation2 + $0x8] sm:$0xff] %v1277
          %1286 = vst [vmem:[#allocation2 + $0x10] sm:$0xff] %v1278
          %1287 = vst [vmem:[#allocation2 + $0x18] sm:$0xff] %v1279
          %1288 = vst [vmem:[#allocation2 + $0x20] sm:$0xff] %v1280
          %1289 = vst [vmem:[#allocation2 + $0x28] sm:$0xff] %v1281
          %1290 = vst [vmem:[#allocation2 + $0x30] sm:$0xff] %v1282
          %1291 = vst [vmem:[#allocation2 + $0x38] sm:$0xff] %v1283
        $region156: #{tpu_custom_call.1} parent=91 // pred_fallthru
          _
        %v1292 = vld [vmem:[#allocation2] sm:$0xff]
        %v1293 = vld [vmem:[#allocation2 + $0x8] sm:$0xff]
        %v1294 = vld [vmem:[#allocation2 + $0x10] sm:$0xff]
        %v1295 = vld [vmem:[#allocation2 + $0x18] sm:$0xff]
        %v1296 = vld [vmem:[#allocation2 + $0x20] sm:$0xff]
        %v1297 = vld [vmem:[#allocation2 + $0x28] sm:$0xff]
        %v1298 = vld [vmem:[#allocation2 + $0x30] sm:$0xff]
        %v1299 = vld [vmem:[#allocation2 + $0x38] sm:$0xff]
        %v1300 = vld [vmem:[%s1014] sm:$0x3]
        %v1301 = vld [vmem:[%s830] sm:$0x3]
        %v1302 = vadd.f32 %v1292, %v1293
        %1303 = vadd.xlane.f32.xlu0 %v1302
        %v1304 = vpop.xlane.xlu0 %1303
        %v1305 = vadd.f32 %v1294, %v1295
        %1306 = vadd.xlane.f32.xlu0 %v1305
        %v1307 = vpop.xlane.xlu0 %1306
        %v1308 = vadd.f32 %v1296, %v1297
        %1309 = vadd.xlane.f32.xlu0 %v1308
        %v1310 = vpop.xlane.xlu0 %1309
        %v1311 = vadd.f32 %v1298, %v1299
        %1312 = vadd.xlane.f32.xlu0 %v1311
        %v1313 = vpop.xlane.xlu0 %1312
        %v1314 = vrcp.pop 256.0
        %v1315 = vmul.f32 256.0, %v1314
        %v1316 = vsub.f32 1.0, %v1315
        %v1317 = vmul.f32 %v1314, %v1316
        %v1318 = vadd.f32 %v1314, %v1317
        %vm1319 = vweird.f32 %v1314
        %v1320 = vsel %vm1319, %v1314, %v1318
        %v1321 = vmul.f32 %v1304, %v1320
        %v1322 = vmul.f32 %v1307, %v1320
        %v1323 = vmul.f32 %v1310, %v1320
        %v1324 = vmul.f32 %v1313, %v1320
        %v1325 = vsub.f32 %v1292, %v1321
        %v1326 = vsub.f32 %v1293, %v1321
        %v1327 = vsub.f32 %v1294, %v1322
        %v1328 = vsub.f32 %v1295, %v1322
        %v1329 = vsub.f32 %v1296, %v1323
        %v1330 = vsub.f32 %v1297, %v1323
        %v1331 = vsub.f32 %v1298, %v1324
        %v1332 = vsub.f32 %v1299, %v1324
        %v1333 = vmul.f32 %v1325, %v1325
        %v1334 = vmul.f32 %v1326, %v1326
        %v1335 = vmul.f32 %v1327, %v1327
        %v1336 = vmul.f32 %v1328, %v1328
        %v1337 = vmul.f32 %v1329, %v1329
        %v1338 = vmul.f32 %v1330, %v1330
        %v1339 = vmul.f32 %v1331, %v1331
        %v1340 = vmul.f32 %v1332, %v1332
        %v1341 = vadd.f32 %v1333, %v1334
        %1342 = vadd.xlane.f32.xlu0 %v1341
        %v1343 = vpop.xlane.xlu0 %1342
        %v1344 = vadd.f32 %v1335, %v1336
        %1345 = vadd.xlane.f32.xlu0 %v1344
        %v1346 = vpop.xlane.xlu0 %1345
        %v1347 = vadd.f32 %v1337, %v1338
        %1348 = vadd.xlane.f32.xlu0 %v1347
        %v1349 = vpop.xlane.xlu0 %1348
        %v1350 = vadd.f32 %v1339, %v1340
        %1351 = vadd.xlane.f32.xlu0 %v1350
        %v1352 = vpop.xlane.xlu0 %1351
        %v1353 = vmul.f32 %v1343, %v1320
        %v1354 = vmul.f32 %v1346, %v1320
        %v1355 = vmul.f32 %v1349, %v1320
        %v1356 = vmul.f32 %v1352, %v1320
        %v1357 = vadd.f32 %v1353, 1e-05
        %v1358 = vadd.f32 %v1354, 1e-05
        %v1359 = vadd.f32 %v1355, 1e-05
        %v1360 = vadd.f32 %v1356, 1e-05
        %v1361 = vrsqrt.pop %v1357
        %v1362 = vmul.f32 %v1361, %v1357
        %v1363 = vmul.f32 %v1362, %v1361
        %v1364 = vmul.f32 0.5, %v1363
        %v1365 = vsub.f32 1.5, %v1364
        %v1366 = vmul.f32 %v1361, %v1365
        %vm1367 = vweird.f32 %v1357
        %vm1368 = vweird.f32 %v1361
        %vm1369 = vmor %vm1367, %vm1368
        %v1370 = vsel %vm1369, %v1361, %v1366
        %v1371 = vrsqrt.pop %v1358
        %v1372 = vmul.f32 %v1371, %v1358
        %v1373 = vmul.f32 %v1372, %v1371
        %v1374 = vmul.f32 0.5, %v1373
        %v1375 = vsub.f32 1.5, %v1374
        %v1376 = vmul.f32 %v1371, %v1375
        %vm1377 = vweird.f32 %v1358
        %vm1378 = vweird.f32 %v1371
        %vm1379 = vmor %vm1377, %vm1378
        %v1380 = vsel %vm1379, %v1371, %v1376
        %v1381 = vrsqrt.pop %v1359
        %v1382 = vmul.f32 %v1381, %v1359
        %v1383 = vmul.f32 %v1382, %v1381
        %v1384 = vmul.f32 0.5, %v1383
        %v1385 = vsub.f32 1.5, %v1384
        %v1386 = vmul.f32 %v1381, %v1385
        %vm1387 = vweird.f32 %v1359
        %vm1388 = vweird.f32 %v1381
        %vm1389 = vmor %vm1387, %vm1388
        %v1390 = vsel %vm1389, %v1381, %v1386
        %v1391 = vrsqrt.pop %v1360
        %v1392 = vmul.f32 %v1391, %v1360
        %v1393 = vmul.f32 %v1392, %v1391
        %v1394 = vmul.f32 0.5, %v1393
        %v1395 = vsub.f32 1.5, %v1394
        %v1396 = vmul.f32 %v1391, %v1395
        %vm1397 = vweird.f32 %v1360
        %vm1398 = vweird.f32 %v1391
        %vm1399 = vmor %vm1397, %vm1398
        %v1400 = vsel %vm1399, %v1391, %v1396
        %v1401 = vmul.f32 %v1325, %v1370
        %v1402 = vmul.f32 %v1326, %v1370
        %v1403 = vmul.f32 %v1327, %v1380
        %v1404 = vmul.f32 %v1328, %v1380
        %v1405 = vmul.f32 %v1329, %v1390
        %v1406 = vmul.f32 %v1330, %v1390
        %v1407 = vmul.f32 %v1331, %v1400
        %v1408 = vmul.f32 %v1332, %v1400
        %v1410 = vperm.slane %v1300, 0
        %v1411 = vperm.slane %v1300, 1
        %v1414 = vmul.f32 %v1401, %v1410
        %v1415 = vmul.f32 %v1402, %v1411
        %v1416 = vmul.f32 %v1403, %v1410
        %v1417 = vmul.f32 %v1404, %v1411
        %v1418 = vmul.f32 %v1405, %v1410
        %v1419 = vmul.f32 %v1406, %v1411
        %v1420 = vmul.f32 %v1407, %v1410
        %v1421 = vmul.f32 %v1408, %v1411
        %v1423 = vperm.slane %v1301, 0
        %v1424 = vperm.slane %v1301, 1
        %v1427 = vadd.f32 %v1414, %v1423
        %v1428 = vadd.f32 %v1415, %v1424
        %v1429 = vadd.f32 %v1416, %v1423
        %v1430 = vadd.f32 %v1417, %v1424
        %v1431 = vadd.f32 %v1418, %v1423
        %v1432 = vadd.f32 %v1419, %v1424
        %v1433 = vadd.f32 %v1420, %v1423
        %v1434 = vadd.f32 %v1421, %v1424
        %v1435 = vpack.c.bf16 %v1429, %v1427
        %v1436 = vpack.c.bf16 %v1430, %v1428
        %v1437 = vpack.c.bf16 %v1433, %v1431
        %v1438 = vpack.c.bf16 %v1434, %v1432
        %v1439 = vld [vmem:[%s840] sm:$0xff]
        %v1440 = vld [vmem:[%s840 + $0x8] sm:$0xff]
        %v1441 = vld [vmem:[%s840 + $0x10] sm:$0xff]
        %v1442 = vld [vmem:[%s840 + $0x18] sm:$0xff]
        %v1443 = vld [vmem:[%s840 + $0x20] sm:$0xff]
        %v1444 = vld [vmem:[%s840 + $0x28] sm:$0xff]
        %v1445 = vld [vmem:[%s840 + $0x30] sm:$0xff]
        %v1446 = vld [vmem:[%s840 + $0x38] sm:$0xff]
        %v1447 = vld [vmem:[%s840 + $0x40] sm:$0xff]
        %v1448 = vld [vmem:[%s840 + $0x48] sm:$0xff]
        %v1449 = vld [vmem:[%s840 + $0x50] sm:$0xff]
        %v1450 = vld [vmem:[%s840 + $0x58] sm:$0xff]
        %v1451 = vld [vmem:[%s840 + $0x60] sm:$0xff]
        %v1452 = vld [vmem:[%s840 + $0x68] sm:$0xff]
        %v1453 = vld [vmem:[%s840 + $0x70] sm:$0xff]
        %v1454 = vld [vmem:[%s840 + $0x78] sm:$0xff]
        %v1455 = vld [vmem:[%s840 + $0x80] sm:$0xff]
        %v1456 = vld [vmem:[%s840 + $0x88] sm:$0xff]
        %v1457 = vld [vmem:[%s840 + $0x90] sm:$0xff]
        %v1458 = vld [vmem:[%s840 + $0x98] sm:$0xff]
        %v1459 = vld [vmem:[%s840 + $0xa0] sm:$0xff]
        %v1460 = vld [vmem:[%s840 + $0xa8] sm:$0xff]
        %v1461 = vld [vmem:[%s840 + $0xb0] sm:$0xff]
        %v1462 = vld [vmem:[%s840 + $0xb8] sm:$0xff]
        %v1463 = vld [vmem:[%s840 + $0xc0] sm:$0xff]
        %v1464 = vld [vmem:[%s840 + $0xc8] sm:$0xff]
        %v1465 = vld [vmem:[%s840 + $0xd0] sm:$0xff]
        %v1466 = vld [vmem:[%s840 + $0xd8] sm:$0xff]
        %v1467 = vld [vmem:[%s840 + $0xe0] sm:$0xff]
        %v1468 = vld [vmem:[%s840 + $0xe8] sm:$0xff]
        %v1469 = vld [vmem:[%s840 + $0xf0] sm:$0xff]
        %v1470 = vld [vmem:[%s840 + $0xf8] sm:$0xff]
        %v1471 = vld [vmem:[%s840 + $0x100] sm:$0xff]
        %v1472 = vld [vmem:[%s840 + $0x108] sm:$0xff]
        %v1473 = vld [vmem:[%s840 + $0x110] sm:$0xff]
        %v1474 = vld [vmem:[%s840 + $0x118] sm:$0xff]
        %v1475 = vld [vmem:[%s840 + $0x120] sm:$0xff]
        %v1476 = vld [vmem:[%s840 + $0x128] sm:$0xff]
        %v1477 = vld [vmem:[%s840 + $0x130] sm:$0xff]
        %v1478 = vld [vmem:[%s840 + $0x138] sm:$0xff]
        %v1479 = vld [vmem:[%s840 + $0x140] sm:$0xff]
        %v1480 = vld [vmem:[%s840 + $0x148] sm:$0xff]
        %v1481 = vld [vmem:[%s840 + $0x150] sm:$0xff]
        %v1482 = vld [vmem:[%s840 + $0x158] sm:$0xff]
        %v1483 = vld [vmem:[%s840 + $0x160] sm:$0xff]
        %v1484 = vld [vmem:[%s840 + $0x168] sm:$0xff]
        %v1485 = vld [vmem:[%s840 + $0x170] sm:$0xff]
        %v1486 = vld [vmem:[%s840 + $0x178] sm:$0xff]
        %v1487 = vld [vmem:[%s840 + $0x180] sm:$0xff]
        %v1488 = vld [vmem:[%s840 + $0x188] sm:$0xff]
        %v1489 = vld [vmem:[%s840 + $0x190] sm:$0xff]
        %v1490 = vld [vmem:[%s840 + $0x198] sm:$0xff]
        %v1491 = vld [vmem:[%s840 + $0x1a0] sm:$0xff]
        %v1492 = vld [vmem:[%s840 + $0x1a8] sm:$0xff]
        %v1493 = vld [vmem:[%s840 + $0x1b0] sm:$0xff]
        %v1494 = vld [vmem:[%s840 + $0x1b8] sm:$0xff]
        %v1495 = vld [vmem:[%s840 + $0x1c0] sm:$0xff]
        %v1496 = vld [vmem:[%s840 + $0x1c8] sm:$0xff]
        %v1497 = vld [vmem:[%s840 + $0x1d0] sm:$0xff]
        %v1498 = vld [vmem:[%s840 + $0x1d8] sm:$0xff]
        %v1499 = vld [vmem:[%s840 + $0x1e0] sm:$0xff]
        %v1500 = vld [vmem:[%s840 + $0x1e8] sm:$0xff]
        %v1501 = vld [vmem:[%s840 + $0x1f0] sm:$0xff]
        %v1502 = vld [vmem:[%s840 + $0x1f8] sm:$0xff]
        %v1503 = vld [vmem:[%s840 + $0x200] sm:$0xff]
        %v1504 = vld [vmem:[%s840 + $0x208] sm:$0xff]
        %v1505 = vld [vmem:[%s840 + $0x210] sm:$0xff]
        %v1506 = vld [vmem:[%s840 + $0x218] sm:$0xff]
        %v1507 = vld [vmem:[%s840 + $0x220] sm:$0xff]
        %v1508 = vld [vmem:[%s840 + $0x228] sm:$0xff]
        %v1509 = vld [vmem:[%s840 + $0x230] sm:$0xff]
        %v1510 = vld [vmem:[%s840 + $0x238] sm:$0xff]
        %v1511 = vld [vmem:[%s840 + $0x240] sm:$0xff]
        %v1512 = vld [vmem:[%s840 + $0x248] sm:$0xff]
        %v1513 = vld [vmem:[%s840 + $0x250] sm:$0xff]
        %v1514 = vld [vmem:[%s840 + $0x258] sm:$0xff]
        %v1515 = vld [vmem:[%s840 + $0x260] sm:$0xff]
        %v1516 = vld [vmem:[%s840 + $0x268] sm:$0xff]
        %v1517 = vld [vmem:[%s840 + $0x270] sm:$0xff]
        %v1518 = vld [vmem:[%s840 + $0x278] sm:$0xff]
        %v1519 = vld [vmem:[%s840 + $0x280] sm:$0xff]
        %v1520 = vld [vmem:[%s840 + $0x288] sm:$0xff]
        %v1521 = vld [vmem:[%s840 + $0x290] sm:$0xff]
        %v1522 = vld [vmem:[%s840 + $0x298] sm:$0xff]
        %v1523 = vld [vmem:[%s840 + $0x2a0] sm:$0xff]
        %v1524 = vld [vmem:[%s840 + $0x2a8] sm:$0xff]
        %v1525 = vld [vmem:[%s840 + $0x2b0] sm:$0xff]
        %v1526 = vld [vmem:[%s840 + $0x2b8] sm:$0xff]
        %v1527 = vld [vmem:[%s840 + $0x2c0] sm:$0xff]
        %v1528 = vld [vmem:[%s840 + $0x2c8] sm:$0xff]
        %v1529 = vld [vmem:[%s840 + $0x2d0] sm:$0xff]
        %v1530 = vld [vmem:[%s840 + $0x2d8] sm:$0xff]
        %v1531 = vld [vmem:[%s840 + $0x2e0] sm:$0xff]
        %v1532 = vld [vmem:[%s840 + $0x2e8] sm:$0xff]
        %v1533 = vld [vmem:[%s840 + $0x2f0] sm:$0xff]
        %v1534 = vld [vmem:[%s840 + $0x2f8] sm:$0xff]
        %v1631 = vunpack.c.l.b16 %v1439
        %v1632 = vunpack.c.h.b16 %v1439
        %v1633 = vunpack.c.l.b16 %v1440
        %v1634 = vunpack.c.h.b16 %v1440
        %v1635 = vunpack.c.l.b16 %v1441
        %v1636 = vunpack.c.h.b16 %v1441
        %v1637 = vunpack.c.l.b16 %v1442
        %v1638 = vunpack.c.h.b16 %v1442
        %v1639 = vunpack.c.l.b16 %v1443
        %v1640 = vunpack.c.h.b16 %v1443
        %v1641 = vunpack.c.l.b16 %v1444
        %v1642 = vunpack.c.h.b16 %v1444
        %v1643 = vunpack.c.l.b16 %v1445
        %v1644 = vunpack.c.h.b16 %v1445
        %v1645 = vunpack.c.l.b16 %v1446
        %v1646 = vunpack.c.h.b16 %v1446
        %v1647 = vunpack.c.l.b16 %v1447
        %v1648 = vunpack.c.h.b16 %v1447
        %v1649 = vunpack.c.l.b16 %v1448
        %v1650 = vunpack.c.h.b16 %v1448
        %v1651 = vunpack.c.l.b16 %v1449
        %v1652 = vunpack.c.h.b16 %v1449
        %v1653 = vunpack.c.l.b16 %v1450
        %v1654 = vunpack.c.h.b16 %v1450
        %v1655 = vunpack.c.l.b16 %v1451
        %v1656 = vunpack.c.h.b16 %v1451
        %v1657 = vunpack.c.l.b16 %v1452
        %v1658 = vunpack.c.h.b16 %v1452
        %v1659 = vunpack.c.l.b16 %v1453
        %v1660 = vunpack.c.h.b16 %v1453
        %v1661 = vunpack.c.l.b16 %v1454
        %v1662 = vunpack.c.h.b16 %v1454
        %v1663 = vunpack.c.l.b16 %v1455
        %v1664 = vunpack.c.h.b16 %v1455
        %v1665 = vunpack.c.l.b16 %v1456
        %v1666 = vunpack.c.h.b16 %v1456
        %v1667 = vunpack.c.l.b16 %v1457
        %v1668 = vunpack.c.h.b16 %v1457
        %v1669 = vunpack.c.l.b16 %v1458
        %v1670 = vunpack.c.h.b16 %v1458
        %v1671 = vunpack.c.l.b16 %v1459
        %v1672 = vunpack.c.h.b16 %v1459
        %v1673 = vunpack.c.l.b16 %v1460
        %v1674 = vunpack.c.h.b16 %v1460
        %v1675 = vunpack.c.l.b16 %v1461
        %v1676 = vunpack.c.h.b16 %v1461
        %v1677 = vunpack.c.l.b16 %v1462
        %v1678 = vunpack.c.h.b16 %v1462
        %v1679 = vunpack.c.l.b16 %v1463
        %v1680 = vunpack.c.h.b16 %v1463
        %v1681 = vunpack.c.l.b16 %v1464
        %v1682 = vunpack.c.h.b16 %v1464
        %v1683 = vunpack.c.l.b16 %v1465
        %v1684 = vunpack.c.h.b16 %v1465
        %v1685 = vunpack.c.l.b16 %v1466
        %v1686 = vunpack.c.h.b16 %v1466
        %v1687 = vunpack.c.l.b16 %v1467
        %v1688 = vunpack.c.h.b16 %v1467
        %v1689 = vunpack.c.l.b16 %v1468
        %v1690 = vunpack.c.h.b16 %v1468
        %v1691 = vunpack.c.l.b16 %v1469
        %v1692 = vunpack.c.h.b16 %v1469
        %v1693 = vunpack.c.l.b16 %v1470
        %v1694 = vunpack.c.h.b16 %v1470
        %v1695 = vunpack.c.l.b16 %v1471
        %v1696 = vunpack.c.h.b16 %v1471
        %v1697 = vunpack.c.l.b16 %v1472
        %v1698 = vunpack.c.h.b16 %v1472
        %v1699 = vunpack.c.l.b16 %v1473
        %v1700 = vunpack.c.h.b16 %v1473
        %v1701 = vunpack.c.l.b16 %v1474
        %v1702 = vunpack.c.h.b16 %v1474
        %v1703 = vunpack.c.l.b16 %v1475
        %v1704 = vunpack.c.h.b16 %v1475
        %v1705 = vunpack.c.l.b16 %v1476
        %v1706 = vunpack.c.h.b16 %v1476
        %v1707 = vunpack.c.l.b16 %v1477
        %v1708 = vunpack.c.h.b16 %v1477
        %v1709 = vunpack.c.l.b16 %v1478
        %v1710 = vunpack.c.h.b16 %v1478
        %v1711 = vunpack.c.l.b16 %v1479
        %v1712 = vunpack.c.h.b16 %v1479
        %v1713 = vunpack.c.l.b16 %v1480
        %v1714 = vunpack.c.h.b16 %v1480
        %v1715 = vunpack.c.l.b16 %v1481
        %v1716 = vunpack.c.h.b16 %v1481
        %v1717 = vunpack.c.l.b16 %v1482
        %v1718 = vunpack.c.h.b16 %v1482
        %v1719 = vunpack.c.l.b16 %v1483
        %v1720 = vunpack.c.h.b16 %v1483
        %v1721 = vunpack.c.l.b16 %v1484
        %v1722 = vunpack.c.h.b16 %v1484
        %v1723 = vunpack.c.l.b16 %v1485
        %v1724 = vunpack.c.h.b16 %v1485
        %v1725 = vunpack.c.l.b16 %v1486
        %v1726 = vunpack.c.h.b16 %v1486
        %v1727 = vunpack.c.l.b16 %v1487
        %v1728 = vunpack.c.h.b16 %v1487
        %v1729 = vunpack.c.l.b16 %v1488
        %v1730 = vunpack.c.h.b16 %v1488
        %v1731 = vunpack.c.l.b16 %v1489
        %v1732 = vunpack.c.h.b16 %v1489
        %v1733 = vunpack.c.l.b16 %v1490
        %v1734 = vunpack.c.h.b16 %v1490
        %v1735 = vunpack.c.l.b16 %v1491
        %v1736 = vunpack.c.h.b16 %v1491
        %v1737 = vunpack.c.l.b16 %v1492
        %v1738 = vunpack.c.h.b16 %v1492
        %v1739 = vunpack.c.l.b16 %v1493
        %v1740 = vunpack.c.h.b16 %v1493
        %v1741 = vunpack.c.l.b16 %v1494
        %v1742 = vunpack.c.h.b16 %v1494
        %v1743 = vunpack.c.l.b16 %v1495
        %v1744 = vunpack.c.h.b16 %v1495
        %v1745 = vunpack.c.l.b16 %v1496
        %v1746 = vunpack.c.h.b16 %v1496
        %v1747 = vunpack.c.l.b16 %v1497
        %v1748 = vunpack.c.h.b16 %v1497
        %v1749 = vunpack.c.l.b16 %v1498
        %v1750 = vunpack.c.h.b16 %v1498
        %v1751 = vunpack.c.l.b16 %v1499
        %v1752 = vunpack.c.h.b16 %v1499
        %v1753 = vunpack.c.l.b16 %v1500
        %v1754 = vunpack.c.h.b16 %v1500
        %v1755 = vunpack.c.l.b16 %v1501
        %v1756 = vunpack.c.h.b16 %v1501
        %v1757 = vunpack.c.l.b16 %v1502
        %v1758 = vunpack.c.h.b16 %v1502
        %v1759 = vunpack.c.l.b16 %v1503
        %v1760 = vunpack.c.h.b16 %v1503
        %v1761 = vunpack.c.l.b16 %v1504
        %v1762 = vunpack.c.h.b16 %v1504
        %v1763 = vunpack.c.l.b16 %v1505
        %v1764 = vunpack.c.h.b16 %v1505
        %v1765 = vunpack.c.l.b16 %v1506
        %v1766 = vunpack.c.h.b16 %v1506
        %v1767 = vunpack.c.l.b16 %v1507
        %v1768 = vunpack.c.h.b16 %v1507
        %v1769 = vunpack.c.l.b16 %v1508
        %v1770 = vunpack.c.h.b16 %v1508
        %v1771 = vunpack.c.l.b16 %v1509
        %v1772 = vunpack.c.h.b16 %v1509
        %v1773 = vunpack.c.l.b16 %v1510
        %v1774 = vunpack.c.h.b16 %v1510
        %v1775 = vunpack.c.l.b16 %v1511
        %v1776 = vunpack.c.h.b16 %v1511
        %v1777 = vunpack.c.l.b16 %v1512
        %v1778 = vunpack.c.h.b16 %v1512
        %v1779 = vunpack.c.l.b16 %v1513
        %v1780 = vunpack.c.h.b16 %v1513
        %v1781 = vunpack.c.l.b16 %v1514
        %v1782 = vunpack.c.h.b16 %v1514
        %v1783 = vunpack.c.l.b16 %v1515
        %v1784 = vunpack.c.h.b16 %v1515
        %v1785 = vunpack.c.l.b16 %v1516
        %v1786 = vunpack.c.h.b16 %v1516
        %v1787 = vunpack.c.l.b16 %v1517
        %v1788 = vunpack.c.h.b16 %v1517
        %v1789 = vunpack.c.l.b16 %v1518
        %v1790 = vunpack.c.h.b16 %v1518
        %v1791 = vunpack.c.l.b16 %v1519
        %v1792 = vunpack.c.h.b16 %v1519
        %v1793 = vunpack.c.l.b16 %v1520
        %v1794 = vunpack.c.h.b16 %v1520
        %v1795 = vunpack.c.l.b16 %v1521
        %v1796 = vunpack.c.h.b16 %v1521
        %v1797 = vunpack.c.l.b16 %v1522
        %v1798 = vunpack.c.h.b16 %v1522
        %v1799 = vunpack.c.l.b16 %v1523
        %v1800 = vunpack.c.h.b16 %v1523
        %v1801 = vunpack.c.l.b16 %v1524
        %v1802 = vunpack.c.h.b16 %v1524
        %v1803 = vunpack.c.l.b16 %v1525
        %v1804 = vunpack.c.h.b16 %v1525
        %v1805 = vunpack.c.l.b16 %v1526
        %v1806 = vunpack.c.h.b16 %v1526
        %v1807 = vunpack.c.l.b16 %v1527
        %v1808 = vunpack.c.h.b16 %v1527
        %v1809 = vunpack.c.l.b16 %v1528
        %v1810 = vunpack.c.h.b16 %v1528
        %v1811 = vunpack.c.l.b16 %v1529
        %v1812 = vunpack.c.h.b16 %v1529
        %v1813 = vunpack.c.l.b16 %v1530
        %v1814 = vunpack.c.h.b16 %v1530
        %v1815 = vunpack.c.l.b16 %v1531
        %v1816 = vunpack.c.h.b16 %v1531
        %v1817 = vunpack.c.l.b16 %v1532
        %v1818 = vunpack.c.h.b16 %v1532
        %v1819 = vunpack.c.l.b16 %v1533
        %v1820 = vunpack.c.h.b16 %v1533
        %v1821 = vunpack.c.l.b16 %v1534
        %v1822 = vunpack.c.h.b16 %v1534
        %v1823 = vpack.c.b16 %v1637, %v1631
        %v1824 = vpack.c.b16 %v1638, %v1632
        %v1825 = vpack.c.b16 %v1639, %v1633
        %v1826 = vpack.c.b16 %v1640, %v1634
        %v1827 = vpack.c.b16 %v1641, %v1635
        %v1828 = vpack.c.b16 %v1642, %v1636
        %v1829 = vpack.c.b16 %v1649, %v1643
        %v1830 = vpack.c.b16 %v1650, %v1644
        %v1831 = vpack.c.b16 %v1651, %v1645
        %v1832 = vpack.c.b16 %v1652, %v1646
        %v1833 = vpack.c.b16 %v1653, %v1647
        %v1834 = vpack.c.b16 %v1654, %v1648
        %v1835 = vpack.c.b16 %v1661, %v1655
        %v1836 = vpack.c.b16 %v1662, %v1656
        %v1837 = vpack.c.b16 %v1663, %v1657
        %v1838 = vpack.c.b16 %v1664, %v1658
        %v1839 = vpack.c.b16 %v1665, %v1659
        %v1840 = vpack.c.b16 %v1666, %v1660
        %v1841 = vpack.c.b16 %v1673, %v1667
        %v1842 = vpack.c.b16 %v1674, %v1668
        %v1843 = vpack.c.b16 %v1675, %v1669
        %v1844 = vpack.c.b16 %v1676, %v1670
        %v1845 = vpack.c.b16 %v1677, %v1671
        %v1846 = vpack.c.b16 %v1678, %v1672
        %v1847 = vpack.c.b16 %v1685, %v1679
        %v1848 = vpack.c.b16 %v1686, %v1680
        %v1849 = vpack.c.b16 %v1687, %v1681
        %v1850 = vpack.c.b16 %v1688, %v1682
        %v1851 = vpack.c.b16 %v1689, %v1683
        %v1852 = vpack.c.b16 %v1690, %v1684
        %v1853 = vpack.c.b16 %v1697, %v1691
        %v1854 = vpack.c.b16 %v1698, %v1692
        %v1855 = vpack.c.b16 %v1699, %v1693
        %v1856 = vpack.c.b16 %v1700, %v1694
        %v1857 = vpack.c.b16 %v1701, %v1695
        %v1858 = vpack.c.b16 %v1702, %v1696
        %v1859 = vpack.c.b16 %v1709, %v1703
        %v1860 = vpack.c.b16 %v1710, %v1704
        %v1861 = vpack.c.b16 %v1711, %v1705
        %v1862 = vpack.c.b16 %v1712, %v1706
        %v1863 = vpack.c.b16 %v1713, %v1707
        %v1864 = vpack.c.b16 %v1714, %v1708
        %v1865 = vpack.c.b16 %v1721, %v1715
        %v1866 = vpack.c.b16 %v1722, %v1716
        %v1867 = vpack.c.b16 %v1723, %v1717
        %v1868 = vpack.c.b16 %v1724, %v1718
        %v1869 = vpack.c.b16 %v1725, %v1719
        %v1870 = vpack.c.b16 %v1726, %v1720
        %v1871 = vpack.c.b16 %v1733, %v1727
        %v1872 = vpack.c.b16 %v1734, %v1728
        %v1873 = vpack.c.b16 %v1735, %v1729
        %v1874 = vpack.c.b16 %v1736, %v1730
        %v1875 = vpack.c.b16 %v1737, %v1731
        %v1876 = vpack.c.b16 %v1738, %v1732
        %v1877 = vpack.c.b16 %v1745, %v1739
        %v1878 = vpack.c.b16 %v1746, %v1740
        %v1879 = vpack.c.b16 %v1747, %v1741
        %v1880 = vpack.c.b16 %v1748, %v1742
        %v1881 = vpack.c.b16 %v1749, %v1743
        %v1882 = vpack.c.b16 %v1750, %v1744
        %v1883 = vpack.c.b16 %v1757, %v1751
        %v1884 = vpack.c.b16 %v1758, %v1752
        %v1885 = vpack.c.b16 %v1759, %v1753
        %v1886 = vpack.c.b16 %v1760, %v1754
        %v1887 = vpack.c.b16 %v1761, %v1755
        %v1888 = vpack.c.b16 %v1762, %v1756
        %v1889 = vpack.c.b16 %v1769, %v1763
        %v1890 = vpack.c.b16 %v1770, %v1764
        %v1891 = vpack.c.b16 %v1771, %v1765
        %v1892 = vpack.c.b16 %v1772, %v1766
        %v1893 = vpack.c.b16 %v1773, %v1767
        %v1894 = vpack.c.b16 %v1774, %v1768
        %v1895 = vpack.c.b16 %v1781, %v1775
        %v1896 = vpack.c.b16 %v1782, %v1776
        %v1897 = vpack.c.b16 %v1783, %v1777
        %v1898 = vpack.c.b16 %v1784, %v1778
        %v1899 = vpack.c.b16 %v1785, %v1779
        %v1900 = vpack.c.b16 %v1786, %v1780
        %v1901 = vpack.c.b16 %v1793, %v1787
        %v1902 = vpack.c.b16 %v1794, %v1788
        %v1903 = vpack.c.b16 %v1795, %v1789
        %v1904 = vpack.c.b16 %v1796, %v1790
        %v1905 = vpack.c.b16 %v1797, %v1791
        %v1906 = vpack.c.b16 %v1798, %v1792
        %v1907 = vpack.c.b16 %v1805, %v1799
        %v1908 = vpack.c.b16 %v1806, %v1800
        %v1909 = vpack.c.b16 %v1807, %v1801
        %v1910 = vpack.c.b16 %v1808, %v1802
        %v1911 = vpack.c.b16 %v1809, %v1803
        %v1912 = vpack.c.b16 %v1810, %v1804
        %v1913 = vpack.c.b16 %v1817, %v1811
        %v1914 = vpack.c.b16 %v1818, %v1812
        %v1915 = vpack.c.b16 %v1819, %v1813
        %v1916 = vpack.c.b16 %v1820, %v1814
        %v1917 = vpack.c.b16 %v1821, %v1815
        %v1918 = vpack.c.b16 %v1822, %v1816
        %2015 = vmatpush.bf16.msra.mxu0 %v1865
        %2016 = vmatpush.bf16.msra.mxu0 %v1859
        %2017 = vmatpush.bf16.msra.mxu0 %v1853
        %2018 = vmatpush.bf16.msra.mxu0 %v1847
        %2019 = vmatpush.bf16.msra.mxu0 %v1841
        %2020 = vmatpush.bf16.msra.mxu0 %v1835
        %2021 = vmatpush.bf16.msra.mxu0 %v1829
        %2022 = vmatpush.bf16.msra.mxu0 %v1823
        %2023 = vmatmul.bf16.gmra.mxu0 %v1435
        %v2024 = vpop.f32.mrf.mxu0
        %v2025 = vadd.f32 0.0, %v2024
        %v2026 = vpop.f32.mrf.mxu0
        %v2027 = vadd.f32 0.0, %v2026
        %2028 = vmatmul.bf16.gmra.mxu0 %v1437
        %v2029 = vpop.f32.mrf.mxu0
        %v2030 = vadd.f32 0.0, %v2029
        %v2031 = vpop.f32.mrf.mxu0
        %v2032 = vadd.f32 0.0, %v2031
        %2033 = vdwg.mxu0
        %2034 = vmatpush.bf16.msra.mxu0 %v1913
        %2035 = vmatpush.bf16.msra.mxu0 %v1907
        %2036 = vmatpush.bf16.msra.mxu0 %v1901
        %2037 = vmatpush.bf16.msra.mxu0 %v1895
        %2038 = vmatpush.bf16.msra.mxu0 %v1889
        %2039 = vmatpush.bf16.msra.mxu0 %v1883
        %2040 = vmatpush.bf16.msra.mxu0 %v1877
        %2041 = vmatpush.bf16.msra.mxu0 %v1871
        %2042 = vmatmul.bf16.gmra.mxu0 %v1436
        %v2043 = vpop.f32.mrf.mxu0
        %v2044 = vadd.f32 %v2025, %v2043
        %v2045 = vpop.f32.mrf.mxu0
        %v2046 = vadd.f32 %v2027, %v2045
        %2047 = vmatmul.bf16.gmra.mxu0 %v1438
        %v2048 = vpop.f32.mrf.mxu0
        %v2049 = vadd.f32 %v2030, %v2048
        %v2050 = vpop.f32.mrf.mxu0
        %v2051 = vadd.f32 %v2032, %v2050
        %2052 = vdwg.mxu0
        %2053 = vmatpush.bf16.msra.mxu0 %v1866
        %2054 = vmatpush.bf16.msra.mxu0 %v1860
        %2055 = vmatpush.bf16.msra.mxu0 %v1854
        %2056 = vmatpush.bf16.msra.mxu0 %v1848
        %2057 = vmatpush.bf16.msra.mxu0 %v1842
        %2058 = vmatpush.bf16.msra.mxu0 %v1836
        %2059 = vmatpush.bf16.msra.mxu0 %v1830
        %2060 = vmatpush.bf16.msra.mxu0 %v1824
        %2061 = vmatmul.bf16.gmra.mxu0 %v1435
        %v2062 = vpop.f32.mrf.mxu0
        %v2063 = vadd.f32 0.0, %v2062
        %v2064 = vpop.f32.mrf.mxu0
        %v2065 = vadd.f32 0.0, %v2064
        %2066 = vmatmul.bf16.gmra.mxu0 %v1437
        %v2067 = vpop.f32.mrf.mxu0
        %v2068 = vadd.f32 0.0, %v2067
        %v2069 = vpop.f32.mrf.mxu0
        %v2070 = vadd.f32 0.0, %v2069
        %2071 = vdwg.mxu0
        %2072 = vmatpush.bf16.msra.mxu0 %v1914
        %2073 = vmatpush.bf16.msra.mxu0 %v1908
        %2074 = vmatpush.bf16.msra.mxu0 %v1902
        %2075 = vmatpush.bf16.msra.mxu0 %v1896
        %2076 = vmatpush.bf16.msra.mxu0 %v1890
        %2077 = vmatpush.bf16.msra.mxu0 %v1884
        %2078 = vmatpush.bf16.msra.mxu0 %v1878
        %2079 = vmatpush.bf16.msra.mxu0 %v1872
        %2080 = vmatmul.bf16.gmra.mxu0 %v1436
        %v2081 = vpop.f32.mrf.mxu0
        %v2082 = vadd.f32 %v2063, %v2081
        %v2083 = vpop.f32.mrf.mxu0
        %v2084 = vadd.f32 %v2065, %v2083
        %2085 = vmatmul.bf16.gmra.mxu0 %v1438
        %v2086 = vpop.f32.mrf.mxu0
        %v2087 = vadd.f32 %v2068, %v2086
        %v2088 = vpop.f32.mrf.mxu0
        %v2089 = vadd.f32 %v2070, %v2088
        %2090 = vdwg.mxu0
        %2091 = vmatpush.bf16.msra.mxu0 %v1867
        %2092 = vmatpush.bf16.msra.mxu0 %v1861
        %2093 = vmatpush.bf16.msra.mxu0 %v1855
        %2094 = vmatpush.bf16.msra.mxu0 %v1849
        %2095 = vmatpush.bf16.msra.mxu0 %v1843
        %2096 = vmatpush.bf16.msra.mxu0 %v1837
        %2097 = vmatpush.bf16.msra.mxu0 %v1831
        %2098 = vmatpush.bf16.msra.mxu0 %v1825
        %2099 = vmatmul.bf16.gmra.mxu0 %v1435
        %v2100 = vpop.f32.mrf.mxu0
        %v2101 = vadd.f32 0.0, %v2100
        %v2102 = vpop.f32.mrf.mxu0
        %v2103 = vadd.f32 0.0, %v2102
        %2104 = vmatmul.bf16.gmra.mxu0 %v1437
        %v2105 = vpop.f32.mrf.mxu0
        %v2106 = vadd.f32 0.0, %v2105
        %v2107 = vpop.f32.mrf.mxu0
        %v2108 = vadd.f32 0.0, %v2107
        %2109 = vdwg.mxu0
        %2110 = vmatpush.bf16.msra.mxu0 %v1915
        %2111 = vmatpush.bf16.msra.mxu0 %v1909
        %2112 = vmatpush.bf16.msra.mxu0 %v1903
        %2113 = vmatpush.bf16.msra.mxu0 %v1897
        %2114 = vmatpush.bf16.msra.mxu0 %v1891
        %2115 = vmatpush.bf16.msra.mxu0 %v1885
        %2116 = vmatpush.bf16.msra.mxu0 %v1879
        %2117 = vmatpush.bf16.msra.mxu0 %v1873
        %2118 = vmatmul.bf16.gmra.mxu0 %v1436
        %v2119 = vpop.f32.mrf.mxu0
        %v2120 = vadd.f32 %v2101, %v2119
        %v2121 = vpop.f32.mrf.mxu0
        %v2122 = vadd.f32 %v2103, %v2121
        %2123 = vmatmul.bf16.gmra.mxu0 %v1438
        %v2124 = vpop.f32.mrf.mxu0
        %v2125 = vadd.f32 %v2106, %v2124
        %v2126 = vpop.f32.mrf.mxu0
        %v2127 = vadd.f32 %v2108, %v2126
        %2128 = vdwg.mxu0
        %2129 = vmatpush.bf16.msra.mxu0 %v1868
        %2130 = vmatpush.bf16.msra.mxu0 %v1862
        %2131 = vmatpush.bf16.msra.mxu0 %v1856
        %2132 = vmatpush.bf16.msra.mxu0 %v1850
        %2133 = vmatpush.bf16.msra.mxu0 %v1844
        %2134 = vmatpush.bf16.msra.mxu0 %v1838
        %2135 = vmatpush.bf16.msra.mxu0 %v1832
        %2136 = vmatpush.bf16.msra.mxu0 %v1826
        %2137 = vmatmul.bf16.gmra.mxu0 %v1435
        %v2138 = vpop.f32.mrf.mxu0
        %v2139 = vadd.f32 0.0, %v2138
        %v2140 = vpop.f32.mrf.mxu0
        %v2141 = vadd.f32 0.0, %v2140
        %2142 = vmatmul.bf16.gmra.mxu0 %v1437
        %v2143 = vpop.f32.mrf.mxu0
        %v2144 = vadd.f32 0.0, %v2143
        %v2145 = vpop.f32.mrf.mxu0
        %v2146 = vadd.f32 0.0, %v2145
        %2147 = vdwg.mxu0
        %2148 = vmatpush.bf16.msra.mxu0 %v1916
        %2149 = vmatpush.bf16.msra.mxu0 %v1910
        %2150 = vmatpush.bf16.msra.mxu0 %v1904
        %2151 = vmatpush.bf16.msra.mxu0 %v1898
        %2152 = vmatpush.bf16.msra.mxu0 %v1892
        %2153 = vmatpush.bf16.msra.mxu0 %v1886
        %2154 = vmatpush.bf16.msra.mxu0 %v1880
        %2155 = vmatpush.bf16.msra.mxu0 %v1874
        %2156 = vmatmul.bf16.gmra.mxu0 %v1436
        %v2157 = vpop.f32.mrf.mxu0
        %v2158 = vadd.f32 %v2139, %v2157
        %v2159 = vpop.f32.mrf.mxu0
        %v2160 = vadd.f32 %v2141, %v2159
        %2161 = vmatmul.bf16.gmra.mxu0 %v1438
        %v2162 = vpop.f32.mrf.mxu0
        %v2163 = vadd.f32 %v2144, %v2162
        %v2164 = vpop.f32.mrf.mxu0
        %v2165 = vadd.f32 %v2146, %v2164
        %2166 = vdwg.mxu0
        %2167 = vmatpush.bf16.msra.mxu0 %v1869
        %2168 = vmatpush.bf16.msra.mxu0 %v1863
        %2169 = vmatpush.bf16.msra.mxu0 %v1857
        %2170 = vmatpush.bf16.msra.mxu0 %v1851
        %2171 = vmatpush.bf16.msra.mxu0 %v1845
        %2172 = vmatpush.bf16.msra.mxu0 %v1839
        %2173 = vmatpush.bf16.msra.mxu0 %v1833
        %2174 = vmatpush.bf16.msra.mxu0 %v1827
        %2175 = vmatmul.bf16.gmra.mxu0 %v1435
        %v2176 = vpop.f32.mrf.mxu0
        %v2177 = vadd.f32 0.0, %v2176
        %v2178 = vpop.f32.mrf.mxu0
        %v2179 = vadd.f32 0.0, %v2178
        %2180 = vmatmul.bf16.gmra.mxu0 %v1437
        %v2181 = vpop.f32.mrf.mxu0
        %v2182 = vadd.f32 0.0, %v2181
        %v2183 = vpop.f32.mrf.mxu0
        %v2184 = vadd.f32 0.0, %v2183
        %2185 = vdwg.mxu0
        %2186 = vmatpush.bf16.msra.mxu0 %v1917
        %2187 = vmatpush.bf16.msra.mxu0 %v1911
        %2188 = vmatpush.bf16.msra.mxu0 %v1905
        %2189 = vmatpush.bf16.msra.mxu0 %v1899
        %2190 = vmatpush.bf16.msra.mxu0 %v1893
        %2191 = vmatpush.bf16.msra.mxu0 %v1887
        %2192 = vmatpush.bf16.msra.mxu0 %v1881
        %2193 = vmatpush.bf16.msra.mxu0 %v1875
        %2194 = vmatmul.bf16.gmra.mxu0 %v1436
        %v2195 = vpop.f32.mrf.mxu0
        %v2196 = vadd.f32 %v2177, %v2195
        %v2197 = vpop.f32.mrf.mxu0
        %v2198 = vadd.f32 %v2179, %v2197
        %2199 = vmatmul.bf16.gmra.mxu0 %v1438
        %v2200 = vpop.f32.mrf.mxu0
        %v2201 = vadd.f32 %v2182, %v2200
        %v2202 = vpop.f32.mrf.mxu0
        %v2203 = vadd.f32 %v2184, %v2202
        %2204 = vdwg.mxu0
        %2205 = vmatpush.bf16.msra.mxu0 %v1870
        %2206 = vmatpush.bf16.msra.mxu0 %v1864
        %2207 = vmatpush.bf16.msra.mxu0 %v1858
        %2208 = vmatpush.bf16.msra.mxu0 %v1852
        %2209 = vmatpush.bf16.msra.mxu0 %v1846
        %2210 = vmatpush.bf16.msra.mxu0 %v1840
        %2211 = vmatpush.bf16.msra.mxu0 %v1834
        %2212 = vmatpush.bf16.msra.mxu0 %v1828
        %2213 = vmatmul.bf16.gmra.mxu0 %v1435
        %v2214 = vpop.f32.mrf.mxu0
        %v2215 = vadd.f32 0.0, %v2214
        %v2216 = vpop.f32.mrf.mxu0
        %v2217 = vadd.f32 0.0, %v2216
        %2218 = vmatmul.bf16.gmra.mxu0 %v1437
        %v2219 = vpop.f32.mrf.mxu0
        %v2220 = vadd.f32 0.0, %v2219
        %v2221 = vpop.f32.mrf.mxu0
        %v2222 = vadd.f32 0.0, %v2221
        %2223 = vdwg.mxu0
        %2224 = vmatpush.bf16.msra.mxu0 %v1918
        %2225 = vmatpush.bf16.msra.mxu0 %v1912
        %2226 = vmatpush.bf16.msra.mxu0 %v1906
        %2227 = vmatpush.bf16.msra.mxu0 %v1900
        %2228 = vmatpush.bf16.msra.mxu0 %v1894
        %2229 = vmatpush.bf16.msra.mxu0 %v1888
        %2230 = vmatpush.bf16.msra.mxu0 %v1882
        %2231 = vmatpush.bf16.msra.mxu0 %v1876
        %2232 = vmatmul.bf16.gmra.mxu0 %v1436
        %v2233 = vpop.f32.mrf.mxu0
        %v2234 = vadd.f32 %v2215, %v2233
        %v2235 = vpop.f32.mrf.mxu0
        %v2236 = vadd.f32 %v2217, %v2235
        %2237 = vmatmul.bf16.gmra.mxu0 %v1438
        %v2238 = vpop.f32.mrf.mxu0
        %v2239 = vadd.f32 %v2220, %v2238
        %v2240 = vpop.f32.mrf.mxu0
        %v2241 = vadd.f32 %v2222, %v2240
        %2242 = vdwg.mxu0
        %v2243 = vpack.c.bf16 %v2046, %v2044
        %v2244 = vpack.c.bf16 %v2122, %v2120
        %2245 = vmatpush.bf16.xpose.msra.mxu0 0
        %2246 = vmatpush.bf16.xpose.msra.mxu0 0
        %2247 = vmatpush.bf16.xpose.msra.mxu0 0
        %2248 = vmatpush.bf16.xpose.msra.mxu0 0
        %2249 = vmatpush.bf16.xpose.msra.mxu0 0
        %2250 = vmatpush.bf16.xpose.msra.mxu0 0
        %2251 = vmatpush.bf16.xpose.msra.mxu0 0
        %2252 = vmatpush.bf16.xpose.msra.mxu0 %v2244
        %2253 = vmatmul.bf16.gmra.mxu0 %v2243
        %v2254 = vpop.f32.mrf.mxu0
        %v2255 = vadd.f32 0.0, %v2254
        %v2256 = vpop.f32.mrf.mxu0
        %v2257 = vadd.f32 0.0, %v2256
        %2258 = vdwg.mxu0
        %v2259 = vmul.f32 %v2255, 0.088388346
        %v2260 = vmul.f32 %v2257, 0.088388346
        %vm2261 = vcmask 130048
        %v2262 = vsel %vm2261, %v2259, -inf
        %2263 = vmax.xlane.f32.xlu0 %v2262
        %v2264 = vpop.xlane.xlu0 %2263
        %v2265 = vsel %vm2261, %v2260, -inf
        %2266 = vmax.xlane.f32.xlu0 %v2265
        %v2267 = vpop.xlane.xlu0 %2266
        %v2268 = vsub.f32 %v2259, %v2264
        %v2269 = vsub.f32 %v2260, %v2267
        %v2270 = vmul.f32 %v2268, 1.442695
        %v2271 = vpow.pop %v2270
        %v2272 = vmul.f32 %v2269, 1.442695
        %v2273 = vpow.pop %v2272
        %v2274 = vsel %vm2261, %v2271, 0.0
        %2275 = vadd.xlane.f32.xlu0 %v2274
        %v2276 = vpop.xlane.xlu0 %2275
        %v2277 = vsel %vm2261, %v2273, 0.0
        %2278 = vadd.xlane.f32.xlu0 %v2277
        %v2279 = vpop.xlane.xlu0 %2278
        %v2280 = vrcp.pop %v2276
        %v2281 = vmul.f32 %v2276, %v2280
        %v2282 = vsub.f32 1.0, %v2281
        %v2283 = vmul.f32 %v2280, %v2282
        %v2284 = vadd.f32 %v2280, %v2283
        %vm2285 = vweird.f32 %v2276
        %vm2286 = vweird.f32 %v2280
        %vm2287 = vmor %vm2285, %vm2286
        %v2288 = vsel %vm2287, %v2280, %v2284
        %v2289 = vand.u32 2147483647, %v2276
        %vm2290 = vcmp.eq.f32.partialorder %v2289, 8.507059e+37
        %v2291 = vand.u32 %v2276, 2147483648
        %v2292 = vor.u32 1.1754944e-38, %v2291
        %v2293 = vsel %vm2290, %v2292, %v2288
        %v2294 = vmul.f32 %v2271, %v2293
        %v2295 = vrcp.pop %v2279
        %v2296 = vmul.f32 %v2279, %v2295
        %v2297 = vsub.f32 1.0, %v2296
        %v2298 = vmul.f32 %v2295, %v2297
        %v2299 = vadd.f32 %v2295, %v2298
        %vm2300 = vweird.f32 %v2279
        %vm2301 = vweird.f32 %v2295
        %vm2302 = vmor %vm2300, %vm2301
        %v2303 = vsel %vm2302, %v2295, %v2299
        %v2304 = vand.u32 2147483647, %v2279
        %vm2305 = vcmp.eq.f32.partialorder %v2304, 8.507059e+37
        %v2306 = vand.u32 %v2279, 2147483648
        %v2307 = vor.u32 1.1754944e-38, %v2306
        %v2308 = vsel %vm2305, %v2307, %v2303
        %v2309 = vmul.f32 %v2273, %v2308
        %v2310 = vpack.c.bf16 %v2198, %v2196
        %v2311 = vpack.c.bf16 %v2309, %v2294
        %v2313 = vsel %vm2261, %v2311, 0
        %2315 = vmatpush.bf16.msra.mxu0 0
        %2316 = vmatpush.bf16.msra.mxu0 0
        %2317 = vmatpush.bf16.msra.mxu0 0
        %2318 = vmatpush.bf16.msra.mxu0 0
        %2319 = vmatpush.bf16.msra.mxu0 0
        %2320 = vmatpush.bf16.msra.mxu0 0
        %2321 = vmatpush.bf16.msra.mxu0 0
        %2322 = vmatpush.bf16.msra.mxu0 %v2310
        %2323 = vmatmul.bf16.gmra.mxu0 %v2313
        %v2324 = vpop.f32.mrf.mxu0
        %v2325 = vadd.f32 0.0, %v2324
        %v2326 = vpop.f32.mrf.mxu0
        %v2327 = vadd.f32 0.0, %v2326
        %2328 = vdwg.mxu0
        %v2329 = vpack.c.bf16 %v2051, %v2049
        %v2330 = vpack.c.bf16 %v2127, %v2125
        %2331 = vmatpush.bf16.xpose.msra.mxu0 0
        %2332 = vmatpush.bf16.xpose.msra.mxu0 0
        %2333 = vmatpush.bf16.xpose.msra.mxu0 0
        %2334 = vmatpush.bf16.xpose.msra.mxu0 0
        %2335 = vmatpush.bf16.xpose.msra.mxu0 0
        %2336 = vmatpush.bf16.xpose.msra.mxu0 0
        %2337 = vmatpush.bf16.xpose.msra.mxu0 0
        %2338 = vmatpush.bf16.xpose.msra.mxu0 %v2330
        %2339 = vmatmul.bf16.gmra.mxu0 %v2329
        %v2340 = vpop.f32.mrf.mxu0
        %v2341 = vadd.f32 0.0, %v2340
        %v2342 = vpop.f32.mrf.mxu0
        %v2343 = vadd.f32 0.0, %v2342
        %2344 = vdwg.mxu0
        %v2345 = vmul.f32 %v2341, 0.088388346
        %v2346 = vmul.f32 %v2343, 0.088388346
        %v2347 = vsel %vm2261, %v2345, -inf
        %2348 = vmax.xlane.f32.xlu0 %v2347
        %v2349 = vpop.xlane.xlu0 %2348
        %v2350 = vsel %vm2261, %v2346, -inf
        %2351 = vmax.xlane.f32.xlu0 %v2350
        %v2352 = vpop.xlane.xlu0 %2351
        %v2353 = vsub.f32 %v2345, %v2349
        %v2354 = vsub.f32 %v2346, %v2352
        %v2355 = vmul.f32 %v2353, 1.442695
        %v2356 = vpow.pop %v2355
        %v2357 = vmul.f32 %v2354, 1.442695
        %v2358 = vpow.pop %v2357
        %v2359 = vsel %vm2261, %v2356, 0.0
        %2360 = vadd.xlane.f32.xlu0 %v2359
        %v2361 = vpop.xlane.xlu0 %2360
        %v2362 = vsel %vm2261, %v2358, 0.0
        %2363 = vadd.xlane.f32.xlu0 %v2362
        %v2364 = vpop.xlane.xlu0 %2363
        %v2365 = vrcp.pop %v2361
        %v2366 = vmul.f32 %v2361, %v2365
        %v2367 = vsub.f32 1.0, %v2366
        %v2368 = vmul.f32 %v2365, %v2367
        %v2369 = vadd.f32 %v2365, %v2368
        %vm2370 = vweird.f32 %v2361
        %vm2371 = vweird.f32 %v2365
        %vm2372 = vmor %vm2370, %vm2371
        %v2373 = vsel %vm2372, %v2365, %v2369
        %v2374 = vand.u32 2147483647, %v2361
        %vm2375 = vcmp.eq.f32.partialorder %v2374, 8.507059e+37
        %v2376 = vand.u32 %v2361, 2147483648
        %v2377 = vor.u32 1.1754944e-38, %v2376
        %v2378 = vsel %vm2375, %v2377, %v2373
        %v2379 = vmul.f32 %v2356, %v2378
        %v2380 = vrcp.pop %v2364
        %v2381 = vmul.f32 %v2364, %v2380
        %v2382 = vsub.f32 1.0, %v2381
        %v2383 = vmul.f32 %v2380, %v2382
        %v2384 = vadd.f32 %v2380, %v2383
        %vm2385 = vweird.f32 %v2364
        %vm2386 = vweird.f32 %v2380
        %vm2387 = vmor %vm2385, %vm2386
        %v2388 = vsel %vm2387, %v2380, %v2384
        %v2389 = vand.u32 2147483647, %v2364
        %vm2390 = vcmp.eq.f32.partialorder %v2389, 8.507059e+37
        %v2391 = vand.u32 %v2364, 2147483648
        %v2392 = vor.u32 1.1754944e-38, %v2391
        %v2393 = vsel %vm2390, %v2392, %v2388
        %v2394 = vmul.f32 %v2358, %v2393
        %v2395 = vpack.c.bf16 %v2203, %v2201
        %v2396 = vpack.c.bf16 %v2394, %v2379
        %v2398 = vsel %vm2261, %v2396, 0
        %2400 = vmatpush.bf16.msra.mxu0 0
        %2401 = vmatpush.bf16.msra.mxu0 0
        %2402 = vmatpush.bf16.msra.mxu0 0
        %2403 = vmatpush.bf16.msra.mxu0 0
        %2404 = vmatpush.bf16.msra.mxu0 0
        %2405 = vmatpush.bf16.msra.mxu0 0
        %2406 = vmatpush.bf16.msra.mxu0 0
        %2407 = vmatpush.bf16.msra.mxu0 %v2395
        %2408 = vmatmul.bf16.gmra.mxu0 %v2398
        %v2409 = vpop.f32.mrf.mxu0
        %v2410 = vadd.f32 0.0, %v2409
        %v2411 = vpop.f32.mrf.mxu0
        %v2412 = vadd.f32 0.0, %v2411
        %2413 = vdwg.mxu0
        %v2414 = vpack.c.bf16 %v2327, %v2325
        %v2415 = vpack.c.bf16 %v2412, %v2410
        %v2416 = vld [vmem:[%s850] sm:$0xff]
        %v2417 = vld [vmem:[%s850 + $0x8] sm:$0xff]
        %v2418 = vld [vmem:[%s850 + $0x10] sm:$0xff]
        %v2419 = vld [vmem:[%s850 + $0x18] sm:$0xff]
        %v2420 = vld [vmem:[%s850 + $0x20] sm:$0xff]
        %v2421 = vld [vmem:[%s850 + $0x28] sm:$0xff]
        %v2422 = vld [vmem:[%s850 + $0x30] sm:$0xff]
        %v2423 = vld [vmem:[%s850 + $0x38] sm:$0xff]
        %v2424 = vld [vmem:[%s850 + $0x40] sm:$0xff]
        %v2425 = vld [vmem:[%s850 + $0x48] sm:$0xff]
        %v2426 = vld [vmem:[%s850 + $0x50] sm:$0xff]
        %v2427 = vld [vmem:[%s850 + $0x58] sm:$0xff]
        %v2428 = vld [vmem:[%s850 + $0x60] sm:$0xff]
        %v2429 = vld [vmem:[%s850 + $0x68] sm:$0xff]
        %v2430 = vld [vmem:[%s850 + $0x70] sm:$0xff]
        %v2431 = vld [vmem:[%s850 + $0x78] sm:$0xff]
        %v2432 = vpack.c.bf16 %v2084, %v2082
        %v2433 = vpack.c.bf16 %v2160, %v2158
        %2434 = vmatpush.bf16.xpose.msra.mxu0 0
        %2435 = vmatpush.bf16.xpose.msra.mxu0 0
        %2436 = vmatpush.bf16.xpose.msra.mxu0 0
        %2437 = vmatpush.bf16.xpose.msra.mxu0 0
        %2438 = vmatpush.bf16.xpose.msra.mxu0 0
        %2439 = vmatpush.bf16.xpose.msra.mxu0 0
        %2440 = vmatpush.bf16.xpose.msra.mxu0 0
        %2441 = vmatpush.bf16.xpose.msra.mxu0 %v2433
        %2442 = vmatmul.bf16.gmra.mxu0 %v2432
        %v2443 = vpop.f32.mrf.mxu0
        %v2444 = vadd.f32 0.0, %v2443
        %v2445 = vpop.f32.mrf.mxu0
        %v2446 = vadd.f32 0.0, %v2445
        %2447 = vdwg.mxu0
        %v2448 = vmul.f32 %v2444, 0.088388346
        %v2449 = vmul.f32 %v2446, 0.088388346
        %v2450 = vsel %vm2261, %v2448, -inf
        %2451 = vmax.xlane.f32.xlu0 %v2450
        %v2452 = vpop.xlane.xlu0 %2451
        %v2453 = vsel %vm2261, %v2449, -inf
        %2454 = vmax.xlane.f32.xlu0 %v2453
        %v2455 = vpop.xlane.xlu0 %2454
        %v2456 = vsub.f32 %v2448, %v2452
        %v2457 = vsub.f32 %v2449, %v2455
        %v2458 = vmul.f32 %v2456, 1.442695
        %v2459 = vpow.pop %v2458
        %v2460 = vmul.f32 %v2457, 1.442695
        %v2461 = vpow.pop %v2460
        %v2462 = vsel %vm2261, %v2459, 0.0
        %2463 = vadd.xlane.f32.xlu0 %v2462
        %v2464 = vpop.xlane.xlu0 %2463
        %v2465 = vsel %vm2261, %v2461, 0.0
        %2466 = vadd.xlane.f32.xlu0 %v2465
        %v2467 = vpop.xlane.xlu0 %2466
        %v2468 = vrcp.pop %v2464
        %v2469 = vmul.f32 %v2464, %v2468
        %v2470 = vsub.f32 1.0, %v2469
        %v2471 = vmul.f32 %v2468, %v2470
        %v2472 = vadd.f32 %v2468, %v2471
        %vm2473 = vweird.f32 %v2464
        %vm2474 = vweird.f32 %v2468
        %vm2475 = vmor %vm2473, %vm2474
        %v2476 = vsel %vm2475, %v2468, %v2472
        %v2477 = vand.u32 2147483647, %v2464
        %vm2478 = vcmp.eq.f32.partialorder %v2477, 8.507059e+37
        %v2479 = vand.u32 %v2464, 2147483648
        %v2480 = vor.u32 1.1754944e-38, %v2479
        %v2481 = vsel %vm2478, %v2480, %v2476
        %v2482 = vmul.f32 %v2459, %v2481
        %v2483 = vrcp.pop %v2467
        %v2484 = vmul.f32 %v2467, %v2483
        %v2485 = vsub.f32 1.0, %v2484
        %v2486 = vmul.f32 %v2483, %v2485
        %v2487 = vadd.f32 %v2483, %v2486
        %vm2488 = vweird.f32 %v2467
        %vm2489 = vweird.f32 %v2483
        %vm2490 = vmor %vm2488, %vm2489
        %v2491 = vsel %vm2490, %v2483, %v2487
        %v2492 = vand.u32 2147483647, %v2467
        %vm2493 = vcmp.eq.f32.partialorder %v2492, 8.507059e+37
        %v2494 = vand.u32 %v2467, 2147483648
        %v2495 = vor.u32 1.1754944e-38, %v2494
        %v2496 = vsel %vm2493, %v2495, %v2491
        %v2497 = vmul.f32 %v2461, %v2496
        %v2498 = vpack.c.bf16 %v2236, %v2234
        %v2499 = vpack.c.bf16 %v2497, %v2482
        %v2501 = vsel %vm2261, %v2499, 0
        %2503 = vmatpush.bf16.msra.mxu0 0
        %2504 = vmatpush.bf16.msra.mxu0 0
        %2505 = vmatpush.bf16.msra.mxu0 0
        %2506 = vmatpush.bf16.msra.mxu0 0
        %2507 = vmatpush.bf16.msra.mxu0 0
        %2508 = vmatpush.bf16.msra.mxu0 0
        %2509 = vmatpush.bf16.msra.mxu0 0
        %2510 = vmatpush.bf16.msra.mxu0 %v2498
        %2511 = vmatmul.bf16.gmra.mxu0 %v2501
        %v2512 = vpop.f32.mrf.mxu0
        %v2513 = vadd.f32 0.0, %v2512
        %v2514 = vpop.f32.mrf.mxu0
        %v2515 = vadd.f32 0.0, %v2514
        %2516 = vdwg.mxu0
        %v2517 = vpack.c.bf16 %v2089, %v2087
        %v2518 = vpack.c.bf16 %v2165, %v2163
        %2519 = vmatpush.bf16.xpose.msra.mxu0 0
        %2520 = vmatpush.bf16.xpose.msra.mxu0 0
        %2521 = vmatpush.bf16.xpose.msra.mxu0 0
        %2522 = vmatpush.bf16.xpose.msra.mxu0 0
        %2523 = vmatpush.bf16.xpose.msra.mxu0 0
        %2524 = vmatpush.bf16.xpose.msra.mxu0 0
        %2525 = vmatpush.bf16.xpose.msra.mxu0 0
        %2526 = vmatpush.bf16.xpose.msra.mxu0 %v2518
        %2527 = vmatmul.bf16.gmra.mxu0 %v2517
        %v2528 = vpop.f32.mrf.mxu0
        %v2529 = vadd.f32 0.0, %v2528
        %v2530 = vpop.f32.mrf.mxu0
        %v2531 = vadd.f32 0.0, %v2530
        %2532 = vdwg.mxu0
        %v2533 = vmul.f32 %v2529, 0.088388346
        %v2534 = vmul.f32 %v2531, 0.088388346
        %v2535 = vsel %vm2261, %v2533, -inf
        %2536 = vmax.xlane.f32.xlu0 %v2535
        %v2537 = vpop.xlane.xlu0 %2536
        %v2538 = vsel %vm2261, %v2534, -inf
        %2539 = vmax.xlane.f32.xlu0 %v2538
        %v2540 = vpop.xlane.xlu0 %2539
        %v2541 = vsub.f32 %v2533, %v2537
        %v2542 = vsub.f32 %v2534, %v2540
        %v2543 = vmul.f32 %v2541, 1.442695
        %v2544 = vpow.pop %v2543
        %v2545 = vmul.f32 %v2542, 1.442695
        %v2546 = vpow.pop %v2545
        %v2547 = vsel %vm2261, %v2544, 0.0
        %2548 = vadd.xlane.f32.xlu0 %v2547
        %v2549 = vpop.xlane.xlu0 %2548
        %v2550 = vsel %vm2261, %v2546, 0.0
        %2551 = vadd.xlane.f32.xlu0 %v2550
        %v2552 = vpop.xlane.xlu0 %2551
        %v2553 = vrcp.pop %v2549
        %v2554 = vmul.f32 %v2549, %v2553
        %v2555 = vsub.f32 1.0, %v2554
        %v2556 = vmul.f32 %v2553, %v2555
        %v2557 = vadd.f32 %v2553, %v2556
        %vm2558 = vweird.f32 %v2549
        %vm2559 = vweird.f32 %v2553
        %vm2560 = vmor %vm2558, %vm2559
        %v2561 = vsel %vm2560, %v2553, %v2557
        %v2562 = vand.u32 2147483647, %v2549
        %vm2563 = vcmp.eq.f32.partialorder %v2562, 8.507059e+37
        %v2564 = vand.u32 %v2549, 2147483648
        %v2565 = vor.u32 1.1754944e-38, %v2564
        %v2566 = vsel %vm2563, %v2565, %v2561
        %v2567 = vmul.f32 %v2544, %v2566
        %v2568 = vrcp.pop %v2552
        %v2569 = vmul.f32 %v2552, %v2568
        %v2570 = vsub.f32 1.0, %v2569
        %v2571 = vmul.f32 %v2568, %v2570
        %v2572 = vadd.f32 %v2568, %v2571
        %vm2573 = vweird.f32 %v2552
        %vm2574 = vweird.f32 %v2568
        %vm2575 = vmor %vm2573, %vm2574
        %v2576 = vsel %vm2575, %v2568, %v2572
        %v2577 = vand.u32 2147483647, %v2552
        %vm2578 = vcmp.eq.f32.partialorder %v2577, 8.507059e+37
        %v2579 = vand.u32 %v2552, 2147483648
        %v2580 = vor.u32 1.1754944e-38, %v2579
        %v2581 = vsel %vm2578, %v2580, %v2576
        %v2582 = vmul.f32 %v2546, %v2581
        %v2583 = vpack.c.bf16 %v2241, %v2239
        %v2584 = vpack.c.bf16 %v2582, %v2567
        %v2586 = vsel %vm2261, %v2584, 0
        %2588 = vmatpush.bf16.msra.mxu0 0
        %2589 = vmatpush.bf16.msra.mxu0 0
        %2590 = vmatpush.bf16.msra.mxu0 0
        %2591 = vmatpush.bf16.msra.mxu0 0
        %2592 = vmatpush.bf16.msra.mxu0 0
        %2593 = vmatpush.bf16.msra.mxu0 0
        %2594 = vmatpush.bf16.msra.mxu0 0
        %2595 = vmatpush.bf16.msra.mxu0 %v2583
        %2596 = vmatmul.bf16.gmra.mxu0 %v2586
        %v2597 = vpop.f32.mrf.mxu0
        %v2598 = vadd.f32 0.0, %v2597
        %v2599 = vpop.f32.mrf.mxu0
        %v2600 = vadd.f32 0.0, %v2599
        %2601 = vdwg.mxu0
        %v2602 = vpack.c.bf16 %v2515, %v2513
        %v2603 = vpack.c.bf16 %v2600, %v2598
        %v2604 = vld [vmem:[%s850 + $0x80] sm:$0xff]
        %v2605 = vld [vmem:[%s850 + $0x88] sm:$0xff]
        %v2606 = vld [vmem:[%s850 + $0x90] sm:$0xff]
        %v2607 = vld [vmem:[%s850 + $0x98] sm:$0xff]
        %v2608 = vld [vmem:[%s850 + $0xa0] sm:$0xff]
        %v2609 = vld [vmem:[%s850 + $0xa8] sm:$0xff]
        %v2610 = vld [vmem:[%s850 + $0xb0] sm:$0xff]
        %v2611 = vld [vmem:[%s850 + $0xb8] sm:$0xff]
        %v2612 = vld [vmem:[%s850 + $0xc0] sm:$0xff]
        %v2613 = vld [vmem:[%s850 + $0xc8] sm:$0xff]
        %v2614 = vld [vmem:[%s850 + $0xd0] sm:$0xff]
        %v2615 = vld [vmem:[%s850 + $0xd8] sm:$0xff]
        %v2616 = vld [vmem:[%s850 + $0xe0] sm:$0xff]
        %v2617 = vld [vmem:[%s850 + $0xe8] sm:$0xff]
        %v2618 = vld [vmem:[%s850 + $0xf0] sm:$0xff]
        %v2619 = vld [vmem:[%s850 + $0xf8] sm:$0xff]
        %v2636 = vunpack.c.l.b16 %v2604
        %v2637 = vunpack.c.h.b16 %v2604
        %v2638 = vunpack.c.l.b16 %v2605
        %v2639 = vunpack.c.h.b16 %v2605
        %v2640 = vunpack.c.l.b16 %v2606
        %v2641 = vunpack.c.h.b16 %v2606
        %v2642 = vunpack.c.l.b16 %v2607
        %v2643 = vunpack.c.h.b16 %v2607
        %v2644 = vunpack.c.l.b16 %v2608
        %v2645 = vunpack.c.h.b16 %v2608
        %v2646 = vunpack.c.l.b16 %v2609
        %v2647 = vunpack.c.h.b16 %v2609
        %v2648 = vunpack.c.l.b16 %v2610
        %v2649 = vunpack.c.h.b16 %v2610
        %v2650 = vunpack.c.l.b16 %v2611
        %v2651 = vunpack.c.h.b16 %v2611
        %v2652 = vunpack.c.l.b16 %v2612
        %v2653 = vunpack.c.h.b16 %v2612
        %v2654 = vunpack.c.l.b16 %v2613
        %v2655 = vunpack.c.h.b16 %v2613
        %v2656 = vunpack.c.l.b16 %v2614
        %v2657 = vunpack.c.h.b16 %v2614
        %v2658 = vunpack.c.l.b16 %v2615
        %v2659 = vunpack.c.h.b16 %v2615
        %v2660 = vunpack.c.l.b16 %v2616
        %v2661 = vunpack.c.h.b16 %v2616
        %v2662 = vunpack.c.l.b16 %v2617
        %v2663 = vunpack.c.h.b16 %v2617
        %v2664 = vunpack.c.l.b16 %v2618
        %v2665 = vunpack.c.h.b16 %v2618
        %v2666 = vunpack.c.l.b16 %v2619
        %v2667 = vunpack.c.h.b16 %v2619
        %v2668 = vpack.c.b16 %v2638, %v2636
        %v2669 = vpack.c.b16 %v2639, %v2637
        %v2670 = vpack.c.b16 %v2642, %v2640
        %v2671 = vpack.c.b16 %v2643, %v2641
        %v2672 = vpack.c.b16 %v2646, %v2644
        %v2673 = vpack.c.b16 %v2647, %v2645
        %v2674 = vpack.c.b16 %v2650, %v2648
        %v2675 = vpack.c.b16 %v2651, %v2649
        %v2676 = vpack.c.b16 %v2654, %v2652
        %v2677 = vpack.c.b16 %v2655, %v2653
        %v2678 = vpack.c.b16 %v2658, %v2656
        %v2679 = vpack.c.b16 %v2659, %v2657
        %v2680 = vpack.c.b16 %v2662, %v2660
        %v2681 = vpack.c.b16 %v2663, %v2661
        %v2682 = vpack.c.b16 %v2666, %v2664
        %v2683 = vpack.c.b16 %v2667, %v2665
        %2700 = vmatpush.bf16.msra.mxu0 %v2682
        %2701 = vmatpush.bf16.msra.mxu0 %v2680
        %2702 = vmatpush.bf16.msra.mxu0 %v2678
        %2703 = vmatpush.bf16.msra.mxu0 %v2676
        %2704 = vmatpush.bf16.msra.mxu0 %v2674
        %2705 = vmatpush.bf16.msra.mxu0 %v2672
        %2706 = vmatpush.bf16.msra.mxu0 %v2670
        %2707 = vmatpush.bf16.msra.mxu0 %v2668
        %2708 = vmatmul.bf16.gmra.mxu0 %v2602
        %v2709 = vpop.f32.mrf.mxu0
        %v2710 = vadd.f32 0.0, %v2709
        %v2711 = vpop.f32.mrf.mxu0
        %v2712 = vadd.f32 0.0, %v2711
        %2713 = vmatmul.bf16.gmra.mxu0 %v2603
        %v2714 = vpop.f32.mrf.mxu0
        %v2715 = vadd.f32 0.0, %v2714
        %v2716 = vpop.f32.mrf.mxu0
        %v2717 = vadd.f32 0.0, %v2716
        %2718 = vdwg.mxu0
        %2719 = vmatpush.bf16.msra.mxu0 %v2683
        %2720 = vmatpush.bf16.msra.mxu0 %v2681
        %2721 = vmatpush.bf16.msra.mxu0 %v2679
        %2722 = vmatpush.bf16.msra.mxu0 %v2677
        %2723 = vmatpush.bf16.msra.mxu0 %v2675
        %2724 = vmatpush.bf16.msra.mxu0 %v2673
        %2725 = vmatpush.bf16.msra.mxu0 %v2671
        %2726 = vmatpush.bf16.msra.mxu0 %v2669
        %2727 = vmatmul.bf16.gmra.mxu0 %v2602
        %v2728 = vpop.f32.mrf.mxu0
        %v2729 = vadd.f32 0.0, %v2728
        %v2730 = vpop.f32.mrf.mxu0
        %v2731 = vadd.f32 0.0, %v2730
        %2732 = vmatmul.bf16.gmra.mxu0 %v2603
        %v2733 = vpop.f32.mrf.mxu0
        %v2734 = vadd.f32 0.0, %v2733
        %v2735 = vpop.f32.mrf.mxu0
        %v2736 = vadd.f32 0.0, %v2735
        %2737 = vdwg.mxu0
        %v2754 = vunpack.c.l.b16 %v2416
        %v2755 = vunpack.c.h.b16 %v2416
        %v2756 = vunpack.c.l.b16 %v2417
        %v2757 = vunpack.c.h.b16 %v2417
        %v2758 = vunpack.c.l.b16 %v2418
        %v2759 = vunpack.c.h.b16 %v2418
        %v2760 = vunpack.c.l.b16 %v2419
        %v2761 = vunpack.c.h.b16 %v2419
        %v2762 = vunpack.c.l.b16 %v2420
        %v2763 = vunpack.c.h.b16 %v2420
        %v2764 = vunpack.c.l.b16 %v2421
        %v2765 = vunpack.c.h.b16 %v2421
        %v2766 = vunpack.c.l.b16 %v2422
        %v2767 = vunpack.c.h.b16 %v2422
        %v2768 = vunpack.c.l.b16 %v2423
        %v2769 = vunpack.c.h.b16 %v2423
        %v2770 = vunpack.c.l.b16 %v2424
        %v2771 = vunpack.c.h.b16 %v2424
        %v2772 = vunpack.c.l.b16 %v2425
        %v2773 = vunpack.c.h.b16 %v2425
        %v2774 = vunpack.c.l.b16 %v2426
        %v2775 = vunpack.c.h.b16 %v2426
        %v2776 = vunpack.c.l.b16 %v2427
        %v2777 = vunpack.c.h.b16 %v2427
        %v2778 = vunpack.c.l.b16 %v2428
        %v2779 = vunpack.c.h.b16 %v2428
        %v2780 = vunpack.c.l.b16 %v2429
        %v2781 = vunpack.c.h.b16 %v2429
        %v2782 = vunpack.c.l.b16 %v2430
        %v2783 = vunpack.c.h.b16 %v2430
        %v2784 = vunpack.c.l.b16 %v2431
        %v2785 = vunpack.c.h.b16 %v2431
        %v2786 = vpack.c.b16 %v2756, %v2754
        %v2787 = vpack.c.b16 %v2757, %v2755
        %v2788 = vpack.c.b16 %v2760, %v2758
        %v2789 = vpack.c.b16 %v2761, %v2759
        %v2790 = vpack.c.b16 %v2764, %v2762
        %v2791 = vpack.c.b16 %v2765, %v2763
        %v2792 = vpack.c.b16 %v2768, %v2766
        %v2793 = vpack.c.b16 %v2769, %v2767
        %v2794 = vpack.c.b16 %v2772, %v2770
        %v2795 = vpack.c.b16 %v2773, %v2771
        %v2796 = vpack.c.b16 %v2776, %v2774
        %v2797 = vpack.c.b16 %v2777, %v2775
        %v2798 = vpack.c.b16 %v2780, %v2778
        %v2799 = vpack.c.b16 %v2781, %v2779
        %v2800 = vpack.c.b16 %v2784, %v2782
        %v2801 = vpack.c.b16 %v2785, %v2783
        %2818 = vmatpush.bf16.msra.mxu0 %v2800
        %2819 = vmatpush.bf16.msra.mxu0 %v2798
        %2820 = vmatpush.bf16.msra.mxu0 %v2796
        %2821 = vmatpush.bf16.msra.mxu0 %v2794
        %2822 = vmatpush.bf16.msra.mxu0 %v2792
        %2823 = vmatpush.bf16.msra.mxu0 %v2790
        %2824 = vmatpush.bf16.msra.mxu0 %v2788
        %2825 = vmatpush.bf16.msra.mxu0 %v2786
        %2826 = vmatmul.bf16.gmra.mxu0 %v2414
        %v2827 = vpop.f32.mrf.mxu0
        %v2828 = vadd.f32 %v2710, %v2827
        %v2829 = vpop.f32.mrf.mxu0
        %v2830 = vadd.f32 %v2712, %v2829
        %2831 = vmatmul.bf16.gmra.mxu0 %v2415
        %v2832 = vpop.f32.mrf.mxu0
        %v2833 = vadd.f32 %v2715, %v2832
        %v2834 = vpop.f32.mrf.mxu0
        %v2835 = vadd.f32 %v2717, %v2834
        %2836 = vdwg.mxu0
        %2837 = vmatpush.bf16.msra.mxu0 %v2801
        %2838 = vmatpush.bf16.msra.mxu0 %v2799
        %2839 = vmatpush.bf16.msra.mxu0 %v2797
        %2840 = vmatpush.bf16.msra.mxu0 %v2795
        %2841 = vmatpush.bf16.msra.mxu0 %v2793
        %2842 = vmatpush.bf16.msra.mxu0 %v2791
        %2843 = vmatpush.bf16.msra.mxu0 %v2789
        %2844 = vmatpush.bf16.msra.mxu0 %v2787
        %2845 = vmatmul.bf16.gmra.mxu0 %v2414
        %v2846 = vpop.f32.mrf.mxu0
        %v2847 = vadd.f32 %v2729, %v2846
        %v2848 = vpop.f32.mrf.mxu0
        %v2849 = vadd.f32 %v2731, %v2848
        %2850 = vmatmul.bf16.gmra.mxu0 %v2415
        %v2851 = vpop.f32.mrf.mxu0
        %v2852 = vadd.f32 %v2734, %v2851
        %v2853 = vpop.f32.mrf.mxu0
        %v2854 = vadd.f32 %v2736, %v2853
        %2855 = vdwg.mxu0
        %v2856 = vadd.f32 %v2828, %v1292
        %v2857 = vadd.f32 %v2847, %v1293
        %v2858 = vadd.f32 %v2830, %v1294
        %v2859 = vadd.f32 %v2849, %v1295
        %v2860 = vadd.f32 %v2833, %v1296
        %v2861 = vadd.f32 %v2852, %v1297
        %v2862 = vadd.f32 %v2835, %v1298
        %v2863 = vadd.f32 %v2854, %v1299
        %v2864 = vld [vmem:[%s860] sm:$0x3]
        %v2865 = vld [vmem:[%s870] sm:$0x3]
        %v2866 = vadd.f32 %v2856, %v2857
        %2867 = vadd.xlane.f32.xlu0 %v2866
        %v2868 = vpop.xlane.xlu0 %2867
        %v2869 = vadd.f32 %v2858, %v2859
        %2870 = vadd.xlane.f32.xlu0 %v2869
        %v2871 = vpop.xlane.xlu0 %2870
        %v2872 = vadd.f32 %v2860, %v2861
        %2873 = vadd.xlane.f32.xlu0 %v2872
        %v2874 = vpop.xlane.xlu0 %2873
        %v2875 = vadd.f32 %v2862, %v2863
        %2876 = vadd.xlane.f32.xlu0 %v2875
        %v2877 = vpop.xlane.xlu0 %2876
        %v2878 = vmul.f32 %v2868, %v1320
        %v2879 = vmul.f32 %v2871, %v1320
        %v2880 = vmul.f32 %v2874, %v1320
        %v2881 = vmul.f32 %v2877, %v1320
        %v2882 = vsub.f32 %v2856, %v2878
        %v2883 = vsub.f32 %v2857, %v2878
        %v2884 = vsub.f32 %v2858, %v2879
        %v2885 = vsub.f32 %v2859, %v2879
        %v2886 = vsub.f32 %v2860, %v2880
        %v2887 = vsub.f32 %v2861, %v2880
        %v2888 = vsub.f32 %v2862, %v2881
        %v2889 = vsub.f32 %v2863, %v2881
        %v2890 = vmul.f32 %v2882, %v2882
        %v2891 = vmul.f32 %v2883, %v2883
        %v2892 = vmul.f32 %v2884, %v2884
        %v2893 = vmul.f32 %v2885, %v2885
        %v2894 = vmul.f32 %v2886, %v2886
        %v2895 = vmul.f32 %v2887, %v2887
        %v2896 = vmul.f32 %v2888, %v2888
        %v2897 = vmul.f32 %v2889, %v2889
        %v2898 = vadd.f32 %v2890, %v2891
        %2899 = vadd.xlane.f32.xlu0 %v2898
        %v2900 = vpop.xlane.xlu0 %2899
        %v2901 = vadd.f32 %v2892, %v2893
        %2902 = vadd.xlane.f32.xlu0 %v2901
        %v2903 = vpop.xlane.xlu0 %2902
        %v2904 = vadd.f32 %v2894, %v2895
        %2905 = vadd.xlane.f32.xlu0 %v2904
        %v2906 = vpop.xlane.xlu0 %2905
        %v2907 = vadd.f32 %v2896, %v2897
        %2908 = vadd.xlane.f32.xlu0 %v2907
        %v2909 = vpop.xlane.xlu0 %2908
        %v2910 = vmul.f32 %v2900, %v1320
        %v2911 = vmul.f32 %v2903, %v1320
        %v2912 = vmul.f32 %v2906, %v1320
        %v2913 = vmul.f32 %v2909, %v1320
        %v2914 = vadd.f32 %v2910, 1e-05
        %v2915 = vadd.f32 %v2911, 1e-05
        %v2916 = vadd.f32 %v2912, 1e-05
        %v2917 = vadd.f32 %v2913, 1e-05
        %v2918 = vrsqrt.pop %v2914
        %v2919 = vmul.f32 %v2918, %v2914
        %v2920 = vmul.f32 %v2919, %v2918
        %v2921 = vmul.f32 0.5, %v2920
        %v2922 = vsub.f32 1.5, %v2921
        %v2923 = vmul.f32 %v2918, %v2922
        %vm2924 = vweird.f32 %v2914
        %vm2925 = vweird.f32 %v2918
        %vm2926 = vmor %vm2924, %vm2925
        %v2927 = vsel %vm2926, %v2918, %v2923
        %v2928 = vrsqrt.pop %v2915
        %v2929 = vmul.f32 %v2928, %v2915
        %v2930 = vmul.f32 %v2929, %v2928
        %v2931 = vmul.f32 0.5, %v2930
        %v2932 = vsub.f32 1.5, %v2931
        %v2933 = vmul.f32 %v2928, %v2932
        %vm2934 = vweird.f32 %v2915
        %vm2935 = vweird.f32 %v2928
        %vm2936 = vmor %vm2934, %vm2935
        %v2937 = vsel %vm2936, %v2928, %v2933
        %v2938 = vrsqrt.pop %v2916
        %v2939 = vmul.f32 %v2938, %v2916
        %v2940 = vmul.f32 %v2939, %v2938
        %v2941 = vmul.f32 0.5, %v2940
        %v2942 = vsub.f32 1.5, %v2941
        %v2943 = vmul.f32 %v2938, %v2942
        %vm2944 = vweird.f32 %v2916
        %vm2945 = vweird.f32 %v2938
        %vm2946 = vmor %vm2944, %vm2945
        %v2947 = vsel %vm2946, %v2938, %v2943
        %v2948 = vrsqrt.pop %v2917
        %v2949 = vmul.f32 %v2948, %v2917
        %v2950 = vmul.f32 %v2949, %v2948
        %v2951 = vmul.f32 0.5, %v2950
        %v2952 = vsub.f32 1.5, %v2951
        %v2953 = vmul.f32 %v2948, %v2952
        %vm2954 = vweird.f32 %v2917
        %vm2955 = vweird.f32 %v2948
        %vm2956 = vmor %vm2954, %vm2955
        %v2957 = vsel %vm2956, %v2948, %v2953
        %v2958 = vmul.f32 %v2882, %v2927
        %v2959 = vmul.f32 %v2883, %v2927
        %v2960 = vmul.f32 %v2884, %v2937
        %v2961 = vmul.f32 %v2885, %v2937
        %v2962 = vmul.f32 %v2886, %v2947
        %v2963 = vmul.f32 %v2887, %v2947
        %v2964 = vmul.f32 %v2888, %v2957
        %v2965 = vmul.f32 %v2889, %v2957
        %v2967 = vperm.slane %v2864, 0
        %v2968 = vperm.slane %v2864, 1
        %v2971 = vmul.f32 %v2958, %v2967
        %v2972 = vmul.f32 %v2959, %v2968
        %v2973 = vmul.f32 %v2960, %v2967
        %v2974 = vmul.f32 %v2961, %v2968
        %v2975 = vmul.f32 %v2962, %v2967
        %v2976 = vmul.f32 %v2963, %v2968
        %v2977 = vmul.f32 %v2964, %v2967
        %v2978 = vmul.f32 %v2965, %v2968
        %v2980 = vperm.slane %v2865, 0
        %v2981 = vperm.slane %v2865, 1
        %v2984 = vadd.f32 %v2971, %v2980
        %v2985 = vadd.f32 %v2972, %v2981
        %v2986 = vadd.f32 %v2973, %v2980
        %v2987 = vadd.f32 %v2974, %v2981
        %v2988 = vadd.f32 %v2975, %v2980
        %v2989 = vadd.f32 %v2976, %v2981
        %v2990 = vadd.f32 %v2977, %v2980
        %v2991 = vadd.f32 %v2978, %v2981
        %v2992 = vadd.f32 %v2984, %v2856
        %v2993 = vadd.f32 %v2985, %v2857
        %v2994 = vadd.f32 %v2986, %v2858
        %v2995 = vadd.f32 %v2987, %v2859
        %v2996 = vadd.f32 %v2988, %v2860
        %v2997 = vadd.f32 %v2989, %v2861
        %v2998 = vadd.f32 %v2990, %v2862
        %v2999 = vadd.f32 %v2991, %v2863
        %v3000 = vpack.c.bf16 %v2994, %v2992
        %v3001 = vpack.c.bf16 %v2995, %v2993
        %v3002 = vpack.c.bf16 %v2998, %v2996
        %v3003 = vpack.c.bf16 %v2999, %v2997
        %v3004 = vld [vmem:[%s880] sm:$0xff]
        %v3005 = vld [vmem:[%s880 + $0x8] sm:$0xff]
        %v3006 = vld [vmem:[%s880 + $0x10] sm:$0xff]
        %v3007 = vld [vmem:[%s880 + $0x18] sm:$0xff]
        %v3008 = vld [vmem:[%s880 + $0x20] sm:$0xff]
        %v3009 = vld [vmem:[%s880 + $0x28] sm:$0xff]
        %v3010 = vld [vmem:[%s880 + $0x30] sm:$0xff]
        %v3011 = vld [vmem:[%s880 + $0x38] sm:$0xff]
        %v3012 = vld [vmem:[%s880 + $0x40] sm:$0xff]
        %v3013 = vld [vmem:[%s880 + $0x48] sm:$0xff]
        %v3014 = vld [vmem:[%s880 + $0x50] sm:$0xff]
        %v3015 = vld [vmem:[%s880 + $0x58] sm:$0xff]
        %v3016 = vld [vmem:[%s880 + $0x60] sm:$0xff]
        %v3017 = vld [vmem:[%s880 + $0x68] sm:$0xff]
        %v3018 = vld [vmem:[%s880 + $0x70] sm:$0xff]
        %v3019 = vld [vmem:[%s880 + $0x78] sm:$0xff]
        %v3020 = vld [vmem:[%s880 + $0x80] sm:$0xff]
        %v3021 = vld [vmem:[%s880 + $0x88] sm:$0xff]
        %v3022 = vld [vmem:[%s880 + $0x90] sm:$0xff]
        %v3023 = vld [vmem:[%s880 + $0x98] sm:$0xff]
        %v3024 = vld [vmem:[%s880 + $0xa0] sm:$0xff]
        %v3025 = vld [vmem:[%s880 + $0xa8] sm:$0xff]
        %v3026 = vld [vmem:[%s880 + $0xb0] sm:$0xff]
        %v3027 = vld [vmem:[%s880 + $0xb8] sm:$0xff]
        %v3028 = vld [vmem:[%s880 + $0xc0] sm:$0xff]
        %v3029 = vld [vmem:[%s880 + $0xc8] sm:$0xff]
        %v3030 = vld [vmem:[%s880 + $0xd0] sm:$0xff]
        %v3031 = vld [vmem:[%s880 + $0xd8] sm:$0xff]
        %v3032 = vld [vmem:[%s880 + $0xe0] sm:$0xff]
        %v3033 = vld [vmem:[%s880 + $0xe8] sm:$0xff]
        %v3034 = vld [vmem:[%s880 + $0xf0] sm:$0xff]
        %v3035 = vld [vmem:[%s880 + $0xf8] sm:$0xff]
        %v3036 = vld [vmem:[%s880 + $0x100] sm:$0xff]
        %v3037 = vld [vmem:[%s880 + $0x108] sm:$0xff]
        %v3038 = vld [vmem:[%s880 + $0x110] sm:$0xff]
        %v3039 = vld [vmem:[%s880 + $0x118] sm:$0xff]
        %v3040 = vld [vmem:[%s880 + $0x120] sm:$0xff]
        %v3041 = vld [vmem:[%s880 + $0x128] sm:$0xff]
        %v3042 = vld [vmem:[%s880 + $0x130] sm:$0xff]
        %v3043 = vld [vmem:[%s880 + $0x138] sm:$0xff]
        %v3044 = vld [vmem:[%s880 + $0x140] sm:$0xff]
        %v3045 = vld [vmem:[%s880 + $0x148] sm:$0xff]
        %v3046 = vld [vmem:[%s880 + $0x150] sm:$0xff]
        %v3047 = vld [vmem:[%s880 + $0x158] sm:$0xff]
        %v3048 = vld [vmem:[%s880 + $0x160] sm:$0xff]
        %v3049 = vld [vmem:[%s880 + $0x168] sm:$0xff]
        %v3050 = vld [vmem:[%s880 + $0x170] sm:$0xff]
        %v3051 = vld [vmem:[%s880 + $0x178] sm:$0xff]
        %v3052 = vld [vmem:[%s880 + $0x180] sm:$0xff]
        %v3053 = vld [vmem:[%s880 + $0x188] sm:$0xff]
        %v3054 = vld [vmem:[%s880 + $0x190] sm:$0xff]
        %v3055 = vld [vmem:[%s880 + $0x198] sm:$0xff]
        %v3056 = vld [vmem:[%s880 + $0x1a0] sm:$0xff]
        %v3057 = vld [vmem:[%s880 + $0x1a8] sm:$0xff]
        %v3058 = vld [vmem:[%s880 + $0x1b0] sm:$0xff]
        %v3059 = vld [vmem:[%s880 + $0x1b8] sm:$0xff]
        %v3060 = vld [vmem:[%s880 + $0x1c0] sm:$0xff]
        %v3061 = vld [vmem:[%s880 + $0x1c8] sm:$0xff]
        %v3062 = vld [vmem:[%s880 + $0x1d0] sm:$0xff]
        %v3063 = vld [vmem:[%s880 + $0x1d8] sm:$0xff]
        %v3064 = vld [vmem:[%s880 + $0x1e0] sm:$0xff]
        %v3065 = vld [vmem:[%s880 + $0x1e8] sm:$0xff]
        %v3066 = vld [vmem:[%s880 + $0x1f0] sm:$0xff]
        %v3067 = vld [vmem:[%s880 + $0x1f8] sm:$0xff]
        %v3068 = vld [vmem:[%s1018] sm:$0xf]
        %v3070 = vperm.slane %v3068, 0
        %v3071 = vperm.slane %v3068, 1
        %v3072 = vperm.slane %v3068, 2
        %v3073 = vperm.slane %v3068, 3
        %v3142 = vunpack.c.l.b16 %v3004
        %v3143 = vunpack.c.h.b16 %v3004
        %v3144 = vunpack.c.l.b16 %v3005
        %v3145 = vunpack.c.h.b16 %v3005
        %v3146 = vunpack.c.l.b16 %v3006
        %v3147 = vunpack.c.h.b16 %v3006
        %v3148 = vunpack.c.l.b16 %v3007
        %v3149 = vunpack.c.h.b16 %v3007
        %v3150 = vunpack.c.l.b16 %v3008
        %v3151 = vunpack.c.h.b16 %v3008
        %v3152 = vunpack.c.l.b16 %v3009
        %v3153 = vunpack.c.h.b16 %v3009
        %v3154 = vunpack.c.l.b16 %v3010
        %v3155 = vunpack.c.h.b16 %v3010
        %v3156 = vunpack.c.l.b16 %v3011
        %v3157 = vunpack.c.h.b16 %v3011
        %v3158 = vunpack.c.l.b16 %v3012
        %v3159 = vunpack.c.h.b16 %v3012
        %v3160 = vunpack.c.l.b16 %v3013
        %v3161 = vunpack.c.h.b16 %v3013
        %v3162 = vunpack.c.l.b16 %v3014
        %v3163 = vunpack.c.h.b16 %v3014
        %v3164 = vunpack.c.l.b16 %v3015
        %v3165 = vunpack.c.h.b16 %v3015
        %v3166 = vunpack.c.l.b16 %v3016
        %v3167 = vunpack.c.h.b16 %v3016
        %v3168 = vunpack.c.l.b16 %v3017
        %v3169 = vunpack.c.h.b16 %v3017
        %v3170 = vunpack.c.l.b16 %v3018
        %v3171 = vunpack.c.h.b16 %v3018
        %v3172 = vunpack.c.l.b16 %v3019
        %v3173 = vunpack.c.h.b16 %v3019
        %v3174 = vunpack.c.l.b16 %v3020
        %v3175 = vunpack.c.h.b16 %v3020
        %v3176 = vunpack.c.l.b16 %v3021
        %v3177 = vunpack.c.h.b16 %v3021
        %v3178 = vunpack.c.l.b16 %v3022
        %v3179 = vunpack.c.h.b16 %v3022
        %v3180 = vunpack.c.l.b16 %v3023
        %v3181 = vunpack.c.h.b16 %v3023
        %v3182 = vunpack.c.l.b16 %v3024
        %v3183 = vunpack.c.h.b16 %v3024
        %v3184 = vunpack.c.l.b16 %v3025
        %v3185 = vunpack.c.h.b16 %v3025
        %v3186 = vunpack.c.l.b16 %v3026
        %v3187 = vunpack.c.h.b16 %v3026
        %v3188 = vunpack.c.l.b16 %v3027
        %v3189 = vunpack.c.h.b16 %v3027
        %v3190 = vunpack.c.l.b16 %v3028
        %v3191 = vunpack.c.h.b16 %v3028
        %v3192 = vunpack.c.l.b16 %v3029
        %v3193 = vunpack.c.h.b16 %v3029
        %v3194 = vunpack.c.l.b16 %v3030
        %v3195 = vunpack.c.h.b16 %v3030
        %v3196 = vunpack.c.l.b16 %v3031
        %v3197 = vunpack.c.h.b16 %v3031
        %v3198 = vunpack.c.l.b16 %v3032
        %v3199 = vunpack.c.h.b16 %v3032
        %v3200 = vunpack.c.l.b16 %v3033
        %v3201 = vunpack.c.h.b16 %v3033
        %v3202 = vunpack.c.l.b16 %v3034
        %v3203 = vunpack.c.h.b16 %v3034
        %v3204 = vunpack.c.l.b16 %v3035
        %v3205 = vunpack.c.h.b16 %v3035
        %v3206 = vunpack.c.l.b16 %v3036
        %v3207 = vunpack.c.h.b16 %v3036
        %v3208 = vunpack.c.l.b16 %v3037
        %v3209 = vunpack.c.h.b16 %v3037
        %v3210 = vunpack.c.l.b16 %v3038
        %v3211 = vunpack.c.h.b16 %v3038
        %v3212 = vunpack.c.l.b16 %v3039
        %v3213 = vunpack.c.h.b16 %v3039
        %v3214 = vunpack.c.l.b16 %v3040
        %v3215 = vunpack.c.h.b16 %v3040
        %v3216 = vunpack.c.l.b16 %v3041
        %v3217 = vunpack.c.h.b16 %v3041
        %v3218 = vunpack.c.l.b16 %v3042
        %v3219 = vunpack.c.h.b16 %v3042
        %v3220 = vunpack.c.l.b16 %v3043
        %v3221 = vunpack.c.h.b16 %v3043
        %v3222 = vunpack.c.l.b16 %v3044
        %v3223 = vunpack.c.h.b16 %v3044
        %v3224 = vunpack.c.l.b16 %v3045
        %v3225 = vunpack.c.h.b16 %v3045
        %v3226 = vunpack.c.l.b16 %v3046
        %v3227 = vunpack.c.h.b16 %v3046
        %v3228 = vunpack.c.l.b16 %v3047
        %v3229 = vunpack.c.h.b16 %v3047
        %v3230 = vunpack.c.l.b16 %v3048
        %v3231 = vunpack.c.h.b16 %v3048
        %v3232 = vunpack.c.l.b16 %v3049
        %v3233 = vunpack.c.h.b16 %v3049
        %v3234 = vunpack.c.l.b16 %v3050
        %v3235 = vunpack.c.h.b16 %v3050
        %v3236 = vunpack.c.l.b16 %v3051
        %v3237 = vunpack.c.h.b16 %v3051
        %v3238 = vunpack.c.l.b16 %v3052
        %v3239 = vunpack.c.h.b16 %v3052
        %v3240 = vunpack.c.l.b16 %v3053
        %v3241 = vunpack.c.h.b16 %v3053
        %v3242 = vunpack.c.l.b16 %v3054
        %v3243 = vunpack.c.h.b16 %v3054
        %v3244 = vunpack.c.l.b16 %v3055
        %v3245 = vunpack.c.h.b16 %v3055
        %v3246 = vunpack.c.l.b16 %v3056
        %v3247 = vunpack.c.h.b16 %v3056
        %v3248 = vunpack.c.l.b16 %v3057
        %v3249 = vunpack.c.h.b16 %v3057
        %v3250 = vunpack.c.l.b16 %v3058
        %v3251 = vunpack.c.h.b16 %v3058
        %v3252 = vunpack.c.l.b16 %v3059
        %v3253 = vunpack.c.h.b16 %v3059
        %v3254 = vunpack.c.l.b16 %v3060
        %v3255 = vunpack.c.h.b16 %v3060
        %v3256 = vunpack.c.l.b16 %v3061
        %v3257 = vunpack.c.h.b16 %v3061
        %v3258 = vunpack.c.l.b16 %v3062
        %v3259 = vunpack.c.h.b16 %v3062
        %v3260 = vunpack.c.l.b16 %v3063
        %v3261 = vunpack.c.h.b16 %v3063
        %v3262 = vunpack.c.l.b16 %v3064
        %v3263 = vunpack.c.h.b16 %v3064
        %v3264 = vunpack.c.l.b16 %v3065
        %v3265 = vunpack.c.h.b16 %v3065
        %v3266 = vunpack.c.l.b16 %v3066
        %v3267 = vunpack.c.h.b16 %v3066
        %v3268 = vunpack.c.l.b16 %v3067
        %v3269 = vunpack.c.h.b16 %v3067
        %v3270 = vpack.c.b16 %v3146, %v3142
        %v3271 = vpack.c.b16 %v3147, %v3143
        %v3272 = vpack.c.b16 %v3148, %v3144
        %v3273 = vpack.c.b16 %v3149, %v3145
        %v3274 = vpack.c.b16 %v3154, %v3150
        %v3275 = vpack.c.b16 %v3155, %v3151
        %v3276 = vpack.c.b16 %v3156, %v3152
        %v3277 = vpack.c.b16 %v3157, %v3153
        %v3278 = vpack.c.b16 %v3162, %v3158
        %v3279 = vpack.c.b16 %v3163, %v3159
        %v3280 = vpack.c.b16 %v3164, %v3160
        %v3281 = vpack.c.b16 %v3165, %v3161
        %v3282 = vpack.c.b16 %v3170, %v3166
        %v3283 = vpack.c.b16 %v3171, %v3167
        %v3284 = vpack.c.b16 %v3172, %v3168
        %v3285 = vpack.c.b16 %v3173, %v3169
        %v3286 = vpack.c.b16 %v3178, %v3174
        %v3287 = vpack.c.b16 %v3179, %v3175
        %v3288 = vpack.c.b16 %v3180, %v3176
        %v3289 = vpack.c.b16 %v3181, %v3177
        %v3290 = vpack.c.b16 %v3186, %v3182
        %v3291 = vpack.c.b16 %v3187, %v3183
        %v3292 = vpack.c.b16 %v3188, %v3184
        %v3293 = vpack.c.b16 %v3189, %v3185
        %v3294 = vpack.c.b16 %v3194, %v3190
        %v3295 = vpack.c.b16 %v3195, %v3191
        %v3296 = vpack.c.b16 %v3196, %v3192
        %v3297 = vpack.c.b16 %v3197, %v3193
        %v3298 = vpack.c.b16 %v3202, %v3198
        %v3299 = vpack.c.b16 %v3203, %v3199
        %v3300 = vpack.c.b16 %v3204, %v3200
        %v3301 = vpack.c.b16 %v3205, %v3201
        %v3302 = vpack.c.b16 %v3210, %v3206
        %v3303 = vpack.c.b16 %v3211, %v3207
        %v3304 = vpack.c.b16 %v3212, %v3208
        %v3305 = vpack.c.b16 %v3213, %v3209
        %v3306 = vpack.c.b16 %v3218, %v3214
        %v3307 = vpack.c.b16 %v3219, %v3215
        %v3308 = vpack.c.b16 %v3220, %v3216
        %v3309 = vpack.c.b16 %v3221, %v3217
        %v3310 = vpack.c.b16 %v3226, %v3222
        %v3311 = vpack.c.b16 %v3227, %v3223
        %v3312 = vpack.c.b16 %v3228, %v3224
        %v3313 = vpack.c.b16 %v3229, %v3225
        %v3314 = vpack.c.b16 %v3234, %v3230
        %v3315 = vpack.c.b16 %v3235, %v3231
        %v3316 = vpack.c.b16 %v3236, %v3232
        %v3317 = vpack.c.b16 %v3237, %v3233
        %v3318 = vpack.c.b16 %v3242, %v3238
        %v3319 = vpack.c.b16 %v3243, %v3239
        %v3320 = vpack.c.b16 %v3244, %v3240
        %v3321 = vpack.c.b16 %v3245, %v3241
        %v3322 = vpack.c.b16 %v3250, %v3246
        %v3323 = vpack.c.b16 %v3251, %v3247
        %v3324 = vpack.c.b16 %v3252, %v3248
        %v3325 = vpack.c.b16 %v3253, %v3249
        %v3326 = vpack.c.b16 %v3258, %v3254
        %v3327 = vpack.c.b16 %v3259, %v3255
        %v3328 = vpack.c.b16 %v3260, %v3256
        %v3329 = vpack.c.b16 %v3261, %v3257
        %v3330 = vpack.c.b16 %v3266, %v3262
        %v3331 = vpack.c.b16 %v3267, %v3263
        %v3332 = vpack.c.b16 %v3268, %v3264
        %v3333 = vpack.c.b16 %v3269, %v3265
        %3398 = vmatpush.bf16.msra.mxu0 %v3298
        %3399 = vmatpush.bf16.msra.mxu0 %v3294
        %3400 = vmatpush.bf16.msra.mxu0 %v3290
        %3401 = vmatpush.bf16.msra.mxu0 %v3286
        %3402 = vmatpush.bf16.msra.mxu0 %v3282
        %3403 = vmatpush.bf16.msra.mxu0 %v3278
        %3404 = vmatpush.bf16.msra.mxu0 %v3274
        %3405 = vmatpush.bf16.msra.mxu0 %v3270
        %3406 = vmatmul.bf16.gmra.mxu0 %v3000
        %v3407 = vpop.f32.mrf.mxu0
        %v3408 = vadd.f32 %v3070, %v3407
        %v3409 = vpop.f32.mrf.mxu0
        %v3410 = vadd.f32 %v3070, %v3409
        %3411 = vmatmul.bf16.gmra.mxu0 %v3002
        %v3412 = vpop.f32.mrf.mxu0
        %v3413 = vadd.f32 %v3070, %v3412
        %v3414 = vpop.f32.mrf.mxu0
        %v3415 = vadd.f32 %v3070, %v3414
        %3416 = vdwg.mxu0
        %3417 = vmatpush.bf16.msra.mxu0 %v3330
        %3418 = vmatpush.bf16.msra.mxu0 %v3326
        %3419 = vmatpush.bf16.msra.mxu0 %v3322
        %3420 = vmatpush.bf16.msra.mxu0 %v3318
        %3421 = vmatpush.bf16.msra.mxu0 %v3314
        %3422 = vmatpush.bf16.msra.mxu0 %v3310
        %3423 = vmatpush.bf16.msra.mxu0 %v3306
        %3424 = vmatpush.bf16.msra.mxu0 %v3302
        %3425 = vmatmul.bf16.gmra.mxu0 %v3001
        %v3426 = vpop.f32.mrf.mxu0
        %v3427 = vadd.f32 %v3408, %v3426
        %v3428 = vpop.f32.mrf.mxu0
        %v3429 = vadd.f32 %v3410, %v3428
        %3430 = vmatmul.bf16.gmra.mxu0 %v3003
        %v3431 = vpop.f32.mrf.mxu0
        %v3432 = vadd.f32 %v3413, %v3431
        %v3433 = vpop.f32.mrf.mxu0
        %v3434 = vadd.f32 %v3415, %v3433
        %3435 = vdwg.mxu0
        %3436 = vmatpush.bf16.msra.mxu0 %v3299
        %3437 = vmatpush.bf16.msra.mxu0 %v3295
        %3438 = vmatpush.bf16.msra.mxu0 %v3291
        %3439 = vmatpush.bf16.msra.mxu0 %v3287
        %3440 = vmatpush.bf16.msra.mxu0 %v3283
        %3441 = vmatpush.bf16.msra.mxu0 %v3279
        %3442 = vmatpush.bf16.msra.mxu0 %v3275
        %3443 = vmatpush.bf16.msra.mxu0 %v3271
        %3444 = vmatmul.bf16.gmra.mxu0 %v3000
        %v3445 = vpop.f32.mrf.mxu0
        %v3446 = vadd.f32 %v3071, %v3445
        %v3447 = vpop.f32.mrf.mxu0
        %v3448 = vadd.f32 %v3071, %v3447
        %3449 = vmatmul.bf16.gmra.mxu0 %v3002
        %v3450 = vpop.f32.mrf.mxu0
        %v3451 = vadd.f32 %v3071, %v3450
        %v3452 = vpop.f32.mrf.mxu0
        %v3453 = vadd.f32 %v3071, %v3452
        %3454 = vdwg.mxu0
        %3455 = vmatpush.bf16.msra.mxu0 %v3331
        %3456 = vmatpush.bf16.msra.mxu0 %v3327
        %3457 = vmatpush.bf16.msra.mxu0 %v3323
        %3458 = vmatpush.bf16.msra.mxu0 %v3319
        %3459 = vmatpush.bf16.msra.mxu0 %v3315
        %3460 = vmatpush.bf16.msra.mxu0 %v3311
        %3461 = vmatpush.bf16.msra.mxu0 %v3307
        %3462 = vmatpush.bf16.msra.mxu0 %v3303
        %3463 = vmatmul.bf16.gmra.mxu0 %v3001
        %v3464 = vpop.f32.mrf.mxu0
        %v3465 = vadd.f32 %v3446, %v3464
        %v3466 = vpop.f32.mrf.mxu0
        %v3467 = vadd.f32 %v3448, %v3466
        %3468 = vmatmul.bf16.gmra.mxu0 %v3003
        %v3469 = vpop.f32.mrf.mxu0
        %v3470 = vadd.f32 %v3451, %v3469
        %v3471 = vpop.f32.mrf.mxu0
        %v3472 = vadd.f32 %v3453, %v3471
        %3473 = vdwg.mxu0
        %3474 = vmatpush.bf16.msra.mxu0 %v3300
        %3475 = vmatpush.bf16.msra.mxu0 %v3296
        %3476 = vmatpush.bf16.msra.mxu0 %v3292
        %3477 = vmatpush.bf16.msra.mxu0 %v3288
        %3478 = vmatpush.bf16.msra.mxu0 %v3284
        %3479 = vmatpush.bf16.msra.mxu0 %v3280
        %3480 = vmatpush.bf16.msra.mxu0 %v3276
        %3481 = vmatpush.bf16.msra.mxu0 %v3272
        %3482 = vmatmul.bf16.gmra.mxu0 %v3000
        %v3483 = vpop.f32.mrf.mxu0
        %v3484 = vadd.f32 %v3072, %v3483
        %v3485 = vpop.f32.mrf.mxu0
        %v3486 = vadd.f32 %v3072, %v3485
        %3487 = vmatmul.bf16.gmra.mxu0 %v3002
        %v3488 = vpop.f32.mrf.mxu0
        %v3489 = vadd.f32 %v3072, %v3488
        %v3490 = vpop.f32.mrf.mxu0
        %v3491 = vadd.f32 %v3072, %v3490
        %3492 = vdwg.mxu0
        %3493 = vmatpush.bf16.msra.mxu0 %v3332
        %3494 = vmatpush.bf16.msra.mxu0 %v3328
        %3495 = vmatpush.bf16.msra.mxu0 %v3324
        %3496 = vmatpush.bf16.msra.mxu0 %v3320
        %3497 = vmatpush.bf16.msra.mxu0 %v3316
        %3498 = vmatpush.bf16.msra.mxu0 %v3312
        %3499 = vmatpush.bf16.msra.mxu0 %v3308
        %3500 = vmatpush.bf16.msra.mxu0 %v3304
        %3501 = vmatmul.bf16.gmra.mxu0 %v3001
        %v3502 = vpop.f32.mrf.mxu0
        %v3503 = vadd.f32 %v3484, %v3502
        %v3504 = vpop.f32.mrf.mxu0
        %v3505 = vadd.f32 %v3486, %v3504
        %3506 = vmatmul.bf16.gmra.mxu0 %v3003
        %v3507 = vpop.f32.mrf.mxu0
        %v3508 = vadd.f32 %v3489, %v3507
        %v3509 = vpop.f32.mrf.mxu0
        %v3510 = vadd.f32 %v3491, %v3509
        %3511 = vdwg.mxu0
        %3512 = vmatpush.bf16.msra.mxu0 %v3301
        %3513 = vmatpush.bf16.msra.mxu0 %v3297
        %3514 = vmatpush.bf16.msra.mxu0 %v3293
        %3515 = vmatpush.bf16.msra.mxu0 %v3289
        %3516 = vmatpush.bf16.msra.mxu0 %v3285
        %3517 = vmatpush.bf16.msra.mxu0 %v3281
        %3518 = vmatpush.bf16.msra.mxu0 %v3277
        %3519 = vmatpush.bf16.msra.mxu0 %v3273
        %3520 = vmatmul.bf16.gmra.mxu0 %v3000
        %v3521 = vpop.f32.mrf.mxu0
        %v3522 = vadd.f32 %v3073, %v3521
        %v3523 = vpop.f32.mrf.mxu0
        %v3524 = vadd.f32 %v3073, %v3523
        %3525 = vmatmul.bf16.gmra.mxu0 %v3002
        %v3526 = vpop.f32.mrf.mxu0
        %v3527 = vadd.f32 %v3073, %v3526
        %v3528 = vpop.f32.mrf.mxu0
        %v3529 = vadd.f32 %v3073, %v3528
        %3530 = vdwg.mxu0
        %3531 = vmatpush.bf16.msra.mxu0 %v3333
        %3532 = vmatpush.bf16.msra.mxu0 %v3329
        %3533 = vmatpush.bf16.msra.mxu0 %v3325
        %3534 = vmatpush.bf16.msra.mxu0 %v3321
        %3535 = vmatpush.bf16.msra.mxu0 %v3317
        %3536 = vmatpush.bf16.msra.mxu0 %v3313
        %3537 = vmatpush.bf16.msra.mxu0 %v3309
        %3538 = vmatpush.bf16.msra.mxu0 %v3305
        %3539 = vmatmul.bf16.gmra.mxu0 %v3001
        %v3540 = vpop.f32.mrf.mxu0
        %v3541 = vadd.f32 %v3522, %v3540
        %v3542 = vpop.f32.mrf.mxu0
        %v3543 = vadd.f32 %v3524, %v3542
        %3544 = vmatmul.bf16.gmra.mxu0 %v3003
        %v3545 = vpop.f32.mrf.mxu0
        %v3546 = vadd.f32 %v3527, %v3545
        %v3547 = vpop.f32.mrf.mxu0
        %v3548 = vadd.f32 %v3529, %v3547
        %3549 = vdwg.mxu0
        %v3550 = vmul.f32 %v3427, 0.5
        %v3551 = vmul.f32 %v3465, 0.5
        %v3552 = vmul.f32 %v3503, 0.5
        %v3553 = vmul.f32 %v3541, 0.5
        %v3554 = vmul.f32 %v3429, 0.5
        %v3555 = vmul.f32 %v3467, 0.5
        %v3556 = vmul.f32 %v3505, 0.5
        %v3557 = vmul.f32 %v3543, 0.5
        %v3558 = vmul.f32 %v3432, 0.5
        %v3559 = vmul.f32 %v3470, 0.5
        %v3560 = vmul.f32 %v3508, 0.5
        %v3561 = vmul.f32 %v3546, 0.5
        %v3562 = vmul.f32 %v3434, 0.5
        %v3563 = vmul.f32 %v3472, 0.5
        %v3564 = vmul.f32 %v3510, 0.5
        %v3565 = vmul.f32 %v3548, 0.5
        %v3566 = vmul.f32 %v3427, 0.70710677
        %v3567 = vmul.f32 %v3465, 0.70710677
        %v3568 = vmul.f32 %v3503, 0.70710677
        %v3569 = vmul.f32 %v3541, 0.70710677
        %v3570 = vmul.f32 %v3429, 0.70710677
        %v3571 = vmul.f32 %v3467, 0.70710677
        %v3572 = vmul.f32 %v3505, 0.70710677
        %v3573 = vmul.f32 %v3543, 0.70710677
        %v3574 = vmul.f32 %v3432, 0.70710677
        %v3575 = vmul.f32 %v3470, 0.70710677
        %v3576 = vmul.f32 %v3508, 0.70710677
        %v3577 = vmul.f32 %v3546, 0.70710677
        %v3578 = vmul.f32 %v3434, 0.70710677
        %v3579 = vmul.f32 %v3472, 0.70710677
        %v3580 = vmul.f32 %v3510, 0.70710677
        %v3581 = vmul.f32 %v3548, 0.70710677
        %vm3582 = vcmp.ge.f32.partialorder %v3566, 0.0
        %vm3583 = vcmp.ge.f32.partialorder %v3567, 0.0
        %vm3584 = vcmp.ge.f32.partialorder %v3568, 0.0
        %vm3585 = vcmp.ge.f32.partialorder %v3569, 0.0
        %vm3586 = vcmp.ge.f32.partialorder %v3570, 0.0
        %vm3587 = vcmp.ge.f32.partialorder %v3571, 0.0
        %vm3588 = vcmp.ge.f32.partialorder %v3572, 0.0
        %vm3589 = vcmp.ge.f32.partialorder %v3573, 0.0
        %vm3590 = vcmp.ge.f32.partialorder %v3574, 0.0
        %vm3591 = vcmp.ge.f32.partialorder %v3575, 0.0
        %vm3592 = vcmp.ge.f32.partialorder %v3576, 0.0
        %vm3593 = vcmp.ge.f32.partialorder %v3577, 0.0
        %vm3594 = vcmp.ge.f32.partialorder %v3578, 0.0
        %vm3595 = vcmp.ge.f32.partialorder %v3579, 0.0
        %vm3596 = vcmp.ge.f32.partialorder %v3580, 0.0
        %vm3597 = vcmp.ge.f32.partialorder %v3581, 0.0
        %v3598 = vsel %vm3582, 1.0, -1.0
        %v3599 = vsel %vm3583, 1.0, -1.0
        %v3600 = vsel %vm3584, 1.0, -1.0
        %v3601 = vsel %vm3585, 1.0, -1.0
        %v3602 = vsel %vm3586, 1.0, -1.0
        %v3603 = vsel %vm3587, 1.0, -1.0
        %v3604 = vsel %vm3588, 1.0, -1.0
        %v3605 = vsel %vm3589, 1.0, -1.0
        %v3606 = vsel %vm3590, 1.0, -1.0
        %v3607 = vsel %vm3591, 1.0, -1.0
        %v3608 = vsel %vm3592, 1.0, -1.0
        %v3609 = vsel %vm3593, 1.0, -1.0
        %v3610 = vsel %vm3594, 1.0, -1.0
        %v3611 = vsel %vm3595, 1.0, -1.0
        %v3612 = vsel %vm3596, 1.0, -1.0
        %v3613 = vsel %vm3597, 1.0, -1.0
        %v3614 = vand.u32 2147483647, %v3566
        %v3615 = vand.u32 2147483647, %v3567
        %v3616 = vand.u32 2147483647, %v3568
        %v3617 = vand.u32 2147483647, %v3569
        %v3618 = vand.u32 2147483647, %v3570
        %v3619 = vand.u32 2147483647, %v3571
        %v3620 = vand.u32 2147483647, %v3572
        %v3621 = vand.u32 2147483647, %v3573
        %v3622 = vand.u32 2147483647, %v3574
        %v3623 = vand.u32 2147483647, %v3575
        %v3624 = vand.u32 2147483647, %v3576
        %v3625 = vand.u32 2147483647, %v3577
        %v3626 = vand.u32 2147483647, %v3578
        %v3627 = vand.u32 2147483647, %v3579
        %v3628 = vand.u32 2147483647, %v3580
        %v3629 = vand.u32 2147483647, %v3581
        %v3630 = vmul.f32 %v3614, 0.3275911
        %v3631 = vmul.f32 %v3615, 0.3275911
        %v3632 = vmul.f32 %v3616, 0.3275911
        %v3633 = vmul.f32 %v3617, 0.3275911
        %v3634 = vmul.f32 %v3618, 0.3275911
        %v3635 = vmul.f32 %v3619, 0.3275911
        %v3636 = vmul.f32 %v3620, 0.3275911
        %v3637 = vmul.f32 %v3621, 0.3275911
        %v3638 = vmul.f32 %v3622, 0.3275911
        %v3639 = vmul.f32 %v3623, 0.3275911
        %v3640 = vmul.f32 %v3624, 0.3275911
        %v3641 = vmul.f32 %v3625, 0.3275911
        %v3642 = vmul.f32 %v3626, 0.3275911
        %v3643 = vmul.f32 %v3627, 0.3275911
        %v3644 = vmul.f32 %v3628, 0.3275911
        %v3645 = vmul.f32 %v3629, 0.3275911
        %v3646 = vadd.f32 %v3630, 1.0
        %v3647 = vadd.f32 %v3631, 1.0
        %v3648 = vadd.f32 %v3632, 1.0
        %v3649 = vadd.f32 %v3633, 1.0
        %v3650 = vadd.f32 %v3634, 1.0
        %v3651 = vadd.f32 %v3635, 1.0
        %v3652 = vadd.f32 %v3636, 1.0
        %v3653 = vadd.f32 %v3637, 1.0
        %v3654 = vadd.f32 %v3638, 1.0
        %v3655 = vadd.f32 %v3639, 1.0
        %v3656 = vadd.f32 %v3640, 1.0
        %v3657 = vadd.f32 %v3641, 1.0
        %v3658 = vadd.f32 %v3642, 1.0
        %v3659 = vadd.f32 %v3643, 1.0
        %v3660 = vadd.f32 %v3644, 1.0
        %v3661 = vadd.f32 %v3645, 1.0
        %v3662 = vrcp.pop %v3646
        %v3663 = vmul.f32 %v3646, %v3662
        %v3664 = vsub.f32 1.0, %v3663
        %v3665 = vmul.f32 %v3662, %v3664
        %v3666 = vadd.f32 %v3662, %v3665
        %vm3667 = vweird.f32 %v3646
        %vm3668 = vweird.f32 %v3662
        %vm3669 = vmor %vm3667, %vm3668
        %v3670 = vsel %vm3669, %v3662, %v3666
        %v3671 = vand.u32 2147483647, %v3646
        %vm3672 = vcmp.eq.f32.partialorder %v3671, 8.507059e+37
        %v3673 = vand.u32 %v3646, 2147483648
        %v3674 = vor.u32 1.1754944e-38, %v3673
        %v3675 = vsel %vm3672, %v3674, %v3670
        %v3676 = vmul.f32 1.0, %v3675
        %v3677 = vrcp.pop %v3647
        %v3678 = vmul.f32 %v3647, %v3677
        %v3679 = vsub.f32 1.0, %v3678
        %v3680 = vmul.f32 %v3677, %v3679
        %v3681 = vadd.f32 %v3677, %v3680
        %vm3682 = vweird.f32 %v3647
        %vm3683 = vweird.f32 %v3677
        %vm3684 = vmor %vm3682, %vm3683
        %v3685 = vsel %vm3684, %v3677, %v3681
        %v3686 = vand.u32 2147483647, %v3647
        %vm3687 = vcmp.eq.f32.partialorder %v3686, 8.507059e+37
        %v3688 = vand.u32 %v3647, 2147483648
        %v3689 = vor.u32 1.1754944e-38, %v3688
        %v3690 = vsel %vm3687, %v3689, %v3685
        %v3691 = vmul.f32 1.0, %v3690
        %v3692 = vrcp.pop %v3648
        %v3693 = vmul.f32 %v3648, %v3692
        %v3694 = vsub.f32 1.0, %v3693
        %v3695 = vmul.f32 %v3692, %v3694
        %v3696 = vadd.f32 %v3692, %v3695
        %vm3697 = vweird.f32 %v3648
        %vm3698 = vweird.f32 %v3692
        %vm3699 = vmor %vm3697, %vm3698
        %v3700 = vsel %vm3699, %v3692, %v3696
        %v3701 = vand.u32 2147483647, %v3648
        %vm3702 = vcmp.eq.f32.partialorder %v3701, 8.507059e+37
        %v3703 = vand.u32 %v3648, 2147483648
        %v3704 = vor.u32 1.1754944e-38, %v3703
        %v3705 = vsel %vm3702, %v3704, %v3700
        %v3706 = vmul.f32 1.0, %v3705
        %v3707 = vrcp.pop %v3649
        %v3708 = vmul.f32 %v3649, %v3707
        %v3709 = vsub.f32 1.0, %v3708
        %v3710 = vmul.f32 %v3707, %v3709
        %v3711 = vadd.f32 %v3707, %v3710
        %vm3712 = vweird.f32 %v3649
        %vm3713 = vweird.f32 %v3707
        %vm3714 = vmor %vm3712, %vm3713
        %v3715 = vsel %vm3714, %v3707, %v3711
        %v3716 = vand.u32 2147483647, %v3649
        %vm3717 = vcmp.eq.f32.partialorder %v3716, 8.507059e+37
        %v3718 = vand.u32 %v3649, 2147483648
        %v3719 = vor.u32 1.1754944e-38, %v3718
        %v3720 = vsel %vm3717, %v3719, %v3715
        %v3721 = vmul.f32 1.0, %v3720
        %v3722 = vrcp.pop %v3650
        %v3723 = vmul.f32 %v3650, %v3722
        %v3724 = vsub.f32 1.0, %v3723
        %v3725 = vmul.f32 %v3722, %v3724
        %v3726 = vadd.f32 %v3722, %v3725
        %vm3727 = vweird.f32 %v3650
        %vm3728 = vweird.f32 %v3722
        %vm3729 = vmor %vm3727, %vm3728
        %v3730 = vsel %vm3729, %v3722, %v3726
        %v3731 = vand.u32 2147483647, %v3650
        %vm3732 = vcmp.eq.f32.partialorder %v3731, 8.507059e+37
        %v3733 = vand.u32 %v3650, 2147483648
        %v3734 = vor.u32 1.1754944e-38, %v3733
        %v3735 = vsel %vm3732, %v3734, %v3730
        %v3736 = vmul.f32 1.0, %v3735
        %v3737 = vrcp.pop %v3651
        %v3738 = vmul.f32 %v3651, %v3737
        %v3739 = vsub.f32 1.0, %v3738
        %v3740 = vmul.f32 %v3737, %v3739
        %v3741 = vadd.f32 %v3737, %v3740
        %vm3742 = vweird.f32 %v3651
        %vm3743 = vweird.f32 %v3737
        %vm3744 = vmor %vm3742, %vm3743
        %v3745 = vsel %vm3744, %v3737, %v3741
        %v3746 = vand.u32 2147483647, %v3651
        %vm3747 = vcmp.eq.f32.partialorder %v3746, 8.507059e+37
        %v3748 = vand.u32 %v3651, 2147483648
        %v3749 = vor.u32 1.1754944e-38, %v3748
        %v3750 = vsel %vm3747, %v3749, %v3745
        %v3751 = vmul.f32 1.0, %v3750
        %v3752 = vrcp.pop %v3652
        %v3753 = vmul.f32 %v3652, %v3752
        %v3754 = vsub.f32 1.0, %v3753
        %v3755 = vmul.f32 %v3752, %v3754
        %v3756 = vadd.f32 %v3752, %v3755
        %vm3757 = vweird.f32 %v3652
        %vm3758 = vweird.f32 %v3752
        %vm3759 = vmor %vm3757, %vm3758
        %v3760 = vsel %vm3759, %v3752, %v3756
        %v3761 = vand.u32 2147483647, %v3652
        %vm3762 = vcmp.eq.f32.partialorder %v3761, 8.507059e+37
        %v3763 = vand.u32 %v3652, 2147483648
        %v3764 = vor.u32 1.1754944e-38, %v3763
        %v3765 = vsel %vm3762, %v3764, %v3760
        %v3766 = vmul.f32 1.0, %v3765
        %v3767 = vrcp.pop %v3653
        %v3768 = vmul.f32 %v3653, %v3767
        %v3769 = vsub.f32 1.0, %v3768
        %v3770 = vmul.f32 %v3767, %v3769
        %v3771 = vadd.f32 %v3767, %v3770
        %vm3772 = vweird.f32 %v3653
        %vm3773 = vweird.f32 %v3767
        %vm3774 = vmor %vm3772, %vm3773
        %v3775 = vsel %vm3774, %v3767, %v3771
        %v3776 = vand.u32 2147483647, %v3653
        %vm3777 = vcmp.eq.f32.partialorder %v3776, 8.507059e+37
        %v3778 = vand.u32 %v3653, 2147483648
        %v3779 = vor.u32 1.1754944e-38, %v3778
        %v3780 = vsel %vm3777, %v3779, %v3775
        %v3781 = vmul.f32 1.0, %v3780
        %v3782 = vrcp.pop %v3654
        %v3783 = vmul.f32 %v3654, %v3782
        %v3784 = vsub.f32 1.0, %v3783
        %v3785 = vmul.f32 %v3782, %v3784
        %v3786 = vadd.f32 %v3782, %v3785
        %vm3787 = vweird.f32 %v3654
        %vm3788 = vweird.f32 %v3782
        %vm3789 = vmor %vm3787, %vm3788
        %v3790 = vsel %vm3789, %v3782, %v3786
        %v3791 = vand.u32 2147483647, %v3654
        %vm3792 = vcmp.eq.f32.partialorder %v3791, 8.507059e+37
        %v3793 = vand.u32 %v3654, 2147483648
        %v3794 = vor.u32 1.1754944e-38, %v3793
        %v3795 = vsel %vm3792, %v3794, %v3790
        %v3796 = vmul.f32 1.0, %v3795
        %v3797 = vrcp.pop %v3655
        %v3798 = vmul.f32 %v3655, %v3797
        %v3799 = vsub.f32 1.0, %v3798
        %v3800 = vmul.f32 %v3797, %v3799
        %v3801 = vadd.f32 %v3797, %v3800
        %vm3802 = vweird.f32 %v3655
        %vm3803 = vweird.f32 %v3797
        %vm3804 = vmor %vm3802, %vm3803
        %v3805 = vsel %vm3804, %v3797, %v3801
        %v3806 = vand.u32 2147483647, %v3655
        %vm3807 = vcmp.eq.f32.partialorder %v3806, 8.507059e+37
        %v3808 = vand.u32 %v3655, 2147483648
        %v3809 = vor.u32 1.1754944e-38, %v3808
        %v3810 = vsel %vm3807, %v3809, %v3805
        %v3811 = vmul.f32 1.0, %v3810
        %v3812 = vrcp.pop %v3656
        %v3813 = vmul.f32 %v3656, %v3812
        %v3814 = vsub.f32 1.0, %v3813
        %v3815 = vmul.f32 %v3812, %v3814
        %v3816 = vadd.f32 %v3812, %v3815
        %vm3817 = vweird.f32 %v3656
        %vm3818 = vweird.f32 %v3812
        %vm3819 = vmor %vm3817, %vm3818
        %v3820 = vsel %vm3819, %v3812, %v3816
        %v3821 = vand.u32 2147483647, %v3656
        %vm3822 = vcmp.eq.f32.partialorder %v3821, 8.507059e+37
        %v3823 = vand.u32 %v3656, 2147483648
        %v3824 = vor.u32 1.1754944e-38, %v3823
        %v3825 = vsel %vm3822, %v3824, %v3820
        %v3826 = vmul.f32 1.0, %v3825
        %v3827 = vrcp.pop %v3657
        %v3828 = vmul.f32 %v3657, %v3827
        %v3829 = vsub.f32 1.0, %v3828
        %v3830 = vmul.f32 %v3827, %v3829
        %v3831 = vadd.f32 %v3827, %v3830
        %vm3832 = vweird.f32 %v3657
        %vm3833 = vweird.f32 %v3827
        %vm3834 = vmor %vm3832, %vm3833
        %v3835 = vsel %vm3834, %v3827, %v3831
        %v3836 = vand.u32 2147483647, %v3657
        %vm3837 = vcmp.eq.f32.partialorder %v3836, 8.507059e+37
        %v3838 = vand.u32 %v3657, 2147483648
        %v3839 = vor.u32 1.1754944e-38, %v3838
        %v3840 = vsel %vm3837, %v3839, %v3835
        %v3841 = vmul.f32 1.0, %v3840
        %v3842 = vrcp.pop %v3658
        %v3843 = vmul.f32 %v3658, %v3842
        %v3844 = vsub.f32 1.0, %v3843
        %v3845 = vmul.f32 %v3842, %v3844
        %v3846 = vadd.f32 %v3842, %v3845
        %vm3847 = vweird.f32 %v3658
        %vm3848 = vweird.f32 %v3842
        %vm3849 = vmor %vm3847, %vm3848
        %v3850 = vsel %vm3849, %v3842, %v3846
        %v3851 = vand.u32 2147483647, %v3658
        %vm3852 = vcmp.eq.f32.partialorder %v3851, 8.507059e+37
        %v3853 = vand.u32 %v3658, 2147483648
        %v3854 = vor.u32 1.1754944e-38, %v3853
        %v3855 = vsel %vm3852, %v3854, %v3850
        %v3856 = vmul.f32 1.0, %v3855
        %v3857 = vrcp.pop %v3659
        %v3858 = vmul.f32 %v3659, %v3857
        %v3859 = vsub.f32 1.0, %v3858
        %v3860 = vmul.f32 %v3857, %v3859
        %v3861 = vadd.f32 %v3857, %v3860
        %vm3862 = vweird.f32 %v3659
        %vm3863 = vweird.f32 %v3857
        %vm3864 = vmor %vm3862, %vm3863
        %v3865 = vsel %vm3864, %v3857, %v3861
        %v3866 = vand.u32 2147483647, %v3659
        %vm3867 = vcmp.eq.f32.partialorder %v3866, 8.507059e+37
        %v3868 = vand.u32 %v3659, 2147483648
        %v3869 = vor.u32 1.1754944e-38, %v3868
        %v3870 = vsel %vm3867, %v3869, %v3865
        %v3871 = vmul.f32 1.0, %v3870
        %v3872 = vrcp.pop %v3660
        %v3873 = vmul.f32 %v3660, %v3872
        %v3874 = vsub.f32 1.0, %v3873
        %v3875 = vmul.f32 %v3872, %v3874
        %v3876 = vadd.f32 %v3872, %v3875
        %vm3877 = vweird.f32 %v3660
        %vm3878 = vweird.f32 %v3872
        %vm3879 = vmor %vm3877, %vm3878
        %v3880 = vsel %vm3879, %v3872, %v3876
        %v3881 = vand.u32 2147483647, %v3660
        %vm3882 = vcmp.eq.f32.partialorder %v3881, 8.507059e+37
        %v3883 = vand.u32 %v3660, 2147483648
        %v3884 = vor.u32 1.1754944e-38, %v3883
        %v3885 = vsel %vm3882, %v3884, %v3880
        %v3886 = vmul.f32 1.0, %v3885
        %v3887 = vrcp.pop %v3661
        %v3888 = vmul.f32 %v3661, %v3887
        %v3889 = vsub.f32 1.0, %v3888
        %v3890 = vmul.f32 %v3887, %v3889
        %v3891 = vadd.f32 %v3887, %v3890
        %vm3892 = vweird.f32 %v3661
        %vm3893 = vweird.f32 %v3887
        %vm3894 = vmor %vm3892, %vm3893
        %v3895 = vsel %vm3894, %v3887, %v3891
        %v3896 = vand.u32 2147483647, %v3661
        %vm3897 = vcmp.eq.f32.partialorder %v3896, 8.507059e+37
        %v3898 = vand.u32 %v3661, 2147483648
        %v3899 = vor.u32 1.1754944e-38, %v3898
        %v3900 = vsel %vm3897, %v3899, %v3895
        %v3901 = vmul.f32 1.0, %v3900
        %v3902 = vmul.f32 %v3676, 1.0614054
        %v3903 = vmul.f32 %v3691, 1.0614054
        %v3904 = vmul.f32 %v3706, 1.0614054
        %v3905 = vmul.f32 %v3721, 1.0614054
        %v3906 = vmul.f32 %v3736, 1.0614054
        %v3907 = vmul.f32 %v3751, 1.0614054
        %v3908 = vmul.f32 %v3766, 1.0614054
        %v3909 = vmul.f32 %v3781, 1.0614054
        %v3910 = vmul.f32 %v3796, 1.0614054
        %v3911 = vmul.f32 %v3811, 1.0614054
        %v3912 = vmul.f32 %v3826, 1.0614054
        %v3913 = vmul.f32 %v3841, 1.0614054
        %v3914 = vmul.f32 %v3856, 1.0614054
        %v3915 = vmul.f32 %v3871, 1.0614054
        %v3916 = vmul.f32 %v3886, 1.0614054
        %v3917 = vmul.f32 %v3901, 1.0614054
        %v3918 = vadd.f32 %v3902, -1.4531521
        %v3919 = vadd.f32 %v3903, -1.4531521
        %v3920 = vadd.f32 %v3904, -1.4531521
        %v3921 = vadd.f32 %v3905, -1.4531521
        %v3922 = vadd.f32 %v3906, -1.4531521
        %v3923 = vadd.f32 %v3907, -1.4531521
        %v3924 = vadd.f32 %v3908, -1.4531521
        %v3925 = vadd.f32 %v3909, -1.4531521
        %v3926 = vadd.f32 %v3910, -1.4531521
        %v3927 = vadd.f32 %v3911, -1.4531521
        %v3928 = vadd.f32 %v3912, -1.4531521
        %v3929 = vadd.f32 %v3913, -1.4531521
        %v3930 = vadd.f32 %v3914, -1.4531521
        %v3931 = vadd.f32 %v3915, -1.4531521
        %v3932 = vadd.f32 %v3916, -1.4531521
        %v3933 = vadd.f32 %v3917, -1.4531521
        %v3934 = vmul.f32 %v3918, %v3676
        %v3935 = vmul.f32 %v3919, %v3691
        %v3936 = vmul.f32 %v3920, %v3706
        %v3937 = vmul.f32 %v3921, %v3721
        %v3938 = vmul.f32 %v3922, %v3736
        %v3939 = vmul.f32 %v3923, %v3751
        %v3940 = vmul.f32 %v3924, %v3766
        %v3941 = vmul.f32 %v3925, %v3781
        %v3942 = vmul.f32 %v3926, %v3796
        %v3943 = vmul.f32 %v3927, %v3811
        %v3944 = vmul.f32 %v3928, %v3826
        %v3945 = vmul.f32 %v3929, %v3841
        %v3946 = vmul.f32 %v3930, %v3856
        %v3947 = vmul.f32 %v3931, %v3871
        %v3948 = vmul.f32 %v3932, %v3886
        %v3949 = vmul.f32 %v3933, %v3901
        %v3950 = vadd.f32 %v3934, 1.4214138
        %v3951 = vadd.f32 %v3935, 1.4214138
        %v3952 = vadd.f32 %v3936, 1.4214138
        %v3953 = vadd.f32 %v3937, 1.4214138
        %v3954 = vadd.f32 %v3938, 1.4214138
        %v3955 = vadd.f32 %v3939, 1.4214138
        %v3956 = vadd.f32 %v3940, 1.4214138
        %v3957 = vadd.f32 %v3941, 1.4214138
        %v3958 = vadd.f32 %v3942, 1.4214138
        %v3959 = vadd.f32 %v3943, 1.4214138
        %v3960 = vadd.f32 %v3944, 1.4214138
        %v3961 = vadd.f32 %v3945, 1.4214138
        %v3962 = vadd.f32 %v3946, 1.4214138
        %v3963 = vadd.f32 %v3947, 1.4214138
        %v3964 = vadd.f32 %v3948, 1.4214138
        %v3965 = vadd.f32 %v3949, 1.4214138
        %v3966 = vmul.f32 %v3950, %v3676
        %v3967 = vmul.f32 %v3951, %v3691
        %v3968 = vmul.f32 %v3952, %v3706
        %v3969 = vmul.f32 %v3953, %v3721
        %v3970 = vmul.f32 %v3954, %v3736
        %v3971 = vmul.f32 %v3955, %v3751
        %v3972 = vmul.f32 %v3956, %v3766
        %v3973 = vmul.f32 %v3957, %v3781
        %v3974 = vmul.f32 %v3958, %v3796
        %v3975 = vmul.f32 %v3959, %v3811
        %v3976 = vmul.f32 %v3960, %v3826
        %v3977 = vmul.f32 %v3961, %v3841
        %v3978 = vmul.f32 %v3962, %v3856
        %v3979 = vmul.f32 %v3963, %v3871
        %v3980 = vmul.f32 %v3964, %v3886
        %v3981 = vmul.f32 %v3965, %v3901
        %v3982 = vadd.f32 %v3966, -0.28449672
        %v3983 = vadd.f32 %v3967, -0.28449672
        %v3984 = vadd.f32 %v3968, -0.28449672
        %v3985 = vadd.f32 %v3969, -0.28449672
        %v3986 = vadd.f32 %v3970, -0.28449672
        %v3987 = vadd.f32 %v3971, -0.28449672
        %v3988 = vadd.f32 %v3972, -0.28449672
        %v3989 = vadd.f32 %v3973, -0.28449672
        %v3990 = vadd.f32 %v3974, -0.28449672
        %v3991 = vadd.f32 %v3975, -0.28449672
        %v3992 = vadd.f32 %v3976, -0.28449672
        %v3993 = vadd.f32 %v3977, -0.28449672
        %v3994 = vadd.f32 %v3978, -0.28449672
        %v3995 = vadd.f32 %v3979, -0.28449672
        %v3996 = vadd.f32 %v3980, -0.28449672
        %v3997 = vadd.f32 %v3981, -0.28449672
        %v3998 = vmul.f32 %v3982, %v3676
        %v3999 = vmul.f32 %v3983, %v3691
        %v4000 = vmul.f32 %v3984, %v3706
        %v4001 = vmul.f32 %v3985, %v3721
        %v4002 = vmul.f32 %v3986, %v3736
        %v4003 = vmul.f32 %v3987, %v3751
        %v4004 = vmul.f32 %v3988, %v3766
        %v4005 = vmul.f32 %v3989, %v3781
        %v4006 = vmul.f32 %v3990, %v3796
        %v4007 = vmul.f32 %v3991, %v3811
        %v4008 = vmul.f32 %v3992, %v3826
        %v4009 = vmul.f32 %v3993, %v3841
        %v4010 = vmul.f32 %v3994, %v3856
        %v4011 = vmul.f32 %v3995, %v3871
        %v4012 = vmul.f32 %v3996, %v3886
        %v4013 = vmul.f32 %v3997, %v3901
        %v4014 = vadd.f32 %v3998, 0.2548296
        %v4015 = vadd.f32 %v3999, 0.2548296
        %v4016 = vadd.f32 %v4000, 0.2548296
        %v4017 = vadd.f32 %v4001, 0.2548296
        %v4018 = vadd.f32 %v4002, 0.2548296
        %v4019 = vadd.f32 %v4003, 0.2548296
        %v4020 = vadd.f32 %v4004, 0.2548296
        %v4021 = vadd.f32 %v4005, 0.2548296
        %v4022 = vadd.f32 %v4006, 0.2548296
        %v4023 = vadd.f32 %v4007, 0.2548296
        %v4024 = vadd.f32 %v4008, 0.2548296
        %v4025 = vadd.f32 %v4009, 0.2548296
        %v4026 = vadd.f32 %v4010, 0.2548296
        %v4027 = vadd.f32 %v4011, 0.2548296
        %v4028 = vadd.f32 %v4012, 0.2548296
        %v4029 = vadd.f32 %v4013, 0.2548296
        %v4030 = vmul.f32 %v4014, %v3676
        %v4031 = vmul.f32 %v4015, %v3691
        %v4032 = vmul.f32 %v4016, %v3706
        %v4033 = vmul.f32 %v4017, %v3721
        %v4034 = vmul.f32 %v4018, %v3736
        %v4035 = vmul.f32 %v4019, %v3751
        %v4036 = vmul.f32 %v4020, %v3766
        %v4037 = vmul.f32 %v4021, %v3781
        %v4038 = vmul.f32 %v4022, %v3796
        %v4039 = vmul.f32 %v4023, %v3811
        %v4040 = vmul.f32 %v4024, %v3826
        %v4041 = vmul.f32 %v4025, %v3841
        %v4042 = vmul.f32 %v4026, %v3856
        %v4043 = vmul.f32 %v4027, %v3871
        %v4044 = vmul.f32 %v4028, %v3886
        %v4045 = vmul.f32 %v4029, %v3901
        %v4046 = vsub.f32 0.0, %v3614
        %v4047 = vsub.f32 0.0, %v3615
        %v4048 = vsub.f32 0.0, %v3616
        %v4049 = vsub.f32 0.0, %v3617
        %v4050 = vsub.f32 0.0, %v3618
        %v4051 = vsub.f32 0.0, %v3619
        %v4052 = vsub.f32 0.0, %v3620
        %v4053 = vsub.f32 0.0, %v3621
        %v4054 = vsub.f32 0.0, %v3622
        %v4055 = vsub.f32 0.0, %v3623
        %v4056 = vsub.f32 0.0, %v3624
        %v4057 = vsub.f32 0.0, %v3625
        %v4058 = vsub.f32 0.0, %v3626
        %v4059 = vsub.f32 0.0, %v3627
        %v4060 = vsub.f32 0.0, %v3628
        %v4061 = vsub.f32 0.0, %v3629
        %v4062 = vmul.f32 %v4046, %v3614
        %v4063 = vmul.f32 %v4047, %v3615
        %v4064 = vmul.f32 %v4048, %v3616
        %v4065 = vmul.f32 %v4049, %v3617
        %v4066 = vmul.f32 %v4050, %v3618
        %v4067 = vmul.f32 %v4051, %v3619
        %v4068 = vmul.f32 %v4052, %v3620
        %v4069 = vmul.f32 %v4053, %v3621
        %v4070 = vmul.f32 %v4054, %v3622
        %v4071 = vmul.f32 %v4055, %v3623
        %v4072 = vmul.f32 %v4056, %v3624
        %v4073 = vmul.f32 %v4057, %v3625
        %v4074 = vmul.f32 %v4058, %v3626
        %v4075 = vmul.f32 %v4059, %v3627
        %v4076 = vmul.f32 %v4060, %v3628
        %v4077 = vmul.f32 %v4061, %v3629
        %v4078 = vmul.f32 %v4062, 1.442695
        %v4079 = vpow.pop %v4078
        %v4080 = vmul.f32 %v4063, 1.442695
        %v4081 = vpow.pop %v4080
        %v4082 = vmul.f32 %v4064, 1.442695
        %v4083 = vpow.pop %v4082
        %v4084 = vmul.f32 %v4065, 1.442695
        %v4085 = vpow.pop %v4084
        %v4086 = vmul.f32 %v4066, 1.442695
        %v4087 = vpow.pop %v4086
        %v4088 = vmul.f32 %v4067, 1.442695
        %v4089 = vpow.pop %v4088
        %v4090 = vmul.f32 %v4068, 1.442695
        %v4091 = vpow.pop %v4090
        %v4092 = vmul.f32 %v4069, 1.442695
        %v4093 = vpow.pop %v4092
        %v4094 = vmul.f32 %v4070, 1.442695
        %v4095 = vpow.pop %v4094
        %v4096 = vmul.f32 %v4071, 1.442695
        %v4097 = vpow.pop %v4096
        %v4098 = vmul.f32 %v4072, 1.442695
        %v4099 = vpow.pop %v4098
        %v4100 = vmul.f32 %v4073, 1.442695
        %v4101 = vpow.pop %v4100
        %v4102 = vmul.f32 %v4074, 1.442695
        %v4103 = vpow.pop %v4102
        %v4104 = vmul.f32 %v4075, 1.442695
        %v4105 = vpow.pop %v4104
        %v4106 = vmul.f32 %v4076, 1.442695
        %v4107 = vpow.pop %v4106
        %v4108 = vmul.f32 %v4077, 1.442695
        %v4109 = vpow.pop %v4108
        %v4110 = vmul.f32 %v4030, %v4079
        %v4111 = vmul.f32 %v4031, %v4081
        %v4112 = vmul.f32 %v4032, %v4083
        %v4113 = vmul.f32 %v4033, %v4085
        %v4114 = vmul.f32 %v4034, %v4087
        %v4115 = vmul.f32 %v4035, %v4089
        %v4116 = vmul.f32 %v4036, %v4091
        %v4117 = vmul.f32 %v4037, %v4093
        %v4118 = vmul.f32 %v4038, %v4095
        %v4119 = vmul.f32 %v4039, %v4097
        %v4120 = vmul.f32 %v4040, %v4099
        %v4121 = vmul.f32 %v4041, %v4101
        %v4122 = vmul.f32 %v4042, %v4103
        %v4123 = vmul.f32 %v4043, %v4105
        %v4124 = vmul.f32 %v4044, %v4107
        %v4125 = vmul.f32 %v4045, %v4109
        %v4126 = vsub.f32 1.0, %v4110
        %v4127 = vsub.f32 1.0, %v4111
        %v4128 = vsub.f32 1.0, %v4112
        %v4129 = vsub.f32 1.0, %v4113
        %v4130 = vsub.f32 1.0, %v4114
        %v4131 = vsub.f32 1.0, %v4115
        %v4132 = vsub.f32 1.0, %v4116
        %v4133 = vsub.f32 1.0, %v4117
        %v4134 = vsub.f32 1.0, %v4118
        %v4135 = vsub.f32 1.0, %v4119
        %v4136 = vsub.f32 1.0, %v4120
        %v4137 = vsub.f32 1.0, %v4121
        %v4138 = vsub.f32 1.0, %v4122
        %v4139 = vsub.f32 1.0, %v4123
        %v4140 = vsub.f32 1.0, %v4124
        %v4141 = vsub.f32 1.0, %v4125
        %v4142 = vmul.f32 %v3598, %v4126
        %v4143 = vmul.f32 %v3599, %v4127
        %v4144 = vmul.f32 %v3600, %v4128
        %v4145 = vmul.f32 %v3601, %v4129
        %v4146 = vmul.f32 %v3602, %v4130
        %v4147 = vmul.f32 %v3603, %v4131
        %v4148 = vmul.f32 %v3604, %v4132
        %v4149 = vmul.f32 %v3605, %v4133
        %v4150 = vmul.f32 %v3606, %v4134
        %v4151 = vmul.f32 %v3607, %v4135
        %v4152 = vmul.f32 %v3608, %v4136
        %v4153 = vmul.f32 %v3609, %v4137
        %v4154 = vmul.f32 %v3610, %v4138
        %v4155 = vmul.f32 %v3611, %v4139
        %v4156 = vmul.f32 %v3612, %v4140
        %v4157 = vmul.f32 %v3613, %v4141
        %v4158 = vadd.f32 %v4142, 1.0
        %v4159 = vadd.f32 %v4143, 1.0
        %v4160 = vadd.f32 %v4144, 1.0
        %v4161 = vadd.f32 %v4145, 1.0
        %v4162 = vadd.f32 %v4146, 1.0
        %v4163 = vadd.f32 %v4147, 1.0
        %v4164 = vadd.f32 %v4148, 1.0
        %v4165 = vadd.f32 %v4149, 1.0
        %v4166 = vadd.f32 %v4150, 1.0
        %v4167 = vadd.f32 %v4151, 1.0
        %v4168 = vadd.f32 %v4152, 1.0
        %v4169 = vadd.f32 %v4153, 1.0
        %v4170 = vadd.f32 %v4154, 1.0
        %v4171 = vadd.f32 %v4155, 1.0
        %v4172 = vadd.f32 %v4156, 1.0
        %v4173 = vadd.f32 %v4157, 1.0
        %v4174 = vmul.f32 %v3550, %v4158
        %v4175 = vmul.f32 %v3551, %v4159
        %v4176 = vmul.f32 %v3552, %v4160
        %v4177 = vmul.f32 %v3553, %v4161
        %v4178 = vmul.f32 %v3554, %v4162
        %v4179 = vmul.f32 %v3555, %v4163
        %v4180 = vmul.f32 %v3556, %v4164
        %v4181 = vmul.f32 %v3557, %v4165
        %v4182 = vmul.f32 %v3558, %v4166
        %v4183 = vmul.f32 %v3559, %v4167
        %v4184 = vmul.f32 %v3560, %v4168
        %v4185 = vmul.f32 %v3561, %v4169
        %v4186 = vmul.f32 %v3562, %v4170
        %v4187 = vmul.f32 %v3563, %v4171
        %v4188 = vmul.f32 %v3564, %v4172
        %v4189 = vmul.f32 %v3565, %v4173
        %v4190 = vpack.c.bf16 %v4178, %v4174
        %v4191 = vpack.c.bf16 %v4179, %v4175
        %v4192 = vpack.c.bf16 %v4180, %v4176
        %v4193 = vpack.c.bf16 %v4181, %v4177
        %v4194 = vpack.c.bf16 %v4186, %v4182
        %v4195 = vpack.c.bf16 %v4187, %v4183
        %v4196 = vpack.c.bf16 %v4188, %v4184
        %v4197 = vpack.c.bf16 %v4189, %v4185
        %v4198 = vld [vmem:[%s890] sm:$0xff]
        %v4199 = vld [vmem:[%s890 + $0x8] sm:$0xff]
        %v4200 = vld [vmem:[%s890 + $0x10] sm:$0xff]
        %v4201 = vld [vmem:[%s890 + $0x18] sm:$0xff]
        %v4202 = vld [vmem:[%s890 + $0x20] sm:$0xff]
        %v4203 = vld [vmem:[%s890 + $0x28] sm:$0xff]
        %v4204 = vld [vmem:[%s890 + $0x30] sm:$0xff]
        %v4205 = vld [vmem:[%s890 + $0x38] sm:$0xff]
        %v4206 = vld [vmem:[%s890 + $0x40] sm:$0xff]
        %v4207 = vld [vmem:[%s890 + $0x48] sm:$0xff]
        %v4208 = vld [vmem:[%s890 + $0x50] sm:$0xff]
        %v4209 = vld [vmem:[%s890 + $0x58] sm:$0xff]
        %v4210 = vld [vmem:[%s890 + $0x60] sm:$0xff]
        %v4211 = vld [vmem:[%s890 + $0x68] sm:$0xff]
        %v4212 = vld [vmem:[%s890 + $0x70] sm:$0xff]
        %v4213 = vld [vmem:[%s890 + $0x78] sm:$0xff]
        %v4214 = vld [vmem:[%s890 + $0x80] sm:$0xff]
        %v4215 = vld [vmem:[%s890 + $0x88] sm:$0xff]
        %v4216 = vld [vmem:[%s890 + $0x90] sm:$0xff]
        %v4217 = vld [vmem:[%s890 + $0x98] sm:$0xff]
        %v4218 = vld [vmem:[%s890 + $0xa0] sm:$0xff]
        %v4219 = vld [vmem:[%s890 + $0xa8] sm:$0xff]
        %v4220 = vld [vmem:[%s890 + $0xb0] sm:$0xff]
        %v4221 = vld [vmem:[%s890 + $0xb8] sm:$0xff]
        %v4222 = vld [vmem:[%s890 + $0xc0] sm:$0xff]
        %v4223 = vld [vmem:[%s890 + $0xc8] sm:$0xff]
        %v4224 = vld [vmem:[%s890 + $0xd0] sm:$0xff]
        %v4225 = vld [vmem:[%s890 + $0xd8] sm:$0xff]
        %v4226 = vld [vmem:[%s890 + $0xe0] sm:$0xff]
        %v4227 = vld [vmem:[%s890 + $0xe8] sm:$0xff]
        %v4228 = vld [vmem:[%s890 + $0xf0] sm:$0xff]
        %v4229 = vld [vmem:[%s890 + $0xf8] sm:$0xff]
        %v4230 = vld [vmem:[%s890 + $0x100] sm:$0xff]
        %v4231 = vld [vmem:[%s890 + $0x108] sm:$0xff]
        %v4232 = vld [vmem:[%s890 + $0x110] sm:$0xff]
        %v4233 = vld [vmem:[%s890 + $0x118] sm:$0xff]
        %v4234 = vld [vmem:[%s890 + $0x120] sm:$0xff]
        %v4235 = vld [vmem:[%s890 + $0x128] sm:$0xff]
        %v4236 = vld [vmem:[%s890 + $0x130] sm:$0xff]
        %v4237 = vld [vmem:[%s890 + $0x138] sm:$0xff]
        %v4238 = vld [vmem:[%s890 + $0x140] sm:$0xff]
        %v4239 = vld [vmem:[%s890 + $0x148] sm:$0xff]
        %v4240 = vld [vmem:[%s890 + $0x150] sm:$0xff]
        %v4241 = vld [vmem:[%s890 + $0x158] sm:$0xff]
        %v4242 = vld [vmem:[%s890 + $0x160] sm:$0xff]
        %v4243 = vld [vmem:[%s890 + $0x168] sm:$0xff]
        %v4244 = vld [vmem:[%s890 + $0x170] sm:$0xff]
        %v4245 = vld [vmem:[%s890 + $0x178] sm:$0xff]
        %v4246 = vld [vmem:[%s890 + $0x180] sm:$0xff]
        %v4247 = vld [vmem:[%s890 + $0x188] sm:$0xff]
        %v4248 = vld [vmem:[%s890 + $0x190] sm:$0xff]
        %v4249 = vld [vmem:[%s890 + $0x198] sm:$0xff]
        %v4250 = vld [vmem:[%s890 + $0x1a0] sm:$0xff]
        %v4251 = vld [vmem:[%s890 + $0x1a8] sm:$0xff]
        %v4252 = vld [vmem:[%s890 + $0x1b0] sm:$0xff]
        %v4253 = vld [vmem:[%s890 + $0x1b8] sm:$0xff]
        %v4254 = vld [vmem:[%s890 + $0x1c0] sm:$0xff]
        %v4255 = vld [vmem:[%s890 + $0x1c8] sm:$0xff]
        %v4256 = vld [vmem:[%s890 + $0x1d0] sm:$0xff]
        %v4257 = vld [vmem:[%s890 + $0x1d8] sm:$0xff]
        %v4258 = vld [vmem:[%s890 + $0x1e0] sm:$0xff]
        %v4259 = vld [vmem:[%s890 + $0x1e8] sm:$0xff]
        %v4260 = vld [vmem:[%s890 + $0x1f0] sm:$0xff]
        %v4261 = vld [vmem:[%s890 + $0x1f8] sm:$0xff]
        %v4262 = vld [vmem:[%s900] sm:$0x3]
        %v4264 = vperm.slane %v4262, 0
        %v4265 = vperm.slane %v4262, 1
        %v4332 = vunpack.c.l.b16 %v4198
        %v4333 = vunpack.c.h.b16 %v4198
        %v4334 = vunpack.c.l.b16 %v4199
        %v4335 = vunpack.c.h.b16 %v4199
        %v4336 = vunpack.c.l.b16 %v4200
        %v4337 = vunpack.c.h.b16 %v4200
        %v4338 = vunpack.c.l.b16 %v4201
        %v4339 = vunpack.c.h.b16 %v4201
        %v4340 = vunpack.c.l.b16 %v4202
        %v4341 = vunpack.c.h.b16 %v4202
        %v4342 = vunpack.c.l.b16 %v4203
        %v4343 = vunpack.c.h.b16 %v4203
        %v4344 = vunpack.c.l.b16 %v4204
        %v4345 = vunpack.c.h.b16 %v4204
        %v4346 = vunpack.c.l.b16 %v4205
        %v4347 = vunpack.c.h.b16 %v4205
        %v4348 = vunpack.c.l.b16 %v4206
        %v4349 = vunpack.c.h.b16 %v4206
        %v4350 = vunpack.c.l.b16 %v4207
        %v4351 = vunpack.c.h.b16 %v4207
        %v4352 = vunpack.c.l.b16 %v4208
        %v4353 = vunpack.c.h.b16 %v4208
        %v4354 = vunpack.c.l.b16 %v4209
        %v4355 = vunpack.c.h.b16 %v4209
        %v4356 = vunpack.c.l.b16 %v4210
        %v4357 = vunpack.c.h.b16 %v4210
        %v4358 = vunpack.c.l.b16 %v4211
        %v4359 = vunpack.c.h.b16 %v4211
        %v4360 = vunpack.c.l.b16 %v4212
        %v4361 = vunpack.c.h.b16 %v4212
        %v4362 = vunpack.c.l.b16 %v4213
        %v4363 = vunpack.c.h.b16 %v4213
        %v4364 = vunpack.c.l.b16 %v4214
        %v4365 = vunpack.c.h.b16 %v4214
        %v4366 = vunpack.c.l.b16 %v4215
        %v4367 = vunpack.c.h.b16 %v4215
        %v4368 = vunpack.c.l.b16 %v4216
        %v4369 = vunpack.c.h.b16 %v4216
        %v4370 = vunpack.c.l.b16 %v4217
        %v4371 = vunpack.c.h.b16 %v4217
        %v4372 = vunpack.c.l.b16 %v4218
        %v4373 = vunpack.c.h.b16 %v4218
        %v4374 = vunpack.c.l.b16 %v4219
        %v4375 = vunpack.c.h.b16 %v4219
        %v4376 = vunpack.c.l.b16 %v4220
        %v4377 = vunpack.c.h.b16 %v4220
        %v4378 = vunpack.c.l.b16 %v4221
        %v4379 = vunpack.c.h.b16 %v4221
        %v4380 = vunpack.c.l.b16 %v4222
        %v4381 = vunpack.c.h.b16 %v4222
        %v4382 = vunpack.c.l.b16 %v4223
        %v4383 = vunpack.c.h.b16 %v4223
        %v4384 = vunpack.c.l.b16 %v4224
        %v4385 = vunpack.c.h.b16 %v4224
        %v4386 = vunpack.c.l.b16 %v4225
        %v4387 = vunpack.c.h.b16 %v4225
        %v4388 = vunpack.c.l.b16 %v4226
        %v4389 = vunpack.c.h.b16 %v4226
        %v4390 = vunpack.c.l.b16 %v4227
        %v4391 = vunpack.c.h.b16 %v4227
        %v4392 = vunpack.c.l.b16 %v4228
        %v4393 = vunpack.c.h.b16 %v4228
        %v4394 = vunpack.c.l.b16 %v4229
        %v4395 = vunpack.c.h.b16 %v4229
        %v4396 = vunpack.c.l.b16 %v4230
        %v4397 = vunpack.c.h.b16 %v4230
        %v4398 = vunpack.c.l.b16 %v4231
        %v4399 = vunpack.c.h.b16 %v4231
        %v4400 = vunpack.c.l.b16 %v4232
        %v4401 = vunpack.c.h.b16 %v4232
        %v4402 = vunpack.c.l.b16 %v4233
        %v4403 = vunpack.c.h.b16 %v4233
        %v4404 = vunpack.c.l.b16 %v4234
        %v4405 = vunpack.c.h.b16 %v4234
        %v4406 = vunpack.c.l.b16 %v4235
        %v4407 = vunpack.c.h.b16 %v4235
        %v4408 = vunpack.c.l.b16 %v4236
        %v4409 = vunpack.c.h.b16 %v4236
        %v4410 = vunpack.c.l.b16 %v4237
        %v4411 = vunpack.c.h.b16 %v4237
        %v4412 = vunpack.c.l.b16 %v4238
        %v4413 = vunpack.c.h.b16 %v4238
        %v4414 = vunpack.c.l.b16 %v4239
        %v4415 = vunpack.c.h.b16 %v4239
        %v4416 = vunpack.c.l.b16 %v4240
        %v4417 = vunpack.c.h.b16 %v4240
        %v4418 = vunpack.c.l.b16 %v4241
        %v4419 = vunpack.c.h.b16 %v4241
        %v4420 = vunpack.c.l.b16 %v4242
        %v4421 = vunpack.c.h.b16 %v4242
        %v4422 = vunpack.c.l.b16 %v4243
        %v4423 = vunpack.c.h.b16 %v4243
        %v4424 = vunpack.c.l.b16 %v4244
        %v4425 = vunpack.c.h.b16 %v4244
        %v4426 = vunpack.c.l.b16 %v4245
        %v4427 = vunpack.c.h.b16 %v4245
        %v4428 = vunpack.c.l.b16 %v4246
        %v4429 = vunpack.c.h.b16 %v4246
        %v4430 = vunpack.c.l.b16 %v4247
        %v4431 = vunpack.c.h.b16 %v4247
        %v4432 = vunpack.c.l.b16 %v4248
        %v4433 = vunpack.c.h.b16 %v4248
        %v4434 = vunpack.c.l.b16 %v4249
        %v4435 = vunpack.c.h.b16 %v4249
        %v4436 = vunpack.c.l.b16 %v4250
        %v4437 = vunpack.c.h.b16 %v4250
        %v4438 = vunpack.c.l.b16 %v4251
        %v4439 = vunpack.c.h.b16 %v4251
        %v4440 = vunpack.c.l.b16 %v4252
        %v4441 = vunpack.c.h.b16 %v4252
        %v4442 = vunpack.c.l.b16 %v4253
        %v4443 = vunpack.c.h.b16 %v4253
        %v4444 = vunpack.c.l.b16 %v4254
        %v4445 = vunpack.c.h.b16 %v4254
        %v4446 = vunpack.c.l.b16 %v4255
        %v4447 = vunpack.c.h.b16 %v4255
        %v4448 = vunpack.c.l.b16 %v4256
        %v4449 = vunpack.c.h.b16 %v4256
        %v4450 = vunpack.c.l.b16 %v4257
        %v4451 = vunpack.c.h.b16 %v4257
        %v4452 = vunpack.c.l.b16 %v4258
        %v4453 = vunpack.c.h.b16 %v4258
        %v4454 = vunpack.c.l.b16 %v4259
        %v4455 = vunpack.c.h.b16 %v4259
        %v4456 = vunpack.c.l.b16 %v4260
        %v4457 = vunpack.c.h.b16 %v4260
        %v4458 = vunpack.c.l.b16 %v4261
        %v4459 = vunpack.c.h.b16 %v4261
        %v4460 = vpack.c.b16 %v4334, %v4332
        %v4461 = vpack.c.b16 %v4335, %v4333
        %v4462 = vpack.c.b16 %v4338, %v4336
        %v4463 = vpack.c.b16 %v4339, %v4337
        %v4464 = vpack.c.b16 %v4342, %v4340
        %v4465 = vpack.c.b16 %v4343, %v4341
        %v4466 = vpack.c.b16 %v4346, %v4344
        %v4467 = vpack.c.b16 %v4347, %v4345
        %v4468 = vpack.c.b16 %v4350, %v4348
        %v4469 = vpack.c.b16 %v4351, %v4349
        %v4470 = vpack.c.b16 %v4354, %v4352
        %v4471 = vpack.c.b16 %v4355, %v4353
        %v4472 = vpack.c.b16 %v4358, %v4356
        %v4473 = vpack.c.b16 %v4359, %v4357
        %v4474 = vpack.c.b16 %v4362, %v4360
        %v4475 = vpack.c.b16 %v4363, %v4361
        %v4476 = vpack.c.b16 %v4366, %v4364
        %v4477 = vpack.c.b16 %v4367, %v4365
        %v4478 = vpack.c.b16 %v4370, %v4368
        %v4479 = vpack.c.b16 %v4371, %v4369
        %v4480 = vpack.c.b16 %v4374, %v4372
        %v4481 = vpack.c.b16 %v4375, %v4373
        %v4482 = vpack.c.b16 %v4378, %v4376
        %v4483 = vpack.c.b16 %v4379, %v4377
        %v4484 = vpack.c.b16 %v4382, %v4380
        %v4485 = vpack.c.b16 %v4383, %v4381
        %v4486 = vpack.c.b16 %v4386, %v4384
        %v4487 = vpack.c.b16 %v4387, %v4385
        %v4488 = vpack.c.b16 %v4390, %v4388
        %v4489 = vpack.c.b16 %v4391, %v4389
        %v4490 = vpack.c.b16 %v4394, %v4392
        %v4491 = vpack.c.b16 %v4395, %v4393
        %v4492 = vpack.c.b16 %v4398, %v4396
        %v4493 = vpack.c.b16 %v4399, %v4397
        %v4494 = vpack.c.b16 %v4402, %v4400
        %v4495 = vpack.c.b16 %v4403, %v4401
        %v4496 = vpack.c.b16 %v4406, %v4404
        %v4497 = vpack.c.b16 %v4407, %v4405
        %v4498 = vpack.c.b16 %v4410, %v4408
        %v4499 = vpack.c.b16 %v4411, %v4409
        %v4500 = vpack.c.b16 %v4414, %v4412
        %v4501 = vpack.c.b16 %v4415, %v4413
        %v4502 = vpack.c.b16 %v4418, %v4416
        %v4503 = vpack.c.b16 %v4419, %v4417
        %v4504 = vpack.c.b16 %v4422, %v4420
        %v4505 = vpack.c.b16 %v4423, %v4421
        %v4506 = vpack.c.b16 %v4426, %v4424
        %v4507 = vpack.c.b16 %v4427, %v4425
        %v4508 = vpack.c.b16 %v4430, %v4428
        %v4509 = vpack.c.b16 %v4431, %v4429
        %v4510 = vpack.c.b16 %v4434, %v4432
        %v4511 = vpack.c.b16 %v4435, %v4433
        %v4512 = vpack.c.b16 %v4438, %v4436
        %v4513 = vpack.c.b16 %v4439, %v4437
        %v4514 = vpack.c.b16 %v4442, %v4440
        %v4515 = vpack.c.b16 %v4443, %v4441
        %v4516 = vpack.c.b16 %v4446, %v4444
        %v4517 = vpack.c.b16 %v4447, %v4445
        %v4518 = vpack.c.b16 %v4450, %v4448
        %v4519 = vpack.c.b16 %v4451, %v4449
        %v4520 = vpack.c.b16 %v4454, %v4452
        %v4521 = vpack.c.b16 %v4455, %v4453
        %v4522 = vpack.c.b16 %v4458, %v4456
        %v4523 = vpack.c.b16 %v4459, %v4457
        %4588 = vmatpush.bf16.msra.mxu0 %v4474
        %4589 = vmatpush.bf16.msra.mxu0 %v4472
        %4590 = vmatpush.bf16.msra.mxu0 %v4470
        %4591 = vmatpush.bf16.msra.mxu0 %v4468
        %4592 = vmatpush.bf16.msra.mxu0 %v4466
        %4593 = vmatpush.bf16.msra.mxu0 %v4464
        %4594 = vmatpush.bf16.msra.mxu0 %v4462
        %4595 = vmatpush.bf16.msra.mxu0 %v4460
        %4596 = vmatmul.bf16.gmra.mxu0 %v4190
        %v4597 = vpop.f32.mrf.mxu0
        %v4598 = vadd.f32 %v4264, %v4597
        %v4599 = vpop.f32.mrf.mxu0
        %v4600 = vadd.f32 %v4264, %v4599
        %4601 = vmatmul.bf16.gmra.mxu0 %v4194
        %v4602 = vpop.f32.mrf.mxu0
        %v4603 = vadd.f32 %v4264, %v4602
        %v4604 = vpop.f32.mrf.mxu0
        %v4605 = vadd.f32 %v4264, %v4604
        %4606 = vdwg.mxu0
        %4607 = vmatpush.bf16.msra.mxu0 %v4490
        %4608 = vmatpush.bf16.msra.mxu0 %v4488
        %4609 = vmatpush.bf16.msra.mxu0 %v4486
        %4610 = vmatpush.bf16.msra.mxu0 %v4484
        %4611 = vmatpush.bf16.msra.mxu0 %v4482
        %4612 = vmatpush.bf16.msra.mxu0 %v4480
        %4613 = vmatpush.bf16.msra.mxu0 %v4478
        %4614 = vmatpush.bf16.msra.mxu0 %v4476
        %4615 = vmatmul.bf16.gmra.mxu0 %v4191
        %v4616 = vpop.f32.mrf.mxu0
        %v4617 = vadd.f32 %v4598, %v4616
        %v4618 = vpop.f32.mrf.mxu0
        %v4619 = vadd.f32 %v4600, %v4618
        %4620 = vmatmul.bf16.gmra.mxu0 %v4195
        %v4621 = vpop.f32.mrf.mxu0
        %v4622 = vadd.f32 %v4603, %v4621
        %v4623 = vpop.f32.mrf.mxu0
        %v4624 = vadd.f32 %v4605, %v4623
        %4625 = vdwg.mxu0
        %4626 = vmatpush.bf16.msra.mxu0 %v4506
        %4627 = vmatpush.bf16.msra.mxu0 %v4504
        %4628 = vmatpush.bf16.msra.mxu0 %v4502
        %4629 = vmatpush.bf16.msra.mxu0 %v4500
        %4630 = vmatpush.bf16.msra.mxu0 %v4498
        %4631 = vmatpush.bf16.msra.mxu0 %v4496
        %4632 = vmatpush.bf16.msra.mxu0 %v4494
        %4633 = vmatpush.bf16.msra.mxu0 %v4492
        %4634 = vmatmul.bf16.gmra.mxu0 %v4192
        %v4635 = vpop.f32.mrf.mxu0
        %v4636 = vadd.f32 %v4617, %v4635
        %v4637 = vpop.f32.mrf.mxu0
        %v4638 = vadd.f32 %v4619, %v4637
        %4639 = vmatmul.bf16.gmra.mxu0 %v4196
        %v4640 = vpop.f32.mrf.mxu0
        %v4641 = vadd.f32 %v4622, %v4640
        %v4642 = vpop.f32.mrf.mxu0
        %v4643 = vadd.f32 %v4624, %v4642
        %4644 = vdwg.mxu0
        %4645 = vmatpush.bf16.msra.mxu0 %v4522
        %4646 = vmatpush.bf16.msra.mxu0 %v4520
        %4647 = vmatpush.bf16.msra.mxu0 %v4518
        %4648 = vmatpush.bf16.msra.mxu0 %v4516
        %4649 = vmatpush.bf16.msra.mxu0 %v4514
        %4650 = vmatpush.bf16.msra.mxu0 %v4512
        %4651 = vmatpush.bf16.msra.mxu0 %v4510
        %4652 = vmatpush.bf16.msra.mxu0 %v4508
        %4653 = vmatmul.bf16.gmra.mxu0 %v4193
        %v4654 = vpop.f32.mrf.mxu0
        %v4655 = vadd.f32 %v4636, %v4654
        %v4656 = vpop.f32.mrf.mxu0
        %v4657 = vadd.f32 %v4638, %v4656
        %4658 = vmatmul.bf16.gmra.mxu0 %v4197
        %v4659 = vpop.f32.mrf.mxu0
        %v4660 = vadd.f32 %v4641, %v4659
        %v4661 = vpop.f32.mrf.mxu0
        %v4662 = vadd.f32 %v4643, %v4661
        %4663 = vdwg.mxu0
        %4664 = vmatpush.bf16.msra.mxu0 %v4475
        %4665 = vmatpush.bf16.msra.mxu0 %v4473
        %4666 = vmatpush.bf16.msra.mxu0 %v4471
        %4667 = vmatpush.bf16.msra.mxu0 %v4469
        %4668 = vmatpush.bf16.msra.mxu0 %v4467
        %4669 = vmatpush.bf16.msra.mxu0 %v4465
        %4670 = vmatpush.bf16.msra.mxu0 %v4463
        %4671 = vmatpush.bf16.msra.mxu0 %v4461
        %4672 = vmatmul.bf16.gmra.mxu0 %v4190
        %v4673 = vpop.f32.mrf.mxu0
        %v4674 = vadd.f32 %v4265, %v4673
        %v4675 = vpop.f32.mrf.mxu0
        %v4676 = vadd.f32 %v4265, %v4675
        %4677 = vmatmul.bf16.gmra.mxu0 %v4194
        %v4678 = vpop.f32.mrf.mxu0
        %v4679 = vadd.f32 %v4265, %v4678
        %v4680 = vpop.f32.mrf.mxu0
        %v4681 = vadd.f32 %v4265, %v4680
        %4682 = vdwg.mxu0
        %4683 = vmatpush.bf16.msra.mxu0 %v4491
        %4684 = vmatpush.bf16.msra.mxu0 %v4489
        %4685 = vmatpush.bf16.msra.mxu0 %v4487
        %4686 = vmatpush.bf16.msra.mxu0 %v4485
        %4687 = vmatpush.bf16.msra.mxu0 %v4483
        %4688 = vmatpush.bf16.msra.mxu0 %v4481
        %4689 = vmatpush.bf16.msra.mxu0 %v4479
        %4690 = vmatpush.bf16.msra.mxu0 %v4477
        %4691 = vmatmul.bf16.gmra.mxu0 %v4191
        %v4692 = vpop.f32.mrf.mxu0
        %v4693 = vadd.f32 %v4674, %v4692
        %v4694 = vpop.f32.mrf.mxu0
        %v4695 = vadd.f32 %v4676, %v4694
        %4696 = vmatmul.bf16.gmra.mxu0 %v4195
        %v4697 = vpop.f32.mrf.mxu0
        %v4698 = vadd.f32 %v4679, %v4697
        %v4699 = vpop.f32.mrf.mxu0
        %v4700 = vadd.f32 %v4681, %v4699
        %4701 = vdwg.mxu0
        %4702 = vmatpush.bf16.msra.mxu0 %v4507
        %4703 = vmatpush.bf16.msra.mxu0 %v4505
        %4704 = vmatpush.bf16.msra.mxu0 %v4503
        %4705 = vmatpush.bf16.msra.mxu0 %v4501
        %4706 = vmatpush.bf16.msra.mxu0 %v4499
        %4707 = vmatpush.bf16.msra.mxu0 %v4497
        %4708 = vmatpush.bf16.msra.mxu0 %v4495
        %4709 = vmatpush.bf16.msra.mxu0 %v4493
        %4710 = vmatmul.bf16.gmra.mxu0 %v4192
        %v4711 = vpop.f32.mrf.mxu0
        %v4712 = vadd.f32 %v4693, %v4711
        %v4713 = vpop.f32.mrf.mxu0
        %v4714 = vadd.f32 %v4695, %v4713
        %4715 = vmatmul.bf16.gmra.mxu0 %v4196
        %v4716 = vpop.f32.mrf.mxu0
        %v4717 = vadd.f32 %v4698, %v4716
        %v4718 = vpop.f32.mrf.mxu0
        %v4719 = vadd.f32 %v4700, %v4718
        %4720 = vdwg.mxu0
        %4721 = vmatpush.bf16.msra.mxu0 %v4523
        %4722 = vmatpush.bf16.msra.mxu0 %v4521
        %4723 = vmatpush.bf16.msra.mxu0 %v4519
        %4724 = vmatpush.bf16.msra.mxu0 %v4517
        %4725 = vmatpush.bf16.msra.mxu0 %v4515
        %4726 = vmatpush.bf16.msra.mxu0 %v4513
        %4727 = vmatpush.bf16.msra.mxu0 %v4511
        %4728 = vmatpush.bf16.msra.mxu0 %v4509
        %4729 = vmatmul.bf16.gmra.mxu0 %v4193
        %v4730 = vpop.f32.mrf.mxu0
        %v4731 = vadd.f32 %v4712, %v4730
        %v4732 = vpop.f32.mrf.mxu0
        %v4733 = vadd.f32 %v4714, %v4732
        %4734 = vmatmul.bf16.gmra.mxu0 %v4197
        %v4735 = vpop.f32.mrf.mxu0
        %v4736 = vadd.f32 %v4717, %v4735
        %v4737 = vpop.f32.mrf.mxu0
        %v4738 = vadd.f32 %v4719, %v4737
        %4739 = vdwg.mxu0
        %v4740 = vld [vmem:[%s910] sm:$0x3]
        %v4741 = vld [vmem:[%s1022] sm:$0x3]
        %v4742 = vadd.f32 %v4655, %v4731
        %4743 = vadd.xlane.f32.xlu0 %v4742
        %v4744 = vpop.xlane.xlu0 %4743
        %v4745 = vadd.f32 %v4657, %v4733
        %4746 = vadd.xlane.f32.xlu0 %v4745
        %v4747 = vpop.xlane.xlu0 %4746
        %v4748 = vadd.f32 %v4660, %v4736
        %4749 = vadd.xlane.f32.xlu0 %v4748
        %v4750 = vpop.xlane.xlu0 %4749
        %v4751 = vadd.f32 %v4662, %v4738
        %4752 = vadd.xlane.f32.xlu0 %v4751
        %v4753 = vpop.xlane.xlu0 %4752
        %v4754 = vmul.f32 %v4744, %v1320
        %v4755 = vmul.f32 %v4747, %v1320
        %v4756 = vmul.f32 %v4750, %v1320
        %v4757 = vmul.f32 %v4753, %v1320
        %v4758 = vsub.f32 %v4655, %v4754
        %v4759 = vsub.f32 %v4731, %v4754
        %v4760 = vsub.f32 %v4657, %v4755
        %v4761 = vsub.f32 %v4733, %v4755
        %v4762 = vsub.f32 %v4660, %v4756
        %v4763 = vsub.f32 %v4736, %v4756
        %v4764 = vsub.f32 %v4662, %v4757
        %v4765 = vsub.f32 %v4738, %v4757
        %v4766 = vmul.f32 %v4758, %v4758
        %v4767 = vmul.f32 %v4759, %v4759
        %v4768 = vmul.f32 %v4760, %v4760
        %v4769 = vmul.f32 %v4761, %v4761
        %v4770 = vmul.f32 %v4762, %v4762
        %v4771 = vmul.f32 %v4763, %v4763
        %v4772 = vmul.f32 %v4764, %v4764
        %v4773 = vmul.f32 %v4765, %v4765
        %v4774 = vadd.f32 %v4766, %v4767
        %4775 = vadd.xlane.f32.xlu0 %v4774
        %v4776 = vpop.xlane.xlu0 %4775
        %v4777 = vadd.f32 %v4768, %v4769
        %4778 = vadd.xlane.f32.xlu0 %v4777
        %v4779 = vpop.xlane.xlu0 %4778
        %v4780 = vadd.f32 %v4770, %v4771
        %4781 = vadd.xlane.f32.xlu0 %v4780
        %v4782 = vpop.xlane.xlu0 %4781
        %v4783 = vadd.f32 %v4772, %v4773
        %4784 = vadd.xlane.f32.xlu0 %v4783
        %v4785 = vpop.xlane.xlu0 %4784
        %v4786 = vmul.f32 %v4776, %v1320
        %v4787 = vmul.f32 %v4779, %v1320
        %v4788 = vmul.f32 %v4782, %v1320
        %v4789 = vmul.f32 %v4785, %v1320
        %v4790 = vadd.f32 %v4786, 1e-05
        %v4791 = vadd.f32 %v4787, 1e-05
        %v4792 = vadd.f32 %v4788, 1e-05
        %v4793 = vadd.f32 %v4789, 1e-05
        %v4794 = vrsqrt.pop %v4790
        %v4795 = vmul.f32 %v4794, %v4790
        %v4796 = vmul.f32 %v4795, %v4794
        %v4797 = vmul.f32 0.5, %v4796
        %v4798 = vsub.f32 1.5, %v4797
        %v4799 = vmul.f32 %v4794, %v4798
        %vm4800 = vweird.f32 %v4790
        %vm4801 = vweird.f32 %v4794
        %vm4802 = vmor %vm4800, %vm4801
        %v4803 = vsel %vm4802, %v4794, %v4799
        %v4804 = vrsqrt.pop %v4791
        %v4805 = vmul.f32 %v4804, %v4791
        %v4806 = vmul.f32 %v4805, %v4804
        %v4807 = vmul.f32 0.5, %v4806
        %v4808 = vsub.f32 1.5, %v4807
        %v4809 = vmul.f32 %v4804, %v4808
        %vm4810 = vweird.f32 %v4791
        %vm4811 = vweird.f32 %v4804
        %vm4812 = vmor %vm4810, %vm4811
        %v4813 = vsel %vm4812, %v4804, %v4809
        %v4814 = vrsqrt.pop %v4792
        %v4815 = vmul.f32 %v4814, %v4792
        %v4816 = vmul.f32 %v4815, %v4814
        %v4817 = vmul.f32 0.5, %v4816
        %v4818 = vsub.f32 1.5, %v4817
        %v4819 = vmul.f32 %v4814, %v4818
        %vm4820 = vweird.f32 %v4792
        %vm4821 = vweird.f32 %v4814
        %vm4822 = vmor %vm4820, %vm4821
        %v4823 = vsel %vm4822, %v4814, %v4819
        %v4824 = vrsqrt.pop %v4793
        %v4825 = vmul.f32 %v4824, %v4793
        %v4826 = vmul.f32 %v4825, %v4824
        %v4827 = vmul.f32 0.5, %v4826
        %v4828 = vsub.f32 1.5, %v4827
        %v4829 = vmul.f32 %v4824, %v4828
        %vm4830 = vweird.f32 %v4793
        %vm4831 = vweird.f32 %v4824
        %vm4832 = vmor %vm4830, %vm4831
        %v4833 = vsel %vm4832, %v4824, %v4829
        %v4834 = vmul.f32 %v4758, %v4803
        %v4835 = vmul.f32 %v4759, %v4803
        %v4836 = vmul.f32 %v4760, %v4813
        %v4837 = vmul.f32 %v4761, %v4813
        %v4838 = vmul.f32 %v4762, %v4823
        %v4839 = vmul.f32 %v4763, %v4823
        %v4840 = vmul.f32 %v4764, %v4833
        %v4841 = vmul.f32 %v4765, %v4833
        %v4843 = vperm.slane %v4740, 0
        %v4844 = vperm.slane %v4740, 1
        %v4847 = vmul.f32 %v4834, %v4843
        %v4848 = vmul.f32 %v4835, %v4844
        %v4849 = vmul.f32 %v4836, %v4843
        %v4850 = vmul.f32 %v4837, %v4844
        %v4851 = vmul.f32 %v4838, %v4843
        %v4852 = vmul.f32 %v4839, %v4844
        %v4853 = vmul.f32 %v4840, %v4843
        %v4854 = vmul.f32 %v4841, %v4844
        %v4856 = vperm.slane %v4741, 0
        %v4857 = vperm.slane %v4741, 1
        %v4860 = vadd.f32 %v4847, %v4856
        %v4861 = vadd.f32 %v4848, %v4857
        %v4862 = vadd.f32 %v4849, %v4856
        %v4863 = vadd.f32 %v4850, %v4857
        %v4864 = vadd.f32 %v4851, %v4856
        %v4865 = vadd.f32 %v4852, %v4857
        %v4866 = vadd.f32 %v4853, %v4856
        %v4867 = vadd.f32 %v4854, %v4857
        %v4868 = vadd.f32 %v4655, %v4860
        %v4869 = vadd.f32 %v4731, %v4861
        %v4870 = vadd.f32 %v4657, %v4862
        %v4871 = vadd.f32 %v4733, %v4863
        %v4872 = vadd.f32 %v4660, %v4864
        %v4873 = vadd.f32 %v4736, %v4865
        %v4874 = vadd.f32 %v4662, %v4866
        %v4875 = vadd.f32 %v4738, %v4867
        %4876 = vst [vmem:[#allocation2] sm:$0xff] %v4868
        %4877 = vst [vmem:[#allocation2 + $0x8] sm:$0xff] %v4869
        %4878 = vst [vmem:[#allocation2 + $0x10] sm:$0xff] %v4870
        %4879 = vst [vmem:[#allocation2 + $0x18] sm:$0xff] %v4871
        %4880 = vst [vmem:[#allocation2 + $0x20] sm:$0xff] %v4872
        %4881 = vst [vmem:[#allocation2 + $0x28] sm:$0xff] %v4873
        %4882 = vst [vmem:[#allocation2 + $0x30] sm:$0xff] %v4874
        %4883 = vst [vmem:[#allocation2 + $0x38] sm:$0xff] %v4875
        %p4884 = scmp.eq.s32.totalorder %s34, 1
        // Predicated region
        $region157: #{tpu_custom_call.1} parent=91 // pred_check
          %p4885 = pneg %p4884
        $region158: #{tpu_custom_call.1} parent=91 // pred_check_branch
          %4887 = sbr.rel (%p4885) target = $region160
        $region159: #{tpu_custom_call.1} parent=91 // pred_region
          %4888 = vst [vmem:[#allocation23] sm:$0xff] %v4868
          %4889 = vst [vmem:[#allocation23 + $0x8] sm:$0xff] %v4869
          %4890 = vst [vmem:[#allocation23 + $0x10] sm:$0xff] %v4870
          %4891 = vst [vmem:[#allocation23 + $0x18] sm:$0xff] %v4871
          %4892 = vst [vmem:[#allocation23 + $0x20] sm:$0xff] %v4872
          %4893 = vst [vmem:[#allocation23 + $0x28] sm:$0xff] %v4873
          %4894 = vst [vmem:[#allocation23 + $0x30] sm:$0xff] %v4874
          %4895 = vst [vmem:[#allocation23 + $0x38] sm:$0xff] %v4875
        $region160: #{tpu_custom_call.1} parent=91 // pred_fallthru
          _
        // Predicated region
        $region161: #{tpu_custom_call.1} parent=91 // pred_check
          %p4896 = pneg %p485
        $region162: #{tpu_custom_call.1} parent=91 // pred_check_branch
          %4898 = sbr.rel (%p4896) target = $region164
        $region163: #{tpu_custom_call.1} parent=91 // pred_region
          %4900 = vsyncadd [#allocation5], 0
          %s4901 = sshll.u32 [#allocation23], 4
          %s4902 = int_to_ptr.vmem [resolvable:$true] %s4901
          %s4903 = sshll.u32 %s18, 4
          %s4904 = int_to_ptr.hbm [resolvable:$true] %s4903
          %4909 = dma.vmem_to_hbm [thread:$0]  %s4902, 1024, %s4904, [#allocation5], 256, 256, 16
        $region164: #{tpu_custom_call.1} parent=91 // pred_fallthru
          _
        // Predicated region
        $region165: #{tpu_custom_call.1} parent=91 // pred_check
          %p4910 = pneg %p485
        $region166: #{tpu_custom_call.1} parent=91 // pred_check_branch
          %4912 = sbr.rel (%p4910) target = $region168
        $region167: #{tpu_custom_call.1} parent=91 // pred_region
          %4914 = dma.done [#allocation5], 1024
        $region168: #{tpu_custom_call.1} parent=91 // pred_fallthru
          _
      $region92: #{tpu_custom_call.1} parent=5 // pred_fallthru
        _
      %p4915 = scmp.le.s32.totalorder 2, %s29
      // Predicated region
      $region169: #{tpu_custom_call.1} parent=5 // pred_check
        %p4916 = pneg %p4915
      $region170: #{tpu_custom_call.1} parent=5 // pred_check_branch
        %4918 = sbr.rel (%p4916) target = $region172
      $region171: #{tpu_custom_call.1} parent=5 // pred_region
        %s4919 = ssub.s32 %s29, 2
      $region172: #{tpu_custom_call.1} parent=5 // pred_fallthru
        _
    $region6: #{tpu_custom_call.1} parent=1 // loop_footer
      %s33 = sadd.s32 1, %s29
    $region7: #{tpu_custom_call.1} parent=1 // loop_footer_branch
      %28 = sbr.rel target = $region3
    $region8: #{tpu_custom_call.1} parent=1 // loop_exit
      _
    %4920 = vsyncpa [#allocation4], 1
    %s4921 = scalar_lea.sflag [#allocation4], 1
    %4922 = vsyncpa %s4921, 1
    %4923 = vsyncpa [#allocation7], 1
    %4924 = vsyncpa [#allocation10], 1
    %4925 = vsyncpa [#allocation13], 1
    %4926 = vsyncpa [#allocation5], 1
    %s4927 = scalar_lea.sflag [#allocation5], 1
    %4928 = vsyncpa %s4927, 1

</llo_original>
